<compile_context>
chip_gen: v5e
topology: v5e:2x2
jax: 0.10.0
libtpu: 0.0.40
codegen_flags: <defaults>
</compile_context>

<pallas_src>
import functools
import math

import jax
import jax.numpy as jnp
from jax.experimental import pallas as pl
from jax.experimental.pallas import tpu as pltpu


def _round_up(x, m):
    return (x + m - 1) // m * m


def _pick_pixel_tile(p, cap=512):
    """Largest multiple-of-128 pixel tile (<= cap) whose padding stays ~optimal."""
    cap = max(cap, 128)
    opts = [(t, _round_up(p, t)) for t in range(128, cap + 1, 128)]
    pp_min = min(pp for _, pp in opts)
    for t, pp in reversed(opts):
        if pp <= pp_min + pp_min // 16:      # allow <=6.25% extra padding for a bigger tile
            return t, pp
    return opts[0]


def _gelu(x):
    # TODO(synk): PyTorch nn.GELU() default is exact erf; tanh approximation is used
    #             here for a guaranteed TPU (EUP) lowering. Difference is ~1e-3.
    c = math.sqrt(2.0 / math.pi)
    return 0.5 * x * (1.0 + jnp.tanh(c * (x + 0.044715 * x * x * x)))


# ----------------------------- Pallas kernels -----------------------------
# All kernels compute  out[N, pixel_tile] = W[N, K] @ A[K, pixel_tile]
# so the (large) pixel axis sits on lanes for both loads and stores.

def _attn_fusion_kernel(a_ref, w_ref, b_ref, o_ref, *, out4):
    # A: [1, K, tp] bf16 ; W: [2*out4, K] bf16 (block-diag) ; b: [2*out4, 1] f32
    acc = jnp.dot(w_ref[...], a_ref[0], preferred_element_type=jnp.float32)
    acc = acc + b_ref[...]
    proj = acc[:out4]
    gate = jax.nn.sigmoid(acc[out4:])
    o_ref[0] = _gelu(proj * gate).astype(o_ref.dtype)


def _deconv_kernel_raw(a_ref, w_ref, b_ref, raw_ref):
    acc = jnp.dot(w_ref[...], a_ref[0], preferred_element_type=jnp.float32)
    raw_ref[0] = (acc + b_ref[...]).astype(raw_ref.dtype)


def _deconv_kernel_act(a_ref, w_ref, b_ref, s_ref, t_ref, act_ref):
    acc = jnp.dot(w_ref[...], a_ref[0], preferred_element_type=jnp.float32)
    raw = acc + b_ref[...]
    act_ref[0] = _gelu(raw * s_ref[...] + t_ref[...]).astype(act_ref.dtype)


def _deconv_kernel_both(a_ref, w_ref, b_ref, s_ref, t_ref, raw_ref, act_ref):
    acc = jnp.dot(w_ref[...], a_ref[0], preferred_element_type=jnp.float32)
    raw = acc + b_ref[...]
    raw_ref[0] = raw.astype(raw_ref.dtype)
    act_ref[0] = _gelu(raw * s_ref[...] + t_ref[...]).astype(act_ref.dtype)


# ----------------------------- attention fusion -----------------------------

def attn_fusion(x, att, wx, bx, wa, ba, tile_cap=512):
    """x: [B, Cv, H, W], att: [B, nhead, H, W] -> fused [B, ch*4, H, W] (bf16).

    TODO(synk): AttentionFusionSimple source was not provided; reconstructed as
    GELU( (1x1 conv of x) * sigmoid(1x1 conv of att) ) producing ch*4 channels.
    """
    B, Cv, H, W = x.shape
    nhead = att.shape[1]
    out4 = wx.shape[1]
    P = H * W
    tp, Pp = _pick_pixel_tile(P, tile_cap)

    xa = jnp.concatenate([x.reshape(B, Cv, P), att.reshape(B, nhead, P)], axis=1)
    K = Cv + nhead
    Kp = _round_up(K, 16)                                   # bf16 sublane friendly
    xa = jnp.pad(xa, ((0, 0), (0, Kp - K), (0, Pp - P))).astype(jnp.bfloat16)

    # block-diagonal [[wx^T, 0], [0, wa^T]]: proj|gate from a single MXU pass
    wcat = jnp.zeros((2 * out4, Kp), jnp.float32)
    wcat = wcat.at[:out4, :Cv].set(wx.T)
    wcat = wcat.at[out4:, Cv:Cv + nhead].set(wa.T)
    wcat = wcat.astype(jnp.bfloat16)
    bcat = jnp.concatenate([bx, ba]).reshape(2 * out4, 1).astype(jnp.float32)

    out = pl.pallas_call(
        functools.partial(_attn_fusion_kernel, out4=out4),
        out_shape=jax.ShapeDtypeStruct((B, out4, Pp), jnp.bfloat16),
        grid=(B, Pp // tp),
        in_specs=[
            pl.BlockSpec((1, Kp, tp), lambda b, m: (b, 0, m)),
            pl.BlockSpec((2 * out4, Kp), lambda b, m: (0, 0)),
            pl.BlockSpec((2 * out4, 1), lambda b, m: (0, 0)),
        ],
        out_specs=pl.BlockSpec((1, out4, tp), lambda b, m: (b, 0, m)),
        compiler_params=pltpu.CompilerParams(
            dimension_semantics=("parallel", "parallel")),
    )(xa, wcat, bcat)
    return out[:, :, :P].reshape(B, out4, H, W)


# ----------------------------- conv-transpose stage -----------------------------

def pack_deconv_weight(weight):
    """ConvTranspose2d weight [Cin, Cout, 4, 4] -> phase matrix [4*Cout, 4*Cin].

    Row n = (r*2+s)*Cout + co  (output sub-pixel (r, s), out channel co)
    Col k = (dh*2+dw)*Cin + ci (2x2 window tap (dh, dw), in channel ci)
    with kernel taps kh = r + 2 - 2*dh, kw = s + 2 - 2*dw.
    """
    rows = []
    for r in (0, 1):
        for s in (0, 1):
            cols = []
            for dh in (0, 1):
                for dw in (0, 1):
                    kh = r + 2 - 2 * dh
                    kw = s + 2 - 2 * dw
                    cols.append(weight[:, :, kh, kw].T)      # [Cout, Cin]
            rows.append(jnp.concatenate(cols, axis=1))       # [Cout, 4*Cin]
    return jnp.concatenate(rows, axis=0)                     # [4*Cout, 4*Cin]


def _pixel_shuffle_trim(y, H, W, Cout):
    """[B, 4*Cout, padded_pixels] (phase-block layout) -> [B, Cout, 2H, 2W] NCHW."""
    B = y.shape[0]
    P = (H + 1) * (W + 1)
    y = y[:, :, :P].reshape(B, 2, 2, Cout, H + 1, W + 1)      # (B, r, s, co, i, j)
    y = jnp.transpose(y, (0, 3, 4, 1, 5, 2))                  # (B, co, i, r, j, s)
    y = y.reshape(B, Cout, 2 * (H + 1), 2 * (W + 1))
    return y[:, :, 1:2 * H + 1, 1:2 * W + 1]


def deconv4x4_s2(x_act, weight, bias, bn_next=None, want_raw=True,
                 tile_cap=512, eps=1e-5):
    """ConvTranspose2d(Cin, Cout, 4, stride=2, padding=1) on NCHW input (fused epilogue).

    Returns (raw, act):
      raw: f32  [B, Cout, 2H, 2W]  -- the ConvTranspose output         (if want_raw)
      act: bf16 [B, Cout, 2H, 2W]  -- GELU(BN_eval(raw)) with bn_next  (if bn_next)
    BatchNorm uses eval-mode running statistics folded into scale/shift.
    """
    B, Cin, H, W = x_act.shape
    Cout = weight.shape[1]
    K, N = 4 * Cin, 4 * Cout
    P = (H + 1) * (W + 1)
    tp, Pp = _pick_pixel_tile(P, tile_cap)

    # channel-major im2col of 2x2 windows over the 1-padded input (exact, dense taps)
    xp = jnp.pad(x_act, ((0, 0), (0, 0), (1, 1), (1, 1)))
    cols = [xp[:, :, dh:dh + H + 1, dw:dw + W + 1] for dh in (0, 1) for dw in (0, 1)]
    A = jnp.concatenate(cols, axis=1).reshape(B, K, P)
    A = jnp.pad(A, ((0, 0), (0, 0), (0, Pp - P))).astype(jnp.bfloat16)

    Wm = pack_deconv_weight(weight).astype(jnp.bfloat16)      # [N, K]
    b4 = jnp.tile(bias, 4).reshape(N, 1).astype(jnp.float32)

    want_act = bn_next is not None
    ins = [A, Wm, b4]
    in_specs = [
        pl.BlockSpec((1, K, tp), lambda b, m: (b, 0, m)),
        pl.BlockSpec((N, K), lambda b, m: (0, 0)),
        pl.BlockSpec((N, 1), lambda b, m: (0, 0)),
    ]
    if want_act:
        scale = bn_next['gamma'] / jnp.sqrt(bn_next['var'] + eps)
        shift = bn_next['beta'] - bn_next['mean'] * scale
        ins += [jnp.tile(scale, 4).reshape(N, 1).astype(jnp.float32),
                jnp.tile(shift, 4).reshape(N, 1).astype(jnp.float32)]
        in_specs += [pl.BlockSpec((N, 1), lambda b, m: (0, 0)),
                     pl.BlockSpec((N, 1), lambda b, m: (0, 0))]

    out_block = pl.BlockSpec((1, N, tp), lambda b, m: (b, 0, m))
    if want_raw and want_act:
        kernel = _deconv_kernel_both
        out_shape = (jax.ShapeDtypeStruct((B, N, Pp), jnp.float32),
                     jax.ShapeDtypeStruct((B, N, Pp), jnp.bfloat16))
        out_specs = (out_block, out_block)
    elif want_act:
        kernel = _deconv_kernel_act
        out_shape = jax.ShapeDtypeStruct((B, N, Pp), jnp.bfloat16)
        out_specs = out_block
    else:
        kernel = _deconv_kernel_raw
        out_shape = jax.ShapeDtypeStruct((B, N, Pp), jnp.float32)
        out_specs = out_block

    res = pl.pallas_call(
        kernel,
        out_shape=out_shape,
        grid=(B, Pp // tp),
        in_specs=in_specs,
        out_specs=out_specs,
        compiler_params=pltpu.CompilerParams(
            dimension_semantics=("parallel", "parallel")),
    )(*ins)

    if want_raw and want_act:
        raw, act = res
    elif want_act:
        raw, act = None, res
    else:
        raw, act = res, None

    raw_o = _pixel_shuffle_trim(raw, H, W, Cout) if raw is not None else None
    act_o = _pixel_shuffle_trim(act, H, W, Cout) if act is not None else None
    return raw_o, act_o


# ----------------------------- module -----------------------------

def init_params(key, ch, vit_ch, nhead):
    keys = iter(jax.random.split(key, 32))

    def nrm(shape, scale=0.05):
        return jax.random.normal(next(keys), shape, jnp.float32) * scale

    def convt(cin, cout):
        return {'w': nrm((cin, cout, 4, 4)), 'b': nrm((cout,))}

    def bn(c):
        return {'gamma': 1.0 + nrm((c,)), 'beta': nrm((c,)),
                'mean': nrm((c,)), 'var': 1.0 + jnp.abs(nrm((c,)))}

    out4 = ch * 4
    return {
        # AttentionFusionSimple (reconstructed, see TODO in attn_fusion)
        'attn_wx': nrm((vit_ch, out4)), 'attn_bx': nrm((out4,)),
        'attn_wa': nrm((nhead, out4)), 'attn_ba': nrm((out4,)),
        # decoder1: ConvT(ch*4 -> ch*2), BN, GELU, ConvT(ch*2 -> ch)
        'd1_ct1': convt(ch * 4, ch * 2), 'd1_bn': bn(ch * 2), 'd1_ct2': convt(ch * 2, ch),
        # decoder2: BN(ch), GELU, ConvT(ch -> ch//2)
        'd2_bn': bn(ch), 'd2_ct': convt(ch, ch // 2),
        # decoder3: BN(ch//2), GELU, ConvT(ch//2 -> ch//4)
        'd3_bn': bn(ch // 2), 'd3_ct': convt(ch // 2, ch // 4),
    }


def vit_decoder_stage4_forward(params, x, att):
    """x: [B, vit_ch, H, W], att: [B, nhead, H, W]  (multi_scale_decoder=False path).

    Returns (out1, out2, out3) in NCHW, matching VITDecoderStage4.forward.
    """
    p = params
    # attention fusion -> [B, ch*4, H, W]  (bf16, feeds the first conv-transpose)
    xf = attn_fusion(x, att, p['attn_wx'], p['attn_bx'], p['attn_wa'], p['attn_ba'])

    # decoder1 = ConvT(ch*4->ch*2) + BN + GELU (fused epilogue), then ConvT(ch*2->ch)
    _, h1 = deconv4x4_s2(xf, p['d1_ct1']['w'], p['d1_ct1']['b'],
                         bn_next=p['d1_bn'], want_raw=False)
    # out1 = decoder1(xf);  decoder2's leading BN+GELU is fused as its epilogue
    out1, h2 = deconv4x4_s2(h1, p['d1_ct2']['w'], p['d1_ct2']['b'],
                            bn_next=p['d2_bn'], want_raw=True)
    # out2 = decoder2(out1); decoder3's leading BN+GELU fused as epilogue
    out2, h3 = deconv4x4_s2(h2, p['d2_ct']['w'], p['d2_ct']['b'],
                            bn_next=p['d3_bn'], want_raw=True)
    # out3 = decoder3(out2)
    out3, _ = deconv4x4_s2(h3, p['d3_ct']['w'], p['d3_ct']['b'],
                           bn_next=None, want_raw=True)
    return out1, out2, out3


if __name__ == "__main__":
    args = {'out_ch': 8, 'vit_ch': 32, 'nhead': 4, 'att_fusion': True,
            'multi_scale_decoder': False}
    ch, vit_ch, nhead = args['out_ch'], args['vit_ch'], args['nhead']
    B, H, W = 2, 8, 8

    key = jax.random.PRNGKey(0)
    kp, kx, ka = jax.random.split(key, 3)
    params = init_params(kp, ch, vit_ch, nhead)
    x = jax.random.normal(kx, (B, vit_ch, H, W), jnp.float32)
    att = jax.random.normal(ka, (B, nhead, H, W), jnp.float32)

    fwd = jax.jit(functools.partial(vit_decoder_stage4_forward, params))
    out1, out2, out3 = fwd(x, att)
    jax.block_until_ready((out1, out2, out3))

    assert out1.shape == (B, ch, 4 * H, 4 * W), out1.shape
    assert out2.shape == (B, ch // 2, 8 * H, 8 * W), out2.shape
    assert out3.shape == (B, ch // 4, 16 * H, 16 * W), out3.shape
    print("KERNEL_OK")
</pallas_src>

<mosaic_0001>
module attributes {stable_mosaic.version = 11 : i64} {
  func.func @_attn_fusion_kernel(%arg0: i32, %arg1: i32, %arg2: memref<1x48x128xbf16, #tpu.memory_space<vmem>>, %arg3: memref<64x48xbf16, #tpu.memory_space<vmem>>, %arg4: memref<64x1xf32, #tpu.memory_space<vmem>>, %arg5: memref<1x32x128xbf16, #tpu.memory_space<vmem>>) attributes {dimension_semantics = [#tpu.dimension_semantics<parallel>, #tpu.dimension_semantics<parallel>], iteration_bounds = array<i64: 2, 1>, scalar_prefetch = 0 : i64, scratch_operands = 0 : i64, tpu.core_type = #tpu.core_type<tc>, window_params = [{transform_indices = @transform_0, window_bounds = array<i64: 1, 48, 128>}, {pipeline_mode = #tpu.pipeline_mode<synchronous>, transform_indices = @transform_1, window_bounds = array<i64: 64, 48>}, {pipeline_mode = #tpu.pipeline_mode<synchronous>, transform_indices = @transform_2, window_bounds = array<i64: 64, 1>}, {transform_indices = @transform_3, window_bounds = array<i64: 1, 32, 128>}]} {
    %c0 = arith.constant 0 : index
    %c0_0 = arith.constant 0 : index
    %0 = vector.load %arg3[%c0, %c0_0] : memref<64x48xbf16, #tpu.memory_space<vmem>>, vector<64x48xbf16>
    %c0_1 = arith.constant 0 : index
    %c0_2 = arith.constant 0 : index
    %c0_3 = arith.constant 0 : index
    %1 = vector.load %arg2[%c0_1, %c0_2, %c0_3] : memref<1x48x128xbf16, #tpu.memory_space<vmem>>, vector<1x48x128xbf16>
    %2 = vector.shape_cast %1 : vector<1x48x128xbf16> to vector<48x128xbf16>
    %cst = arith.constant dense<0.000000e+00> : vector<64x128xf32>
    %3 = tpu.matmul %0, %2, %cst {dimension_numbers = #tpu.dot_dimension_numbers<[1], [0], [0], [1], [0, 0, 1, 1], [], []>} : vector<64x48xbf16>, vector<48x128xbf16>, vector<64x128xf32> -> vector<64x128xf32>
    %c0_4 = arith.constant 0 : index
    %c0_5 = arith.constant 0 : index
    %4 = vector.load %arg4[%c0_4, %c0_5] : memref<64x1xf32, #tpu.memory_space<vmem>>, vector<64x1xf32>
    %5 = vector.broadcast %4 : vector<64x1xf32> to vector<64x128xf32>
    %6 = arith.addf %3, %5 : vector<64x128xf32>
    %7 = vector.extract_strided_slice %6 {offsets = [0, 0], sizes = [32, 128], strides = [1, 1]} : vector<64x128xf32> to vector<32x128xf32>
    %8 = vector.extract_strided_slice %6 {offsets = [32, 0], sizes = [32, 128], strides = [1, 1]} : vector<64x128xf32> to vector<32x128xf32>
    %9 = arith.negf %8 : vector<32x128xf32>
    %10 = math.exp %9 : vector<32x128xf32>
    %cst_6 = arith.constant 1.000000e+00 : f32
    %11 = vector.broadcast %cst_6 : f32 to vector<32x128xf32>
    %12 = arith.addf %11, %10 : vector<32x128xf32>
    %13 = arith.divf %11, %12 : vector<32x128xf32>
    %14 = arith.mulf %7, %13 : vector<32x128xf32>
    %cst_7 = arith.constant 5.000000e-01 : f32
    %15 = vector.broadcast %cst_7 : f32 to vector<32x128xf32>
    %16 = arith.mulf %15, %14 : vector<32x128xf32>
    %cst_8 = arith.constant 4.471500e-02 : f32
    %17 = vector.broadcast %cst_8 : f32 to vector<32x128xf32>
    %18 = arith.mulf %17, %14 : vector<32x128xf32>
    %19 = arith.mulf %18, %14 : vector<32x128xf32>
    %20 = arith.mulf %19, %14 : vector<32x128xf32>
    %21 = arith.addf %14, %20 : vector<32x128xf32>
    %cst_9 = arith.constant 0.797884583 : f32
    %22 = vector.broadcast %cst_9 : f32 to vector<32x128xf32>
    %23 = arith.mulf %22, %21 : vector<32x128xf32>
    %24 = math.tanh %23 : vector<32x128xf32>
    %cst_10 = arith.constant 1.000000e+00 : f32
    %25 = vector.broadcast %cst_10 : f32 to vector<32x128xf32>
    %26 = arith.addf %25, %24 : vector<32x128xf32>
    %27 = arith.mulf %16, %26 : vector<32x128xf32>
    %28 = arith.truncf %27 : vector<32x128xf32> to vector<32x128xbf16>
    %c0_11 = arith.constant 0 : index
    %c0_12 = arith.constant 0 : index
    %c0_13 = arith.constant 0 : index
    %29 = vector.load %arg5[%c0_11, %c0_12, %c0_13] : memref<1x32x128xbf16, #tpu.memory_space<vmem>>, vector<1x32x128xbf16>
    %30 = vector.shape_cast %29 : vector<1x32x128xbf16> to vector<32x128xbf16>
    %31 = vector.shape_cast %28 : vector<32x128xbf16> to vector<1x32x128xbf16>
    tpu.vector_store %arg5[%c0_11, %c0_12, %c0_13], %31 {strides = array<i32>} : memref<1x32x128xbf16, #tpu.memory_space<vmem>>, vector<1x32x128xbf16>,
    return
  }
  func.func @transform_0(%arg0: i32, %arg1: i32) -> (i32, i32, i32) {
    %c0_i32 = arith.constant 0 : i32
    %c0_i32_0 = arith.constant 0 : i32
    return %arg0, %c0_i32, %arg1 : i32, i32, i32
  }
  func.func @transform_1(%arg0: i32, %arg1: i32) -> (i32, i32) {
    %c0_i32 = arith.constant 0 : i32
    %c0_i32_0 = arith.constant 0 : i32
    %c0_i32_1 = arith.constant 0 : i32
    return %c0_i32, %c0_i32_0 : i32, i32
  }
  func.func @transform_2(%arg0: i32, %arg1: i32) -> (i32, i32) {
    %c0_i32 = arith.constant 0 : i32
    %c0_i32_0 = arith.constant 0 : i32
    %c0_i32_1 = arith.constant 0 : i32
    return %c0_i32, %c0_i32_0 : i32, i32
  }
  func.func @transform_3(%arg0: i32, %arg1: i32) -> (i32, i32, i32) {
    %c0_i32 = arith.constant 0 : i32
    %c0_i32_0 = arith.constant 0 : i32
    return %arg0, %c0_i32, %arg1 : i32, i32, i32
  }
}

module attributes {stable_mosaic.version = 11 : i64} {
  func.func @_deconv_kernel_act(%arg0: i32, %arg1: i32, %arg2: memref<1x128x128xbf16, #tpu.memory_space<vmem>>, %arg3: memref<64x128xbf16, #tpu.memory_space<vmem>>, %arg4: memref<64x1xf32, #tpu.memory_space<vmem>>, %arg5: memref<64x1xf32, #tpu.memory_space<vmem>>, %arg6: memref<64x1xf32, #tpu.memory_space<vmem>>, %arg7: memref<1x64x128xbf16, #tpu.memory_space<vmem>>) attributes {dimension_semantics = [#tpu.dimension_semantics<parallel>, #tpu.dimension_semantics<parallel>], iteration_bounds = array<i64: 2, 1>, scalar_prefetch = 0 : i64, scratch_operands = 0 : i64, tpu.core_type = #tpu.core_type<tc>, window_params = [{transform_indices = @transform_0, window_bounds = array<i64: 1, 128, 128>}, {pipeline_mode = #tpu.pipeline_mode<synchronous>, transform_indices = @transform_1, window_bounds = array<i64: 64, 128>}, {pipeline_mode = #tpu.pipeline_mode<synchronous>, transform_indices = @transform_2, window_bounds = array<i64: 64, 1>}, {pipeline_mode = #tpu.pipeline_mode<synchronous>, transform_indices = @transform_3, window_bounds = array<i64: 64, 1>}, {pipeline_mode = #tpu.pipeline_mode<synchronous>, transform_indices = @transform_4, window_bounds = array<i64: 64, 1>}, {transform_indices = @transform_5, window_bounds = array<i64: 1, 64, 128>}]} {
    %c0 = arith.constant 0 : index
    %c0_0 = arith.constant 0 : index
    %0 = vector.load %arg3[%c0, %c0_0] : memref<64x128xbf16, #tpu.memory_space<vmem>>, vector<64x128xbf16>
    %c0_1 = arith.constant 0 : index
    %c0_2 = arith.constant 0 : index
    %c0_3 = arith.constant 0 : index
    %1 = vector.load %arg2[%c0_1, %c0_2, %c0_3] : memref<1x128x128xbf16, #tpu.memory_space<vmem>>, vector<1x128x128xbf16>
    %2 = vector.shape_cast %1 : vector<1x128x128xbf16> to vector<128x128xbf16>
    %cst = arith.constant dense<0.000000e+00> : vector<64x128xf32>
    %3 = tpu.matmul %0, %2, %cst {dimension_numbers = #tpu.dot_dimension_numbers<[1], [0], [0], [1], [0, 0, 1, 1], [], []>} : vector<64x128xbf16>, vector<128x128xbf16>, vector<64x128xf32> -> vector<64x128xf32>
    %c0_4 = arith.constant 0 : index
    %c0_5 = arith.constant 0 : index
    %4 = vector.load %arg4[%c0_4, %c0_5] : memref<64x1xf32, #tpu.memory_space<vmem>>, vector<64x1xf32>
    %5 = vector.broadcast %4 : vector<64x1xf32> to vector<64x128xf32>
    %6 = arith.addf %3, %5 : vector<64x128xf32>
    %c0_6 = arith.constant 0 : index
    %c0_7 = arith.constant 0 : index
    %7 = vector.load %arg5[%c0_6, %c0_7] : memref<64x1xf32, #tpu.memory_space<vmem>>, vector<64x1xf32>
    %8 = vector.broadcast %7 : vector<64x1xf32> to vector<64x128xf32>
    %9 = arith.mulf %6, %8 : vector<64x128xf32>
    %c0_8 = arith.constant 0 : index
    %c0_9 = arith.constant 0 : index
    %10 = vector.load %arg6[%c0_8, %c0_9] : memref<64x1xf32, #tpu.memory_space<vmem>>, vector<64x1xf32>
    %11 = vector.broadcast %10 : vector<64x1xf32> to vector<64x128xf32>
    %12 = arith.addf %9, %11 : vector<64x128xf32>
    %cst_10 = arith.constant 5.000000e-01 : f32
    %13 = vector.broadcast %cst_10 : f32 to vector<64x128xf32>
    %14 = arith.mulf %13, %12 : vector<64x128xf32>
    %cst_11 = arith.constant 4.471500e-02 : f32
    %15 = vector.broadcast %cst_11 : f32 to vector<64x128xf32>
    %16 = arith.mulf %15, %12 : vector<64x128xf32>
    %17 = arith.mulf %16, %12 : vector<64x128xf32>
    %18 = arith.mulf %17, %12 : vector<64x128xf32>
    %19 = arith.addf %12, %18 : vector<64x128xf32>
    %cst_12 = arith.constant 0.797884583 : f32
    %20 = vector.broadcast %cst_12 : f32 to vector<64x128xf32>
    %21 = arith.mulf %20, %19 : vector<64x128xf32>
    %22 = math.tanh %21 : vector<64x128xf32>
    %cst_13 = arith.constant 1.000000e+00 : f32
    %23 = vector.broadcast %cst_13 : f32 to vector<64x128xf32>
    %24 = arith.addf %23, %22 : vector<64x128xf32>
    %25 = arith.mulf %14, %24 : vector<64x128xf32>
    %26 = arith.truncf %25 : vector<64x128xf32> to vector<64x128xbf16>
    %c0_14 = arith.constant 0 : index
    %c0_15 = arith.constant 0 : index
    %c0_16 = arith.constant 0 : index
    %27 = vector.load %arg7[%c0_14, %c0_15, %c0_16] : memref<1x64x128xbf16, #tpu.memory_space<vmem>>, vector<1x64x128xbf16>
    %28 = vector.shape_cast %27 : vector<1x64x128xbf16> to vector<64x128xbf16>
    %29 = vector.shape_cast %26 : vector<64x128xbf16> to vector<1x64x128xbf16>
    tpu.vector_store %arg7[%c0_14, %c0_15, %c0_16], %29 {strides = array<i32>} : memref<1x64x128xbf16, #tpu.memory_space<vmem>>, vector<1x64x128xbf16>,
    return
  }
  func.func @transform_0(%arg0: i32, %arg1: i32) -> (i32, i32, i32) {
    %c0_i32 = arith.constant 0 : i32
    %c0_i32_0 = arith.constant 0 : i32
    return %arg0, %c0_i32, %arg1 : i32, i32, i32
  }
  func.func @transform_1(%arg0: i32, %arg1: i32) -> (i32, i32) {
    %c0_i32 = arith.constant 0 : i32
    %c0_i32_0 = arith.constant 0 : i32
    %c0_i32_1 = arith.constant 0 : i32
    return %c0_i32, %c0_i32_0 : i32, i32
  }
  func.func @transform_2(%arg0: i32, %arg1: i32) -> (i32, i32) {
    %c0_i32 = arith.constant 0 : i32
    %c0_i32_0 = arith.constant 0 : i32
    %c0_i32_1 = arith.constant 0 : i32
    return %c0_i32, %c0_i32_0 : i32, i32
  }
  func.func @transform_3(%arg0: i32, %arg1: i32) -> (i32, i32) {
    %c0_i32 = arith.constant 0 : i32
    %c0_i32_0 = arith.constant 0 : i32
    %c0_i32_1 = arith.constant 0 : i32
    return %c0_i32, %c0_i32_0 : i32, i32
  }
  func.func @transform_4(%arg0: i32, %arg1: i32) -> (i32, i32) {
    %c0_i32 = arith.constant 0 : i32
    %c0_i32_0 = arith.constant 0 : i32
    %c0_i32_1 = arith.constant 0 : i32
    return %c0_i32, %c0_i32_0 : i32, i32
  }
  func.func @transform_5(%arg0: i32, %arg1: i32) -> (i32, i32, i32) {
    %c0_i32 = arith.constant 0 : i32
    %c0_i32_0 = arith.constant 0 : i32
    return %arg0, %c0_i32, %arg1 : i32, i32, i32
  }
}

module attributes {stable_mosaic.version = 11 : i64} {
  func.func @_deconv_kernel_both(%arg0: i32, %arg1: i32, %arg2: memref<1x64x384xbf16, #tpu.memory_space<vmem>>, %arg3: memref<32x64xbf16, #tpu.memory_space<vmem>>, %arg4: memref<32x1xf32, #tpu.memory_space<vmem>>, %arg5: memref<32x1xf32, #tpu.memory_space<vmem>>, %arg6: memref<32x1xf32, #tpu.memory_space<vmem>>, %arg7: memref<1x32x384xf32, #tpu.memory_space<vmem>>, %arg8: memref<1x32x384xbf16, #tpu.memory_space<vmem>>) attributes {dimension_semantics = [#tpu.dimension_semantics<parallel>, #tpu.dimension_semantics<parallel>], iteration_bounds = array<i64: 2, 1>, scalar_prefetch = 0 : i64, scratch_operands = 0 : i64, tpu.core_type = #tpu.core_type<tc>, window_params = [{transform_indices = @transform_0, window_bounds = array<i64: 1, 64, 384>}, {pipeline_mode = #tpu.pipeline_mode<synchronous>, transform_indices = @transform_1, window_bounds = array<i64: 32, 64>}, {pipeline_mode = #tpu.pipeline_mode<synchronous>, transform_indices = @transform_2, window_bounds = array<i64: 32, 1>}, {pipeline_mode = #tpu.pipeline_mode<synchronous>, transform_indices = @transform_3, window_bounds = array<i64: 32, 1>}, {pipeline_mode = #tpu.pipeline_mode<synchronous>, transform_indices = @transform_4, window_bounds = array<i64: 32, 1>}, {transform_indices = @transform_5, window_bounds = array<i64: 1, 32, 384>}, {transform_indices = @transform_6, window_bounds = array<i64: 1, 32, 384>}]} {
    %c0 = arith.constant 0 : index
    %c0_0 = arith.constant 0 : index
    %0 = vector.load %arg3[%c0, %c0_0] : memref<32x64xbf16, #tpu.memory_space<vmem>>, vector<32x64xbf16>
    %c0_1 = arith.constant 0 : index
    %c0_2 = arith.constant 0 : index
    %c0_3 = arith.constant 0 : index
    %1 = vector.load %arg2[%c0_1, %c0_2, %c0_3] : memref<1x64x384xbf16, #tpu.memory_space<vmem>>, vector<1x64x384xbf16>
    %2 = vector.shape_cast %1 : vector<1x64x384xbf16> to vector<64x384xbf16>
    %cst = arith.constant dense<0.000000e+00> : vector<32x384xf32>
    %3 = tpu.matmul %0, %2, %cst {dimension_numbers = #tpu.dot_dimension_numbers<[1], [0], [0], [1], [0, 0, 1, 1], [], []>} : vector<32x64xbf16>, vector<64x384xbf16>, vector<32x384xf32> -> vector<32x384xf32>
    %c0_4 = arith.constant 0 : index
    %c0_5 = arith.constant 0 : index
    %4 = vector.load %arg4[%c0_4, %c0_5] : memref<32x1xf32, #tpu.memory_space<vmem>>, vector<32x1xf32>
    %5 = vector.broadcast %4 : vector<32x1xf32> to vector<32x384xf32>
    %6 = arith.addf %3, %5 : vector<32x384xf32>
    %c0_6 = arith.constant 0 : index
    %c0_7 = arith.constant 0 : index
    %c0_8 = arith.constant 0 : index
    %7 = vector.load %arg7[%c0_6, %c0_7, %c0_8] : memref<1x32x384xf32, #tpu.memory_space<vmem>>, vector<1x32x384xf32>
    %8 = vector.shape_cast %7 : vector<1x32x384xf32> to vector<32x384xf32>
    %9 = vector.shape_cast %6 : vector<32x384xf32> to vector<1x32x384xf32>
    tpu.vector_store %arg7[%c0_6, %c0_7, %c0_8], %9 {strides = array<i32>} : memref<1x32x384xf32, #tpu.memory_space<vmem>>, vector<1x32x384xf32>,
    %c0_9 = arith.constant 0 : index
    %c0_10 = arith.constant 0 : index
    %10 = vector.load %arg5[%c0_9, %c0_10] : memref<32x1xf32, #tpu.memory_space<vmem>>, vector<32x1xf32>
    %11 = vector.broadcast %10 : vector<32x1xf32> to vector<32x384xf32>
    %12 = arith.mulf %6, %11 : vector<32x384xf32>
    %c0_11 = arith.constant 0 : index
    %c0_12 = arith.constant 0 : index
    %13 = vector.load %arg6[%c0_11, %c0_12] : memref<32x1xf32, #tpu.memory_space<vmem>>, vector<32x1xf32>
    %14 = vector.broadcast %13 : vector<32x1xf32> to vector<32x384xf32>
    %15 = arith.addf %12, %14 : vector<32x384xf32>
    %cst_13 = arith.constant 5.000000e-01 : f32
    %16 = vector.broadcast %cst_13 : f32 to vector<32x384xf32>
    %17 = arith.mulf %16, %15 : vector<32x384xf32>
    %cst_14 = arith.constant 4.471500e-02 : f32
    %18 = vector.broadcast %cst_14 : f32 to vector<32x384xf32>
    %19 = arith.mulf %18, %15 : vector<32x384xf32>
    %20 = arith.mulf %19, %15 : vector<32x384xf32>
    %21 = arith.mulf %20, %15 : vector<32x384xf32>
    %22 = arith.addf %15, %21 : vector<32x384xf32>
    %cst_15 = arith.constant 0.797884583 : f32
    %23 = vector.broadcast %cst_15 : f32 to vector<32x384xf32>
    %24 = arith.mulf %23, %22 : vector<32x384xf32>
    %25 = math.tanh %24 : vector<32x384xf32>
    %cst_16 = arith.constant 1.000000e+00 : f32
    %26 = vector.broadcast %cst_16 : f32 to vector<32x384xf32>
    %27 = arith.addf %26, %25 : vector<32x384xf32>
    %28 = arith.mulf %17, %27 : vector<32x384xf32>
    %29 = arith.truncf %28 : vector<32x384xf32> to vector<32x384xbf16>
    %c0_17 = arith.constant 0 : index
    %c0_18 = arith.constant 0 : index
    %c0_19 = arith.constant 0 : index
    %30 = vector.load %arg8[%c0_17, %c0_18, %c0_19] : memref<1x32x384xbf16, #tpu.memory_space<vmem>>, vector<1x32x384xbf16>
    %31 = vector.shape_cast %30 : vector<1x32x384xbf16> to vector<32x384xbf16>
    %32 = vector.shape_cast %29 : vector<32x384xbf16> to vector<1x32x384xbf16>
    tpu.vector_store %arg8[%c0_17, %c0_18, %c0_19], %32 {strides = array<i32>} : memref<1x32x384xbf16, #tpu.memory_space<vmem>>, vector<1x32x384xbf16>,
    return
  }
  func.func @transform_0(%arg0: i32, %arg1: i32) -> (i32, i32, i32) {
    %c0_i32 = arith.constant 0 : i32
    %c0_i32_0 = arith.constant 0 : i32
    return %arg0, %c0_i32, %arg1 : i32, i32, i32
  }
  func.func @transform_1(%arg0: i32, %arg1: i32) -> (i32, i32) {
    %c0_i32 = arith.constant 0 : i32
    %c0_i32_0 = arith.constant 0 : i32
    %c0_i32_1 = arith.constant 0 : i32
    return %c0_i32, %c0_i32_0 : i32, i32
  }
  func.func @transform_2(%arg0: i32, %arg1: i32) -> (i32, i32) {
    %c0_i32 = arith.constant 0 : i32
    %c0_i32_0 = arith.constant 0 : i32
    %c0_i32_1 = arith.constant 0 : i32
    return %c0_i32, %c0_i32_0 : i32, i32
  }
  func.func @transform_3(%arg0: i32, %arg1: i32) -> (i32, i32) {
    %c0_i32 = arith.constant 0 : i32
    %c0_i32_0 = arith.constant 0 : i32
    %c0_i32_1 = arith.constant 0 : i32
    return %c0_i32, %c0_i32_0 : i32, i32
  }
  func.func @transform_4(%arg0: i32, %arg1: i32) -> (i32, i32) {
    %c0_i32 = arith.constant 0 : i32
    %c0_i32_0 = arith.constant 0 : i32
    %c0_i32_1 = arith.constant 0 : i32
    return %c0_i32, %c0_i32_0 : i32, i32
  }
  func.func @transform_5(%arg0: i32, %arg1: i32) -> (i32, i32, i32) {
    %c0_i32 = arith.constant 0 : i32
    %c0_i32_0 = arith.constant 0 : i32
    return %arg0, %c0_i32, %arg1 : i32, i32, i32
  }
  func.func @transform_6(%arg0: i32, %arg1: i32) -> (i32, i32, i32) {
    %c0_i32 = arith.constant 0 : i32
    %c0_i32_0 = arith.constant 0 : i32
    return %arg0, %c0_i32, %arg1 : i32, i32, i32
  }
}

module attributes {stable_mosaic.version = 11 : i64} {
  func.func @_deconv_kernel_both(%arg0: i32, %arg1: i32, %arg2: memref<1x32x384xbf16, #tpu.memory_space<vmem>>, %arg3: memref<16x32xbf16, #tpu.memory_space<vmem>>, %arg4: memref<16x1xf32, #tpu.memory_space<vmem>>, %arg5: memref<16x1xf32, #tpu.memory_space<vmem>>, %arg6: memref<16x1xf32, #tpu.memory_space<vmem>>, %arg7: memref<1x16x384xf32, #tpu.memory_space<vmem>>, %arg8: memref<1x16x384xbf16, #tpu.memory_space<vmem>>) attributes {dimension_semantics = [#tpu.dimension_semantics<parallel>, #tpu.dimension_semantics<parallel>], iteration_bounds = array<i64: 2, 3>, scalar_prefetch = 0 : i64, scratch_operands = 0 : i64, tpu.core_type = #tpu.core_type<tc>, window_params = [{transform_indices = @transform_0, window_bounds = array<i64: 1, 32, 384>}, {pipeline_mode = #tpu.pipeline_mode<synchronous>, transform_indices = @transform_1, window_bounds = array<i64: 16, 32>}, {pipeline_mode = #tpu.pipeline_mode<synchronous>, transform_indices = @transform_2, window_bounds = array<i64: 16, 1>}, {pipeline_mode = #tpu.pipeline_mode<synchronous>, transform_indices = @transform_3, window_bounds = array<i64: 16, 1>}, {pipeline_mode = #tpu.pipeline_mode<synchronous>, transform_indices = @transform_4, window_bounds = array<i64: 16, 1>}, {transform_indices = @transform_5, window_bounds = array<i64: 1, 16, 384>}, {transform_indices = @transform_6, window_bounds = array<i64: 1, 16, 384>}]} {
    %c0 = arith.constant 0 : index
    %c0_0 = arith.constant 0 : index
    %0 = vector.load %arg3[%c0, %c0_0] : memref<16x32xbf16, #tpu.memory_space<vmem>>, vector<16x32xbf16>
    %c0_1 = arith.constant 0 : index
    %c0_2 = arith.constant 0 : index
    %c0_3 = arith.constant 0 : index
    %1 = vector.load %arg2[%c0_1, %c0_2, %c0_3] : memref<1x32x384xbf16, #tpu.memory_space<vmem>>, vector<1x32x384xbf16>
    %2 = vector.shape_cast %1 : vector<1x32x384xbf16> to vector<32x384xbf16>
    %cst = arith.constant dense<0.000000e+00> : vector<16x384xf32>
    %3 = tpu.matmul %0, %2, %cst {dimension_numbers = #tpu.dot_dimension_numbers<[1], [0], [0], [1], [0, 0, 1, 1], [], []>} : vector<16x32xbf16>, vector<32x384xbf16>, vector<16x384xf32> -> vector<16x384xf32>
    %c0_4 = arith.constant 0 : index
    %c0_5 = arith.constant 0 : index
    %4 = vector.load %arg4[%c0_4, %c0_5] : memref<16x1xf32, #tpu.memory_space<vmem>>, vector<16x1xf32>
    %5 = vector.broadcast %4 : vector<16x1xf32> to vector<16x384xf32>
    %6 = arith.addf %3, %5 : vector<16x384xf32>
    %c0_6 = arith.constant 0 : index
    %c0_7 = arith.constant 0 : index
    %c0_8 = arith.constant 0 : index
    %7 = vector.load %arg7[%c0_6, %c0_7, %c0_8] : memref<1x16x384xf32, #tpu.memory_space<vmem>>, vector<1x16x384xf32>
    %8 = vector.shape_cast %7 : vector<1x16x384xf32> to vector<16x384xf32>
    %9 = vector.shape_cast %6 : vector<16x384xf32> to vector<1x16x384xf32>
    tpu.vector_store %arg7[%c0_6, %c0_7, %c0_8], %9 {strides = array<i32>} : memref<1x16x384xf32, #tpu.memory_space<vmem>>, vector<1x16x384xf32>,
    %c0_9 = arith.constant 0 : index
    %c0_10 = arith.constant 0 : index
    %10 = vector.load %arg5[%c0_9, %c0_10] : memref<16x1xf32, #tpu.memory_space<vmem>>, vector<16x1xf32>
    %11 = vector.broadcast %10 : vector<16x1xf32> to vector<16x384xf32>
    %12 = arith.mulf %6, %11 : vector<16x384xf32>
    %c0_11 = arith.constant 0 : index
    %c0_12 = arith.constant 0 : index
    %13 = vector.load %arg6[%c0_11, %c0_12] : memref<16x1xf32, #tpu.memory_space<vmem>>, vector<16x1xf32>
    %14 = vector.broadcast %13 : vector<16x1xf32> to vector<16x384xf32>
    %15 = arith.addf %12, %14 : vector<16x384xf32>
    %cst_13 = arith.constant 5.000000e-01 : f32
    %16 = vector.broadcast %cst_13 : f32 to vector<16x384xf32>
    %17 = arith.mulf %16, %15 : vector<16x384xf32>
    %cst_14 = arith.constant 4.471500e-02 : f32
    %18 = vector.broadcast %cst_14 : f32 to vector<16x384xf32>
    %19 = arith.mulf %18, %15 : vector<16x384xf32>
    %20 = arith.mulf %19, %15 : vector<16x384xf32>
    %21 = arith.mulf %20, %15 : vector<16x384xf32>
    %22 = arith.addf %15, %21 : vector<16x384xf32>
    %cst_15 = arith.constant 0.797884583 : f32
    %23 = vector.broadcast %cst_15 : f32 to vector<16x384xf32>
    %24 = arith.mulf %23, %22 : vector<16x384xf32>
    %25 = math.tanh %24 : vector<16x384xf32>
    %cst_16 = arith.constant 1.000000e+00 : f32
    %26 = vector.broadcast %cst_16 : f32 to vector<16x384xf32>
    %27 = arith.addf %26, %25 : vector<16x384xf32>
    %28 = arith.mulf %17, %27 : vector<16x384xf32>
    %29 = arith.truncf %28 : vector<16x384xf32> to vector<16x384xbf16>
    %c0_17 = arith.constant 0 : index
    %c0_18 = arith.constant 0 : index
    %c0_19 = arith.constant 0 : index
    %30 = vector.load %arg8[%c0_17, %c0_18, %c0_19] : memref<1x16x384xbf16, #tpu.memory_space<vmem>>, vector<1x16x384xbf16>
    %31 = vector.shape_cast %30 : vector<1x16x384xbf16> to vector<16x384xbf16>
    %32 = vector.shape_cast %29 : vector<16x384xbf16> to vector<1x16x384xbf16>
    tpu.vector_store %arg8[%c0_17, %c0_18, %c0_19], %32 {strides = array<i32>} : memref<1x16x384xbf16, #tpu.memory_space<vmem>>, vector<1x16x384xbf16>,
    return
  }
  func.func @transform_0(%arg0: i32, %arg1: i32) -> (i32, i32, i32) {
    %c0_i32 = arith.constant 0 : i32
    %c0_i32_0 = arith.constant 0 : i32
    return %arg0, %c0_i32, %arg1 : i32, i32, i32
  }
  func.func @transform_1(%arg0: i32, %arg1: i32) -> (i32, i32) {
    %c0_i32 = arith.constant 0 : i32
    %c0_i32_0 = arith.constant 0 : i32
    %c0_i32_1 = arith.constant 0 : i32
    return %c0_i32, %c0_i32_0 : i32, i32
  }
  func.func @transform_2(%arg0: i32, %arg1: i32) -> (i32, i32) {
    %c0_i32 = arith.constant 0 : i32
    %c0_i32_0 = arith.constant 0 : i32
    %c0_i32_1 = arith.constant 0 : i32
    return %c0_i32, %c0_i32_0 : i32, i32
  }
  func.func @transform_3(%arg0: i32, %arg1: i32) -> (i32, i32) {
    %c0_i32 = arith.constant 0 : i32
    %c0_i32_0 = arith.constant 0 : i32
    %c0_i32_1 = arith.constant 0 : i32
    return %c0_i32, %c0_i32_0 : i32, i32
  }
  func.func @transform_4(%arg0: i32, %arg1: i32) -> (i32, i32) {
    %c0_i32 = arith.constant 0 : i32
    %c0_i32_0 = arith.constant 0 : i32
    %c0_i32_1 = arith.constant 0 : i32
    return %c0_i32, %c0_i32_0 : i32, i32
  }
  func.func @transform_5(%arg0: i32, %arg1: i32) -> (i32, i32, i32) {
    %c0_i32 = arith.constant 0 : i32
    %c0_i32_0 = arith.constant 0 : i32
    return %arg0, %c0_i32, %arg1 : i32, i32, i32
  }
  func.func @transform_6(%arg0: i32, %arg1: i32) -> (i32, i32, i32) {
    %c0_i32 = arith.constant 0 : i32
    %c0_i32_0 = arith.constant 0 : i32
    return %arg0, %c0_i32, %arg1 : i32, i32, i32
  }
}

module attributes {stable_mosaic.version = 11 : i64} {
  func.func @_deconv_kernel_raw(%arg0: i32, %arg1: i32, %arg2: memref<1x16x512xbf16, #tpu.memory_space<vmem>>, %arg3: memref<8x16xbf16, #tpu.memory_space<vmem>>, %arg4: memref<8x1xf32, #tpu.memory_space<vmem>>, %arg5: memref<1x8x512xf32, #tpu.memory_space<vmem>>) attributes {dimension_semantics = [#tpu.dimension_semantics<parallel>, #tpu.dimension_semantics<parallel>], iteration_bounds = array<i64: 2, 9>, scalar_prefetch = 0 : i64, scratch_operands = 0 : i64, tpu.core_type = #tpu.core_type<tc>, window_params = [{transform_indices = @transform_0, window_bounds = array<i64: 1, 16, 512>}, {pipeline_mode = #tpu.pipeline_mode<synchronous>, transform_indices = @transform_1, window_bounds = array<i64: 8, 16>}, {pipeline_mode = #tpu.pipeline_mode<synchronous>, transform_indices = @transform_2, window_bounds = array<i64: 8, 1>}, {transform_indices = @transform_3, window_bounds = array<i64: 1, 8, 512>}]} {
    %c0 = arith.constant 0 : index
    %c0_0 = arith.constant 0 : index
    %0 = vector.load %arg3[%c0, %c0_0] : memref<8x16xbf16, #tpu.memory_space<vmem>>, vector<8x16xbf16>
    %c0_1 = arith.constant 0 : index
    %c0_2 = arith.constant 0 : index
    %c0_3 = arith.constant 0 : index
    %1 = vector.load %arg2[%c0_1, %c0_2, %c0_3] : memref<1x16x512xbf16, #tpu.memory_space<vmem>>, vector<1x16x512xbf16>
    %2 = vector.shape_cast %1 : vector<1x16x512xbf16> to vector<16x512xbf16>
    %cst = arith.constant dense<0.000000e+00> : vector<8x512xf32>
    %3 = tpu.matmul %0, %2, %cst {dimension_numbers = #tpu.dot_dimension_numbers<[1], [0], [0], [1], [0, 0, 1, 1], [], []>} : vector<8x16xbf16>, vector<16x512xbf16>, vector<8x512xf32> -> vector<8x512xf32>
    %c0_4 = arith.constant 0 : index
    %c0_5 = arith.constant 0 : index
    %4 = vector.load %arg4[%c0_4, %c0_5] : memref<8x1xf32, #tpu.memory_space<vmem>>, vector<8x1xf32>
    %5 = vector.broadcast %4 : vector<8x1xf32> to vector<8x512xf32>
    %6 = arith.addf %3, %5 : vector<8x512xf32>
    %c0_6 = arith.constant 0 : index
    %c0_7 = arith.constant 0 : index
    %c0_8 = arith.constant 0 : index
    %7 = vector.load %arg5[%c0_6, %c0_7, %c0_8] : memref<1x8x512xf32, #tpu.memory_space<vmem>>, vector<1x8x512xf32>
    %8 = vector.shape_cast %7 : vector<1x8x512xf32> to vector<8x512xf32>
    %9 = vector.shape_cast %6 : vector<8x512xf32> to vector<1x8x512xf32>
    tpu.vector_store %arg5[%c0_6, %c0_7, %c0_8], %9 {strides = array<i32>} : memref<1x8x512xf32, #tpu.memory_space<vmem>>, vector<1x8x512xf32>,
    return
  }
  func.func @transform_0(%arg0: i32, %arg1: i32) -> (i32, i32, i32) {
    %c0_i32 = arith.constant 0 : i32
    %c0_i32_0 = arith.constant 0 : i32
    return %arg0, %c0_i32, %arg1 : i32, i32, i32
  }
  func.func @transform_1(%arg0: i32, %arg1: i32) -> (i32, i32) {
    %c0_i32 = arith.constant 0 : i32
    %c0_i32_0 = arith.constant 0 : i32
    %c0_i32_1 = arith.constant 0 : i32
    return %c0_i32, %c0_i32_0 : i32, i32
  }
  func.func @transform_2(%arg0: i32, %arg1: i32) -> (i32, i32) {
    %c0_i32 = arith.constant 0 : i32
    %c0_i32_0 = arith.constant 0 : i32
    %c0_i32_1 = arith.constant 0 : i32
    return %c0_i32, %c0_i32_0 : i32, i32
  }
  func.func @transform_3(%arg0: i32, %arg1: i32) -> (i32, i32, i32) {
    %c0_i32 = arith.constant 0 : i32
    %c0_i32_0 = arith.constant 0 : i32
    return %arg0, %c0_i32, %arg1 : i32, i32, i32
  }
}

</mosaic_0001>

<llo_original>
// kernel: tile.42
$region0: #{tile.42}
  #allocation2 [shape = 's32[1]{0}', space=sflag, size = 0x4, scoped, tag = 'scoped memory for tile.42']
  %s0 = inlined_call_operand.hbm [shape: f32[16], index: 0, kind: input, shape index: {}]
  %s1 = inlined_call_operand.vmem [shape: f32[4,16], index: 1, kind: output, shape index: {}]
  $region1: #{tile.42} parent=0
    #allocation0 [shape = 'u8[512]{0}', space=vmem, size = 0x400, scoped, tag = 'operand span for operand 0']
    #allocation1 [shape = 's32[1]{0}', space=sflag, size = 0x4, scoped, tag = 'scoped memory for tile.42']
    %2 = vsyncpa [#allocation1], 0
    // Predicated region
    $region2: #{tile.42} parent=1 // pred_check
      _
    $region3: #{tile.42} parent=1 // pred_check_branch
      %4 = sbr.rel (0) target = $region5
    $region4: #{tile.42} parent=1 // pred_region
      %6 = vsyncadd [#allocation1], 0
      %s8 = sshll.u32 %s0, 4
      %s9 = int_to_ptr.hbm [resolvable:$true] %s8
      %s10 = sshll.u32 [#allocation0], 4
      %s11 = int_to_ptr.vmem [resolvable:$true] %s10
      %13 = dma.hbm_to_vmem [thread:$0]  %s9, 16, %s11, [#allocation1]
    $region5: #{tile.42} parent=1 // pred_fallthru
      _
    // Predicated region
    $region6: #{tile.42} parent=1 // pred_check
      _
    $region7: #{tile.42} parent=1 // pred_check_branch
      %15 = sbr.rel (0) target = $region9
    $region8: #{tile.42} parent=1 // pred_region
      %17 = dma.done [#allocation1], 16
    $region9: #{tile.42} parent=1 // pred_fallthru
      _
    %v18 = vld [vmem:[#allocation0] ss:$0 sm:$0xff]
    %19 = vst [vmem:[%s1] sm:$0xf] %v18
    %20 = vsyncpa [#allocation1], 1

// kernel: tile.0
$region0: #{tile.0}
  %s0 = inlined_call_operand.vmem [shape: f32[4,16], index: 0, kind: input, shape index: {}]
  %s1 = inlined_call_operand.vmem [shape: f32[64,1], index: 1, kind: output, shape index: {}]
  $region1: #{tile.0} parent=0
    #allocation0 [shape = 'u8[4096]{0}', space=vmem, size = 0x1000, scoped, tag = 'scoped mem for input reshape']
    %s3 = ssub.s32 16, 1
    %v4 = vld [vmem:[%s0] sm:%s3]
    %5 = vst [vmem:[#allocation0] sm:%s3] %v4
    %v6 = vld [vmem:[#allocation0] sm:$0xf]
    %vm7 = vcmask 7168
    %8 = vst.msk [vmem:[%s1] ss:$16 sm:$0x3] %vm7, %v6
    %9 = vst.msk [vmem:[%s1] ss:$16 sm:$0xc] %vm7, %v6
    %v10 = vld [vmem:[#allocation0] sm:$0xf]
    %11 = vrot.lane.b32.xlu0 %v10, 127
    %v12 = vpop.permute.xlu0 %11
    %vm13 = vcmask 7168
    %s14 = scalar_lea.vmem %s1, 1
    %15 = vst.msk [vmem:[%s14] ss:$16 sm:$0x3] %vm13, %v12
    %s16 = scalar_lea.vmem %s1, 1
    %17 = vst.msk [vmem:[%s16] ss:$16 sm:$0xc] %vm13, %v12
    %v18 = vld [vmem:[#allocation0] sm:$0xf]
    %19 = vrot.lane.b32.xlu0 %v18, 126
    %v20 = vpop.permute.xlu0 %19
    %vm21 = vcmask 7168
    %s22 = scalar_lea.vmem %s1, 2
    %23 = vst.msk [vmem:[%s22] ss:$16 sm:$0x3] %vm21, %v20
    %s24 = scalar_lea.vmem %s1, 2
    %25 = vst.msk [vmem:[%s24] ss:$16 sm:$0xc] %vm21, %v20
    %v26 = vld [vmem:[#allocation0] sm:$0xf]
    %27 = vrot.lane.b32.xlu0 %v26, 125
    %v28 = vpop.permute.xlu0 %27
    %vm29 = vcmask 7168
    %s30 = scalar_lea.vmem %s1, 3
    %31 = vst.msk [vmem:[%s30] ss:$16 sm:$0x3] %vm29, %v28
    %s32 = scalar_lea.vmem %s1, 3
    %33 = vst.msk [vmem:[%s32] ss:$16 sm:$0xc] %vm29, %v28
    %v34 = vld [vmem:[#allocation0] sm:$0xf]
    %35 = vrot.lane.b32.xlu0 %v34, 124
    %v36 = vpop.permute.xlu0 %35
    %vm37 = vcmask 7168
    %s38 = scalar_lea.vmem %s1, 4
    %39 = vst.msk [vmem:[%s38] ss:$16 sm:$0x3] %vm37, %v36
    %s40 = scalar_lea.vmem %s1, 4
    %41 = vst.msk [vmem:[%s40] ss:$16 sm:$0xc] %vm37, %v36
    %v42 = vld [vmem:[#allocation0] sm:$0xf]
    %43 = vrot.lane.b32.xlu0 %v42, 123
    %v44 = vpop.permute.xlu0 %43
    %vm45 = vcmask 7168
    %s46 = scalar_lea.vmem %s1, 5
    %47 = vst.msk [vmem:[%s46] ss:$16 sm:$0x3] %vm45, %v44
    %s48 = scalar_lea.vmem %s1, 5
    %49 = vst.msk [vmem:[%s48] ss:$16 sm:$0xc] %vm45, %v44
    %v50 = vld [vmem:[#allocation0] sm:$0xf]
    %51 = vrot.lane.b32.xlu0 %v50, 122
    %v52 = vpop.permute.xlu0 %51
    %vm53 = vcmask 7168
    %s54 = scalar_lea.vmem %s1, 6
    %55 = vst.msk [vmem:[%s54] ss:$16 sm:$0x3] %vm53, %v52
    %s56 = scalar_lea.vmem %s1, 6
    %57 = vst.msk [vmem:[%s56] ss:$16 sm:$0xc] %vm53, %v52
    %v58 = vld [vmem:[#allocation0] sm:$0xf]
    %59 = vrot.lane.b32.xlu0 %v58, 121
    %v60 = vpop.permute.xlu0 %59
    %vm61 = vcmask 7168
    %s62 = scalar_lea.vmem %s1, 7
    %63 = vst.msk [vmem:[%s62] ss:$16 sm:$0x3] %vm61, %v60
    %s64 = scalar_lea.vmem %s1, 7
    %65 = vst.msk [vmem:[%s64] ss:$16 sm:$0xc] %vm61, %v60
    %v66 = vld [vmem:[#allocation0] sm:$0xf]
    %67 = vrot.lane.b32.xlu0 %v66, 120
    %v68 = vpop.permute.xlu0 %67
    %vm69 = vcmask 7168
    %s70 = scalar_lea.vmem %s1, 8
    %71 = vst.msk [vmem:[%s70] ss:$16 sm:$0x3] %vm69, %v68
    %s72 = scalar_lea.vmem %s1, 8
    %73 = vst.msk [vmem:[%s72] ss:$16 sm:$0xc] %vm69, %v68
    %v74 = vld [vmem:[#allocation0] sm:$0xf]
    %75 = vrot.lane.b32.xlu0 %v74, 119
    %v76 = vpop.permute.xlu0 %75
    %vm77 = vcmask 7168
    %s78 = scalar_lea.vmem %s1, 9
    %79 = vst.msk [vmem:[%s78] ss:$16 sm:$0x3] %vm77, %v76
    %s80 = scalar_lea.vmem %s1, 9
    %81 = vst.msk [vmem:[%s80] ss:$16 sm:$0xc] %vm77, %v76
    %v82 = vld [vmem:[#allocation0] sm:$0xf]
    %83 = vrot.lane.b32.xlu0 %v82, 118
    %v84 = vpop.permute.xlu0 %83
    %vm85 = vcmask 7168
    %s86 = scalar_lea.vmem %s1, 10
    %87 = vst.msk [vmem:[%s86] ss:$16 sm:$0x3] %vm85, %v84
    %s88 = scalar_lea.vmem %s1, 10
    %89 = vst.msk [vmem:[%s88] ss:$16 sm:$0xc] %vm85, %v84
    %v90 = vld [vmem:[#allocation0] sm:$0xf]
    %91 = vrot.lane.b32.xlu0 %v90, 117
    %v92 = vpop.permute.xlu0 %91
    %vm93 = vcmask 7168
    %s94 = scalar_lea.vmem %s1, 11
    %95 = vst.msk [vmem:[%s94] ss:$16 sm:$0x3] %vm93, %v92
    %s96 = scalar_lea.vmem %s1, 11
    %97 = vst.msk [vmem:[%s96] ss:$16 sm:$0xc] %vm93, %v92
    %v98 = vld [vmem:[#allocation0] sm:$0xf]
    %99 = vrot.lane.b32.xlu0 %v98, 116
    %v100 = vpop.permute.xlu0 %99
    %vm101 = vcmask 7168
    %s102 = scalar_lea.vmem %s1, 12
    %103 = vst.msk [vmem:[%s102] ss:$16 sm:$0x3] %vm101, %v100
    %s104 = scalar_lea.vmem %s1, 12
    %105 = vst.msk [vmem:[%s104] ss:$16 sm:$0xc] %vm101, %v100
    %v106 = vld [vmem:[#allocation0] sm:$0xf]
    %107 = vrot.lane.b32.xlu0 %v106, 115
    %v108 = vpop.permute.xlu0 %107
    %vm109 = vcmask 7168
    %s110 = scalar_lea.vmem %s1, 13
    %111 = vst.msk [vmem:[%s110] ss:$16 sm:$0x3] %vm109, %v108
    %s112 = scalar_lea.vmem %s1, 13
    %113 = vst.msk [vmem:[%s112] ss:$16 sm:$0xc] %vm109, %v108
    %v114 = vld [vmem:[#allocation0] sm:$0xf]
    %115 = vrot.lane.b32.xlu0 %v114, 114
    %v116 = vpop.permute.xlu0 %115
    %vm117 = vcmask 7168
    %s118 = scalar_lea.vmem %s1, 14
    %119 = vst.msk [vmem:[%s118] ss:$16 sm:$0x3] %vm117, %v116
    %s120 = scalar_lea.vmem %s1, 14
    %121 = vst.msk [vmem:[%s120] ss:$16 sm:$0xc] %vm117, %v116
    %v122 = vld [vmem:[#allocation0] sm:$0xf]
    %123 = vrot.lane.b32.xlu0 %v122, 113
    %v124 = vpop.permute.xlu0 %123
    %vm125 = vcmask 7168
    %s126 = scalar_lea.vmem %s1, 15
    %127 = vst.msk [vmem:[%s126] ss:$16 sm:$0x3] %vm125, %v124
    %s128 = scalar_lea.vmem %s1, 15
    %129 = vst.msk [vmem:[%s128] ss:$16 sm:$0xc] %vm125, %v124

// kernel: vit_decoder_stage4_forward.5
$region0: #{vit_decoder_stage4_forward.5}
  #allocation0 [shape = 'u32[]', space=smem, size = 0x4, offset = 0x4, fixed_abs, tag = 'smem constant byte address 0x4 - core index']
  #allocation1 [shape = 'u32[72,128]{1,0:T(1,128)}', space=vmem, size = 0x9000, scoped, tag = 'internal scratch']
  %s0 = inlined_call_operand.vmem [shape: bf16[2,48,128], index: 0, kind: input, shape index: {}]
  %s1 = inlined_call_operand.hbm [shape: bf16[64,48], index: 1, kind: input, shape index: {}]
  %s2 = inlined_call_operand.hbm [shape: f32[64,1], index: 2, kind: input, shape index: {}]
  %s3 = inlined_call_operand.vmem [shape: bf16[2,32,128], index: 3, kind: output, shape index: {}]
  %s4 = sld [smem:[#allocation0]]
  $region53: #{vit_decoder_stage4_forward.5} parent=0
    _
  %s6 = ssub.s32 1, %s4
  %s7 = scalar_select 0, %s6, %s4
  $region1: #{vit_decoder_stage4_forward.5} parent=0
    #allocation2 [shape = 'u8[16384]{0}', space=vmem, size = 0x4000, scoped, tag = 'input window, operand 1, single buffered']
    #allocation3 [shape = 's32[2]{0}', space=sflag, size = 0x8, scoped, tag = 'scoped memory for vit_decoder_stage4_forward.5']
    #allocation4 [shape = 'u8[32768]{0}', space=vmem, size = 0x8000, scoped, tag = 'input window, operand 2, single buffered']
    #allocation5 [shape = 's32[1]{0}', space=sflag, size = 0x4, scoped, tag = 'scoped memory for vit_decoder_stage4_forward.5']
    %8 = vsyncpa [#allocation3], 0
    %9 = vsyncpa [#allocation5], 0
    loop: start=0, step=1, limit=4
    $region2: #{vit_decoder_stage4_forward.5} parent=1 // loop_pre_header
      _
    $region3: #{vit_decoder_stage4_forward.5} parent=1 // loop_header
      %s11 = sphi 0, %s15
      %p12 = scmp.ge.s32.totalorder %s11, 4
      %s18 = sphi 0, %s30
      %s19 = sphi 0, %s26
      %s20 = sphi 0, %s18
      %s21 = sphi 0, %s19
      %s22 = sphi 0, %s20
      %s23 = sphi 0, %s21
      %s35 = sphi 0, %s37
      %s38 = sphi 0, %s35
      %s39 = sphi 0, %s38
      %s55 = sphi 0, %s39
      %s59 = sphi 0, %s59
      %s61 = sphi 0, %s59
      %s62 = sphi 0, %s61
      %s76 = sphi 0, %s62
      %s80 = sphi 0, %s80
      %s82 = sphi 0, %s80
      %s83 = sphi 0, %s82
      %s97 = sphi 0, %s83
      %s105 = sphi 0, %s107
      %s108 = sphi 0, %s105
      %s109 = sphi 0, %s108
      %s125 = sphi 0, %s109
    $region4: #{vit_decoder_stage4_forward.5} parent=1 // loop_header_branch
      %14 = sbr.rel (%p12) target = $region8
    $region5: #{vit_decoder_stage4_forward.5} parent=1 // loop_body
      %s16 = ssub.s32 %s11, 1
      %s17 = ssub.s32 %s11, 2
      %s24 = sadd.s32 1, %s19
      %p25 = scmp.ge.s32.totalorder %s24, 1
      %s26 = scalar_select %p25, 0, %s24
      %s27 = sadd.s32 1, %s18
      %s28 = scalar_select %p25, %s27, %s18
      %p29 = scmp.ge.s32.totalorder %s28, 2
      %s30 = scalar_select %p29, 0, %s28
      %s31 = ssub.s32 %s18, %s30
      %s32 = ssub.s32 %s19, %s26
      %s33 = sor.u32 %s31, %s32
      %p34 = scmp.eq.s32.totalorder %s33, 0
      %s36 = sadd.s32 %s35, 1
      %s37 = scalar_select %p34, %s35, %s36
      %p40 = pneg %p34
      %p41 = scmp.eq.s32.totalorder %s11, 1
      %p42 = por %p40, %p41
      %p43 = scmp.ne.s32.totalorder %s35, %s38
      %p44 = scmp.eq.s32.totalorder %s11, 0
      %p45 = por %p43, %p44
      %p46 = scmp.ne.s32.totalorder %s35, %s38
      %p47 = scmp.eq.s32.totalorder %s16, 1
      %p48 = por %p46, %p47
      %p49 = scmp.ne.s32.totalorder %s38, %s39
      %p50 = scmp.eq.s32.totalorder %s16, 0
      %p51 = por %p49, %p50
      %p52 = scmp.ne.s32.totalorder %s38, %s39
      %p53 = scmp.eq.s32.totalorder %s17, 1
      %p54 = por %p52, %p53
      %p56 = scmp.ne.s32.totalorder %s39, %s55
      %p57 = scmp.eq.s32.totalorder %s17, 0
      %p58 = por %p56, %p57
      %s60 = sadd.s32 %s59, 1
      %p63 = scmp.eq.s32.totalorder %s11, 1
      %p64 = scmp.ne.s32.totalorder %s59, %s61
      %p65 = scmp.eq.s32.totalorder %s11, 0
      %p66 = por %p64, %p65
      %p67 = scmp.ne.s32.totalorder %s59, %s61
      %p68 = scmp.eq.s32.totalorder %s16, 1
      %p69 = por %p67, %p68
      %p70 = scmp.ne.s32.totalorder %s61, %s62
      %p71 = scmp.eq.s32.totalorder %s16, 0
      %p72 = por %p70, %p71
      %p73 = scmp.ne.s32.totalorder %s61, %s62
      %p74 = scmp.eq.s32.totalorder %s17, 1
      %p75 = por %p73, %p74
      %p77 = scmp.ne.s32.totalorder %s62, %s76
      %p78 = scmp.eq.s32.totalorder %s17, 0
      %p79 = por %p77, %p78
      %s81 = sadd.s32 %s80, 1
      %p84 = scmp.eq.s32.totalorder %s11, 1
      %p85 = scmp.ne.s32.totalorder %s80, %s82
      %p86 = scmp.eq.s32.totalorder %s11, 0
      %p87 = por %p85, %p86
      %p88 = scmp.ne.s32.totalorder %s80, %s82
      %p89 = scmp.eq.s32.totalorder %s16, 1
      %p90 = por %p88, %p89
      %p91 = scmp.ne.s32.totalorder %s82, %s83
      %p92 = scmp.eq.s32.totalorder %s16, 0
      %p93 = por %p91, %p92
      %p94 = scmp.ne.s32.totalorder %s82, %s83
      %p95 = scmp.eq.s32.totalorder %s17, 1
      %p96 = por %p94, %p95
      %p98 = scmp.ne.s32.totalorder %s83, %s97
      %p99 = scmp.eq.s32.totalorder %s17, 0
      %p100 = por %p98, %p99
      %s101 = ssub.s32 %s18, %s30
      %s102 = ssub.s32 %s19, %s26
      %s103 = sor.u32 %s101, %s102
      %p104 = scmp.eq.s32.totalorder %s103, 0
      %s106 = sadd.s32 %s105, 1
      %s107 = scalar_select %p104, %s105, %s106
      %p110 = pneg %p104
      %p111 = scmp.eq.s32.totalorder %s11, 1
      %p112 = por %p110, %p111
      %p113 = scmp.ne.s32.totalorder %s105, %s108
      %p114 = scmp.eq.s32.totalorder %s11, 0
      %p115 = por %p113, %p114
      %p116 = scmp.ne.s32.totalorder %s105, %s108
      %p117 = scmp.eq.s32.totalorder %s16, 1
      %p118 = por %p116, %p117
      %p119 = scmp.ne.s32.totalorder %s108, %s109
      %p120 = scmp.eq.s32.totalorder %s16, 0
      %p121 = por %p119, %p120
      %p122 = scmp.ne.s32.totalorder %s108, %s109
      %p123 = scmp.eq.s32.totalorder %s17, 1
      %p124 = por %p122, %p123
      %p126 = scmp.ne.s32.totalorder %s109, %s125
      %p127 = scmp.eq.s32.totalorder %s17, 0
      %p128 = por %p126, %p127
      %p129 = scmp.le.s32.totalorder 1, %s11
      %p130 = scmp.lt.s32.totalorder %s11, 3
      %p131 = pnand %p129, %p130
      %p132 = pneg %p131
      // Predicated region
      $region9: #{vit_decoder_stage4_forward.5} parent=5 // pred_check
        _
      $region10: #{vit_decoder_stage4_forward.5} parent=5 // pred_check_branch
        %134 = sbr.rel (%p131) target = $region12
      $region11: #{vit_decoder_stage4_forward.5} parent=5 // pred_region
        %s135 = ssub.s32 %s11, 1
        // Predicated region
        $region13: #{vit_decoder_stage4_forward.5} parent=11 // pred_check
          %p136 = pneg %p72
        $region14: #{vit_decoder_stage4_forward.5} parent=11 // pred_check_branch
          %138 = sbr.rel (%p136) target = $region16
        $region15: #{vit_decoder_stage4_forward.5} parent=11 // pred_region
          %140 = vsyncadd [#allocation3], 0
          %s141 = sshll.u32 %s1, 4
          %s142 = int_to_ptr.hbm [resolvable:$true] %s141
          %s143 = sshll.u32 [#allocation2], 4
          %s144 = int_to_ptr.vmem [resolvable:$true] %s143
          %149 = dma.hbm_to_vmem [thread:$0]  %s142, 512, %s144, [#allocation3], 64, 64, 4
        $region16: #{vit_decoder_stage4_forward.5} parent=11 // pred_fallthru
          _
        // Predicated region
        $region17: #{vit_decoder_stage4_forward.5} parent=11 // pred_check
          %p150 = pneg %p93
        $region18: #{vit_decoder_stage4_forward.5} parent=11 // pred_check_branch
          %152 = sbr.rel (%p150) target = $region20
        $region19: #{vit_decoder_stage4_forward.5} parent=11 // pred_region
          %154 = vsyncadd [#allocation5], 0
          %s155 = sshll.u32 %s2, 4
          %s156 = int_to_ptr.hbm [resolvable:$true] %s155
          %s157 = sshll.u32 [#allocation4], 4
          %s158 = int_to_ptr.vmem [resolvable:$true] %s157
          %163 = dma.hbm_to_vmem [thread:$0]  %s156, 1024, %s158, [#allocation5], 128, 128, 8
        $region20: #{vit_decoder_stage4_forward.5} parent=11 // pred_fallthru
          _
      $region12: #{vit_decoder_stage4_forward.5} parent=5 // pred_fallthru
        _
      %p164 = scmp.lt.s32.totalorder %s11, 2
      // Predicated region
      $region21: #{vit_decoder_stage4_forward.5} parent=5 // pred_check
        %p165 = pneg %p164
      $region22: #{vit_decoder_stage4_forward.5} parent=5 // pred_check_branch
        %167 = sbr.rel (%p165) target = $region24
      $region23: #{vit_decoder_stage4_forward.5} parent=5 // pred_region
        // Predicated region
        $region25: #{vit_decoder_stage4_forward.5} parent=23 // pred_check
          %p168 = pneg %p45
        $region26: #{vit_decoder_stage4_forward.5} parent=23 // pred_check_branch
          %170 = sbr.rel (%p168) target = $region28
        $region27: #{vit_decoder_stage4_forward.5} parent=23 // pred_region
          %p171 = scmp.lt.s32.totalorder %s18, 1
          %s172 = scalar_select %p171, %s18, 1
          %p173 = scmp.lt.s32.totalorder %s19, 0
          %s174 = scalar_select %p173, %s19, 0
          %s175 = smul.addr %s172, 6
          %s176 = sadd.s32 %s174, %s175
          %s177 = smul.addr %s176, 4
          %s178 = scalar_lea.vmem %s0, %s177
        $region28: #{vit_decoder_stage4_forward.5} parent=23 // pred_fallthru
          _
      $region24: #{vit_decoder_stage4_forward.5} parent=5 // pred_fallthru
        _
      %p179 = scmp.le.s32.totalorder 1, %s11
      %p180 = scmp.lt.s32.totalorder %s11, 3
      %p181 = pnand %p179, %p180
      %p182 = pneg %p181
      // Predicated region
      $region29: #{vit_decoder_stage4_forward.5} parent=5 // pred_check
        _
      $region30: #{vit_decoder_stage4_forward.5} parent=5 // pred_check_branch
        %184 = sbr.rel (%p181) target = $region32
      $region31: #{vit_decoder_stage4_forward.5} parent=5 // pred_region
        %s185 = ssub.s32 %s11, 1
        // Predicated region
        $region33: #{vit_decoder_stage4_forward.5} parent=31 // pred_check
          %p186 = pneg %p72
        $region34: #{vit_decoder_stage4_forward.5} parent=31 // pred_check_branch
          %188 = sbr.rel (%p186) target = $region36
        $region35: #{vit_decoder_stage4_forward.5} parent=31 // pred_region
          %190 = dma.done [#allocation3], 512
        $region36: #{vit_decoder_stage4_forward.5} parent=31 // pred_fallthru
          _
        // Predicated region
        $region37: #{vit_decoder_stage4_forward.5} parent=31 // pred_check
          %p191 = pneg %p93
        $region38: #{vit_decoder_stage4_forward.5} parent=31 // pred_check_branch
          %193 = sbr.rel (%p191) target = $region40
        $region39: #{vit_decoder_stage4_forward.5} parent=31 // pred_region
          %195 = dma.done [#allocation5], 1024
        $region40: #{vit_decoder_stage4_forward.5} parent=31 // pred_fallthru
          _
        %p196 = scmp.lt.s32.totalorder %s20, 1
        %s197 = scalar_select %p196, %s20, 1
        %p198 = scmp.lt.s32.totalorder %s21, 0
        %s199 = scalar_select %p198, %s21, 0
        %s200 = smul.addr %s197, 6
        %s201 = sadd.s32 %s199, %s200
        %s202 = smul.addr %s201, 4
        %s203 = scalar_lea.vmem %s0, %s202
        %p204 = pneg %p51
        %p205 = pneg %p48
        %p206 = pneg %p72
        %p207 = pneg %p69
        %p208 = pneg %p93
        %p209 = pneg %p90
        %p210 = pneg %p121
        %p211 = pneg %p118
        %p212 = scmp.lt.s32.totalorder %s20, 1
        %s213 = scalar_select %p212, %s20, 1
        %p214 = scmp.lt.s32.totalorder %s21, 0
        %s215 = scalar_select %p214, %s21, 0
        %s216 = smul.addr %s213, 4
        %s217 = sadd.s32 %s215, %s216
        %s218 = smul.addr %s217, 4
        %s219 = scalar_lea.vmem %s3, %s218
        %p220 = scmp.lt.s32.totalorder %s20, 1
        %s221 = scalar_select %p220, %s20, 1
        %p222 = scmp.lt.s32.totalorder %s21, 0
        %s223 = scalar_select %p222, %s21, 0
        %s224 = smul.addr %s221, 6
        %s225 = sadd.s32 %s223, %s224
        %s226 = smul.addr %s225, 4
        %s227 = scalar_lea.vmem %s0, %s226
        %p228 = scmp.lt.s32.totalorder %s20, 1
        %s229 = scalar_select %p228, %s20, 1
        %p230 = scmp.lt.s32.totalorder %s21, 0
        %s231 = scalar_select %p230, %s21, 0
        %s232 = smul.addr %s229, 4
        %s233 = sadd.s32 %s231, %s232
        %s234 = smul.addr %s233, 4
        %s235 = scalar_lea.vmem %s3, %s234
        %v237 = vld [vmem:[#allocation2] sm:$0xf]
        %v238 = vld [vmem:[#allocation2 + $0x4] sm:$0xf]
        %v239 = vld [vmem:[#allocation2 + $0x8] sm:$0xf]
        %v240 = vld [vmem:[#allocation2 + $0xc] sm:$0xf]
        %v241 = vld [vmem:[#allocation2 + $0x10] sm:$0xf]
        %v242 = vld [vmem:[#allocation2 + $0x14] sm:$0xf]
        %v243 = vld [vmem:[#allocation2 + $0x18] sm:$0xf]
        %v244 = vld [vmem:[#allocation2 + $0x1c] sm:$0xf]
        %v245 = vld [vmem:[%s227] sm:$0xf]
        %v246 = vld [vmem:[%s227 + $0x4] sm:$0xf]
        %v247 = vld [vmem:[%s227 + $0x8] sm:$0xf]
        %v248 = vld [vmem:[%s227 + $0xc] sm:$0xf]
        %v249 = vld [vmem:[%s227 + $0x10] sm:$0xf]
        %v250 = vld [vmem:[%s227 + $0x14] sm:$0xf]
        %v251 = vld [vmem:[#allocation4] sm:$0xff]
        %v252 = vld [vmem:[#allocation4 + $0x8] sm:$0xff]
        %v253 = vld [vmem:[#allocation4 + $0x10] sm:$0xff]
        %v254 = vld [vmem:[#allocation4 + $0x18] sm:$0xff]
        %v255 = vld [vmem:[#allocation4 + $0x20] sm:$0xff]
        %v256 = vld [vmem:[#allocation4 + $0x28] sm:$0xff]
        %v257 = vld [vmem:[#allocation4 + $0x30] sm:$0xff]
        %v258 = vld [vmem:[#allocation4 + $0x38] sm:$0xff]
        %260 = vset.pattern.permute.xlu0 0
        %261 = vperm.xlu0 %260, %v251
        %v262 = vpop.permute.xlu0 %261
        %265 = vset.pattern.permute.xlu0 0
        %266 = vperm.xlu0 %265, %v252
        %v267 = vpop.permute.xlu0 %266
        %270 = vset.pattern.permute.xlu0 0
        %271 = vperm.xlu0 %270, %v253
        %v272 = vpop.permute.xlu0 %271
        %275 = vset.pattern.permute.xlu0 0
        %276 = vperm.xlu0 %275, %v254
        %v277 = vpop.permute.xlu0 %276
        %280 = vset.pattern.permute.xlu0 0
        %281 = vperm.xlu0 %280, %v255
        %v282 = vpop.permute.xlu0 %281
        %285 = vset.pattern.permute.xlu0 0
        %286 = vperm.xlu0 %285, %v256
        %v287 = vpop.permute.xlu0 %286
        %290 = vset.pattern.permute.xlu0 0
        %291 = vperm.xlu0 %290, %v257
        %v292 = vpop.permute.xlu0 %291
        %295 = vset.pattern.permute.xlu0 0
        %296 = vperm.xlu0 %295, %v258
        %v297 = vpop.permute.xlu0 %296
        %v307 = vunpack.c.l.b16 %v237
        %v308 = vunpack.c.l.b16 %v238
        %v309 = vunpack.c.l.b16 %v239
        %v310 = vunpack.c.l.b16 %v240
        %v311 = vunpack.c.l.b16 %v241
        %v312 = vunpack.c.l.b16 %v242
        %v313 = vunpack.c.l.b16 %v243
        %v314 = vunpack.c.l.b16 %v244
        %v315 = vpack.c.b16 %v308, %v307
        %v316 = vpack.c.b16 %v310, %v309
        %v317 = vpack.c.b16 %v312, %v311
        %v318 = vpack.c.b16 %v314, %v313
        %v325 = vunpack.c.l.b16 %v245
        %v326 = vunpack.c.l.b16 %v246
        %v327 = vunpack.c.l.b16 %v247
        %v328 = vunpack.c.l.b16 %v248
        %v329 = vunpack.c.l.b16 %v249
        %v330 = vunpack.c.l.b16 %v250
        %v331 = vpack.c.b16 %v326, %v325
        %v332 = vpack.c.b16 %v328, %v327
        %v333 = vpack.c.b16 %v330, %v329
        %vm337 = vcmask 392192
        %v339 = vsel %vm337, %v315, 0
        %v342 = vsel %vm337, %v316, 0
        %v345 = vsel %vm337, %v317, 0
        %v348 = vsel %vm337, %v318, 0
        %350 = vmatpush.bf16.msra.mxu0 0
        %351 = vmatpush.bf16.msra.mxu0 0
        %352 = vmatpush.bf16.msra.mxu0 0
        %353 = vmatpush.bf16.msra.mxu0 0
        %354 = vmatpush.bf16.msra.mxu0 0
        %355 = vmatpush.bf16.msra.mxu0 %v333
        %356 = vmatpush.bf16.msra.mxu0 %v332
        %357 = vmatpush.bf16.msra.mxu0 %v331
        %358 = vmatmul.bf16.gmra.mxu0 %v339
        %v359 = vpop.f32.mrf.mxu0
        %v360 = vadd.f32 %v262, %v359
        %v361 = vpop.f32.mrf.mxu0
        %v362 = vadd.f32 %v267, %v361
        %363 = vmatmul.bf16.gmra.mxu0 %v342
        %v364 = vpop.f32.mrf.mxu0
        %v365 = vadd.f32 %v272, %v364
        %v366 = vpop.f32.mrf.mxu0
        %v367 = vadd.f32 %v277, %v366
        %368 = vmatmul.bf16.gmra.mxu0 %v345
        %v369 = vpop.f32.mrf.mxu0
        %v370 = vadd.f32 %v282, %v369
        %v371 = vpop.f32.mrf.mxu0
        %v372 = vadd.f32 %v287, %v371
        %373 = vmatmul.bf16.gmra.mxu0 %v348
        %v374 = vpop.f32.mrf.mxu0
        %v375 = vadd.f32 %v292, %v374
        %v376 = vpop.f32.mrf.mxu0
        %v377 = vadd.f32 %v297, %v376
        %378 = vdwg.mxu0
        %v379 = vxor.u32 %v370, 2147483648
        %v380 = vxor.u32 %v372, 2147483648
        %v381 = vxor.u32 %v375, 2147483648
        %v382 = vxor.u32 %v377, 2147483648
        %v383 = vmul.f32 %v379, 1.442695
        %v384 = vpow.pop %v383
        %v385 = vmul.f32 %v380, 1.442695
        %v386 = vpow.pop %v385
        %v387 = vmul.f32 %v381, 1.442695
        %v388 = vpow.pop %v387
        %v389 = vmul.f32 %v382, 1.442695
        %v390 = vpow.pop %v389
        %v391 = vadd.f32 %v384, 1.0
        %v392 = vadd.f32 %v386, 1.0
        %v393 = vadd.f32 %v388, 1.0
        %v394 = vadd.f32 %v390, 1.0
        %v395 = vrcp.pop %v391
        %v396 = vmul.f32 %v391, %v395
        %v397 = vsub.f32 1.0, %v396
        %v398 = vmul.f32 %v395, %v397
        %v399 = vadd.f32 %v395, %v398
        %vm400 = vweird.f32 %v391
        %vm401 = vweird.f32 %v395
        %vm402 = vmor %vm400, %vm401
        %v403 = vsel %vm402, %v395, %v399
        %v404 = vand.u32 2147483647, %v391
        %vm405 = vcmp.eq.f32.partialorder %v404, 8.507059e+37
        %v406 = vand.u32 %v391, 2147483648
        %v407 = vor.u32 1.1754944e-38, %v406
        %v408 = vsel %vm405, %v407, %v403
        %v409 = vmul.f32 1.0, %v408
        %v410 = vrcp.pop %v392
        %v411 = vmul.f32 %v392, %v410
        %v412 = vsub.f32 1.0, %v411
        %v413 = vmul.f32 %v410, %v412
        %v414 = vadd.f32 %v410, %v413
        %vm415 = vweird.f32 %v392
        %vm416 = vweird.f32 %v410
        %vm417 = vmor %vm415, %vm416
        %v418 = vsel %vm417, %v410, %v414
        %v419 = vand.u32 2147483647, %v392
        %vm420 = vcmp.eq.f32.partialorder %v419, 8.507059e+37
        %v421 = vand.u32 %v392, 2147483648
        %v422 = vor.u32 1.1754944e-38, %v421
        %v423 = vsel %vm420, %v422, %v418
        %v424 = vmul.f32 1.0, %v423
        %v425 = vrcp.pop %v393
        %v426 = vmul.f32 %v393, %v425
        %v427 = vsub.f32 1.0, %v426
        %v428 = vmul.f32 %v425, %v427
        %v429 = vadd.f32 %v425, %v428
        %vm430 = vweird.f32 %v393
        %vm431 = vweird.f32 %v425
        %vm432 = vmor %vm430, %vm431
        %v433 = vsel %vm432, %v425, %v429
        %v434 = vand.u32 2147483647, %v393
        %vm435 = vcmp.eq.f32.partialorder %v434, 8.507059e+37
        %v436 = vand.u32 %v393, 2147483648
        %v437 = vor.u32 1.1754944e-38, %v436
        %v438 = vsel %vm435, %v437, %v433
        %v439 = vmul.f32 1.0, %v438
        %v440 = vrcp.pop %v394
        %v441 = vmul.f32 %v394, %v440
        %v442 = vsub.f32 1.0, %v441
        %v443 = vmul.f32 %v440, %v442
        %v444 = vadd.f32 %v440, %v443
        %vm445 = vweird.f32 %v394
        %vm446 = vweird.f32 %v440
        %vm447 = vmor %vm445, %vm446
        %v448 = vsel %vm447, %v440, %v444
        %v449 = vand.u32 2147483647, %v394
        %vm450 = vcmp.eq.f32.partialorder %v449, 8.507059e+37
        %v451 = vand.u32 %v394, 2147483648
        %v452 = vor.u32 1.1754944e-38, %v451
        %v453 = vsel %vm450, %v452, %v448
        %v454 = vmul.f32 1.0, %v453
        %v455 = vmul.f32 %v360, %v409
        %v456 = vmul.f32 %v362, %v424
        %v457 = vmul.f32 %v365, %v439
        %v458 = vmul.f32 %v367, %v454
        %v459 = vmul.f32 %v455, 0.5
        %v460 = vmul.f32 %v456, 0.5
        %v461 = vmul.f32 %v457, 0.5
        %v462 = vmul.f32 %v458, 0.5
        %v463 = vmul.f32 %v455, 0.044715
        %v464 = vmul.f32 %v456, 0.044715
        %v465 = vmul.f32 %v457, 0.044715
        %v466 = vmul.f32 %v458, 0.044715
        %v467 = vmul.f32 %v463, %v455
        %v468 = vmul.f32 %v464, %v456
        %v469 = vmul.f32 %v465, %v457
        %v470 = vmul.f32 %v466, %v458
        %v471 = vmul.f32 %v467, %v455
        %v472 = vmul.f32 %v468, %v456
        %v473 = vmul.f32 %v469, %v457
        %v474 = vmul.f32 %v470, %v458
        %v475 = vadd.f32 %v455, %v471
        %v476 = vadd.f32 %v456, %v472
        %v477 = vadd.f32 %v457, %v473
        %v478 = vadd.f32 %v458, %v474
        %v479 = vmul.f32 %v475, 0.7978846
        %v480 = vmul.f32 %v476, 0.7978846
        %v481 = vmul.f32 %v477, 0.7978846
        %v482 = vmul.f32 %v478, 0.7978846
        %v483 = vtanh.pop %v479
        %v484 = vtanh.pop %v480
        %v485 = vtanh.pop %v481
        %v486 = vtanh.pop %v482
        %v487 = vadd.f32 %v483, 1.0
        %v488 = vadd.f32 %v484, 1.0
        %v489 = vadd.f32 %v485, 1.0
        %v490 = vadd.f32 %v486, 1.0
        %v491 = vmul.f32 %v459, %v487
        %v492 = vmul.f32 %v460, %v488
        %v493 = vmul.f32 %v461, %v489
        %v494 = vmul.f32 %v462, %v490
        %v495 = vpack.c.bf16 %v491, %v491
        %v496 = vpack.c.bf16 %v492, %v492
        %v497 = vpack.c.bf16 %v493, %v493
        %v498 = vpack.c.bf16 %v494, %v494
        %499 = vst [vmem:[%s235] sm:$0xf] %v495
        %500 = vst [vmem:[%s235 + $0x4] sm:$0xf] %v496
        %501 = vst [vmem:[%s235 + $0x8] sm:$0xf] %v497
        %502 = vst [vmem:[%s235 + $0xc] sm:$0xf] %v498
        %p503 = scmp.lt.s32.totalorder %s20, 1
        %s504 = scalar_select %p503, %s20, 1
        %p505 = scmp.lt.s32.totalorder %s21, 0
        %s506 = scalar_select %p505, %s21, 0
        %s507 = smul.addr %s504, 4
        %s508 = sadd.s32 %s506, %s507
        %s509 = smul.addr %s508, 4
        %s510 = scalar_lea.vmem %s3, %s509
        // Predicated region
        $region41: #{vit_decoder_stage4_forward.5} parent=31 // pred_check
          %p511 = pneg %p118
        $region42: #{vit_decoder_stage4_forward.5} parent=31 // pred_check_branch
          %513 = sbr.rel (%p511) target = $region44
        $region43: #{vit_decoder_stage4_forward.5} parent=31 // pred_region
          _
        $region44: #{vit_decoder_stage4_forward.5} parent=31 // pred_fallthru
          _
      $region32: #{vit_decoder_stage4_forward.5} parent=5 // pred_fallthru
        _
      %p514 = scmp.le.s32.totalorder 2, %s11
      // Predicated region
      $region45: #{vit_decoder_stage4_forward.5} parent=5 // pred_check
        %p515 = pneg %p514
      $region46: #{vit_decoder_stage4_forward.5} parent=5 // pred_check_branch
        %517 = sbr.rel (%p515) target = $region48
      $region47: #{vit_decoder_stage4_forward.5} parent=5 // pred_region
        %s518 = ssub.s32 %s11, 2
        // Predicated region
        $region49: #{vit_decoder_stage4_forward.5} parent=47 // pred_check
          %p519 = pneg %p124
        $region50: #{vit_decoder_stage4_forward.5} parent=47 // pred_check_branch
          %521 = sbr.rel (%p519) target = $region52
        $region51: #{vit_decoder_stage4_forward.5} parent=47 // pred_region
          %p522 = scmp.lt.s32.totalorder %s22, 1
          %s523 = scalar_select %p522, %s22, 1
          %p524 = scmp.lt.s32.totalorder %s23, 0
          %s525 = scalar_select %p524, %s23, 0
          %s526 = smul.addr %s523, 4
          %s527 = sadd.s32 %s525, %s526
          %s528 = smul.addr %s527, 4
          %s529 = scalar_lea.vmem %s3, %s528
        $region52: #{vit_decoder_stage4_forward.5} parent=47 // pred_fallthru
          _
      $region48: #{vit_decoder_stage4_forward.5} parent=5 // pred_fallthru
        _
    $region6: #{vit_decoder_stage4_forward.5} parent=1 // loop_footer
      %s15 = sadd.s32 1, %s11
    $region7: #{vit_decoder_stage4_forward.5} parent=1 // loop_footer_branch
      %10 = sbr.rel target = $region3
    $region8: #{vit_decoder_stage4_forward.5} parent=1 // loop_exit
      _
    %530 = vsyncpa [#allocation3], 1
    %s531 = scalar_lea.sflag [#allocation3], 1
    %532 = vsyncpa %s531, 1
    %533 = vsyncpa [#allocation5], 1

// kernel: vit_decoder_stage4_forward.6
$region0: #{vit_decoder_stage4_forward.6}
  #allocation0 [shape = 'u32[]', space=smem, size = 0x4, offset = 0x4, fixed_abs, tag = 'smem constant byte address 0x4 - core index']
  #allocation1 [shape = 'u32[72,128]{1,0:T(1,128)}', space=vmem, size = 0x9000, scoped, tag = 'internal scratch']
  %s0 = inlined_call_operand.vmem [shape: bf16[2,128,128], index: 0, kind: input, shape index: {}]
  %s1 = inlined_call_operand.hbm [shape: bf16[64,128], index: 1, kind: input, shape index: {}]
  %s2 = inlined_call_operand.vmem [shape: f32[64,1], index: 2, kind: input, shape index: {}]
  %s3 = inlined_call_operand.vmem [shape: f32[64,1], index: 3, kind: input, shape index: {}]
  %s4 = inlined_call_operand.vmem [shape: f32[64,1], index: 4, kind: input, shape index: {}]
  %s5 = inlined_call_operand.vmem [shape: bf16[2,64,128], index: 5, kind: output, shape index: {}]
  %s6 = sld [smem:[#allocation0]]
  $region57: #{vit_decoder_stage4_forward.6} parent=0
    _
  %s8 = ssub.s32 1, %s6
  %s9 = scalar_select 0, %s8, %s6
  $region1: #{vit_decoder_stage4_forward.6} parent=0
    #allocation2 [shape = 'u8[16384]{0}', space=vmem, size = 0x4000, scoped, tag = 'input window, operand 1, single buffered']
    #allocation3 [shape = 's32[2]{0}', space=sflag, size = 0x8, scoped, tag = 'scoped memory for vit_decoder_stage4_forward.6']
    %10 = vsyncpa [#allocation3], 0
    loop: start=0, step=1, limit=4
    $region2: #{vit_decoder_stage4_forward.6} parent=1 // loop_pre_header
      _
    $region3: #{vit_decoder_stage4_forward.6} parent=1 // loop_header
      %s12 = sphi 0, %s16
      %p13 = scmp.ge.s32.totalorder %s12, 4
      %s19 = sphi 0, %s31
      %s20 = sphi 0, %s27
      %s21 = sphi 0, %s19
      %s22 = sphi 0, %s20
      %s23 = sphi 0, %s21
      %s24 = sphi 0, %s22
      %s36 = sphi 0, %s38
      %s39 = sphi 0, %s36
      %s40 = sphi 0, %s39
      %s56 = sphi 0, %s40
      %s60 = sphi 0, %s60
      %s62 = sphi 0, %s60
      %s63 = sphi 0, %s62
      %s77 = sphi 0, %s63
      %s81 = sphi 0, %s81
      %s83 = sphi 0, %s81
      %s84 = sphi 0, %s83
      %s98 = sphi 0, %s84
      %s102 = sphi 0, %s102
      %s104 = sphi 0, %s102
      %s105 = sphi 0, %s104
      %s119 = sphi 0, %s105
      %s123 = sphi 0, %s123
      %s125 = sphi 0, %s123
      %s126 = sphi 0, %s125
      %s140 = sphi 0, %s126
      %s148 = sphi 0, %s150
      %s151 = sphi 0, %s148
      %s152 = sphi 0, %s151
      %s168 = sphi 0, %s152
    $region4: #{vit_decoder_stage4_forward.6} parent=1 // loop_header_branch
      %15 = sbr.rel (%p13) target = $region8
    $region5: #{vit_decoder_stage4_forward.6} parent=1 // loop_body
      %s17 = ssub.s32 %s12, 1
      %s18 = ssub.s32 %s12, 2
      %s25 = sadd.s32 1, %s20
      %p26 = scmp.ge.s32.totalorder %s25, 1
      %s27 = scalar_select %p26, 0, %s25
      %s28 = sadd.s32 1, %s19
      %s29 = scalar_select %p26, %s28, %s19
      %p30 = scmp.ge.s32.totalorder %s29, 2
      %s31 = scalar_select %p30, 0, %s29
      %s32 = ssub.s32 %s19, %s31
      %s33 = ssub.s32 %s20, %s27
      %s34 = sor.u32 %s32, %s33
      %p35 = scmp.eq.s32.totalorder %s34, 0
      %s37 = sadd.s32 %s36, 1
      %s38 = scalar_select %p35, %s36, %s37
      %p41 = pneg %p35
      %p42 = scmp.eq.s32.totalorder %s12, 1
      %p43 = por %p41, %p42
      %p44 = scmp.ne.s32.totalorder %s36, %s39
      %p45 = scmp.eq.s32.totalorder %s12, 0
      %p46 = por %p44, %p45
      %p47 = scmp.ne.s32.totalorder %s36, %s39
      %p48 = scmp.eq.s32.totalorder %s17, 1
      %p49 = por %p47, %p48
      %p50 = scmp.ne.s32.totalorder %s39, %s40
      %p51 = scmp.eq.s32.totalorder %s17, 0
      %p52 = por %p50, %p51
      %p53 = scmp.ne.s32.totalorder %s39, %s40
      %p54 = scmp.eq.s32.totalorder %s18, 1
      %p55 = por %p53, %p54
      %p57 = scmp.ne.s32.totalorder %s40, %s56
      %p58 = scmp.eq.s32.totalorder %s18, 0
      %p59 = por %p57, %p58
      %s61 = sadd.s32 %s60, 1
      %p64 = scmp.eq.s32.totalorder %s12, 1
      %p65 = scmp.ne.s32.totalorder %s60, %s62
      %p66 = scmp.eq.s32.totalorder %s12, 0
      %p67 = por %p65, %p66
      %p68 = scmp.ne.s32.totalorder %s60, %s62
      %p69 = scmp.eq.s32.totalorder %s17, 1
      %p70 = por %p68, %p69
      %p71 = scmp.ne.s32.totalorder %s62, %s63
      %p72 = scmp.eq.s32.totalorder %s17, 0
      %p73 = por %p71, %p72
      %p74 = scmp.ne.s32.totalorder %s62, %s63
      %p75 = scmp.eq.s32.totalorder %s18, 1
      %p76 = por %p74, %p75
      %p78 = scmp.ne.s32.totalorder %s63, %s77
      %p79 = scmp.eq.s32.totalorder %s18, 0
      %p80 = por %p78, %p79
      %s82 = sadd.s32 %s81, 1
      %p85 = scmp.eq.s32.totalorder %s12, 1
      %p86 = scmp.ne.s32.totalorder %s81, %s83
      %p87 = scmp.eq.s32.totalorder %s12, 0
      %p88 = por %p86, %p87
      %p89 = scmp.ne.s32.totalorder %s81, %s83
      %p90 = scmp.eq.s32.totalorder %s17, 1
      %p91 = por %p89, %p90
      %p92 = scmp.ne.s32.totalorder %s83, %s84
      %p93 = scmp.eq.s32.totalorder %s17, 0
      %p94 = por %p92, %p93
      %p95 = scmp.ne.s32.totalorder %s83, %s84
      %p96 = scmp.eq.s32.totalorder %s18, 1
      %p97 = por %p95, %p96
      %p99 = scmp.ne.s32.totalorder %s84, %s98
      %p100 = scmp.eq.s32.totalorder %s18, 0
      %p101 = por %p99, %p100
      %s103 = sadd.s32 %s102, 1
      %p106 = scmp.eq.s32.totalorder %s12, 1
      %p107 = scmp.ne.s32.totalorder %s102, %s104
      %p108 = scmp.eq.s32.totalorder %s12, 0
      %p109 = por %p107, %p108
      %p110 = scmp.ne.s32.totalorder %s102, %s104
      %p111 = scmp.eq.s32.totalorder %s17, 1
      %p112 = por %p110, %p111
      %p113 = scmp.ne.s32.totalorder %s104, %s105
      %p114 = scmp.eq.s32.totalorder %s17, 0
      %p115 = por %p113, %p114
      %p116 = scmp.ne.s32.totalorder %s104, %s105
      %p117 = scmp.eq.s32.totalorder %s18, 1
      %p118 = por %p116, %p117
      %p120 = scmp.ne.s32.totalorder %s105, %s119
      %p121 = scmp.eq.s32.totalorder %s18, 0
      %p122 = por %p120, %p121
      %s124 = sadd.s32 %s123, 1
      %p127 = scmp.eq.s32.totalorder %s12, 1
      %p128 = scmp.ne.s32.totalorder %s123, %s125
      %p129 = scmp.eq.s32.totalorder %s12, 0
      %p130 = por %p128, %p129
      %p131 = scmp.ne.s32.totalorder %s123, %s125
      %p132 = scmp.eq.s32.totalorder %s17, 1
      %p133 = por %p131, %p132
      %p134 = scmp.ne.s32.totalorder %s125, %s126
      %p135 = scmp.eq.s32.totalorder %s17, 0
      %p136 = por %p134, %p135
      %p137 = scmp.ne.s32.totalorder %s125, %s126
      %p138 = scmp.eq.s32.totalorder %s18, 1
      %p139 = por %p137, %p138
      %p141 = scmp.ne.s32.totalorder %s126, %s140
      %p142 = scmp.eq.s32.totalorder %s18, 0
      %p143 = por %p141, %p142
      %s144 = ssub.s32 %s19, %s31
      %s145 = ssub.s32 %s20, %s27
      %s146 = sor.u32 %s144, %s145
      %p147 = scmp.eq.s32.totalorder %s146, 0
      %s149 = sadd.s32 %s148, 1
      %s150 = scalar_select %p147, %s148, %s149
      %p153 = pneg %p147
      %p154 = scmp.eq.s32.totalorder %s12, 1
      %p155 = por %p153, %p154
      %p156 = scmp.ne.s32.totalorder %s148, %s151
      %p157 = scmp.eq.s32.totalorder %s12, 0
      %p158 = por %p156, %p157
      %p159 = scmp.ne.s32.totalorder %s148, %s151
      %p160 = scmp.eq.s32.totalorder %s17, 1
      %p161 = por %p159, %p160
      %p162 = scmp.ne.s32.totalorder %s151, %s152
      %p163 = scmp.eq.s32.totalorder %s17, 0
      %p164 = por %p162, %p163
      %p165 = scmp.ne.s32.totalorder %s151, %s152
      %p166 = scmp.eq.s32.totalorder %s18, 1
      %p167 = por %p165, %p166
      %p169 = scmp.ne.s32.totalorder %s152, %s168
      %p170 = scmp.eq.s32.totalorder %s18, 0
      %p171 = por %p169, %p170
      %p172 = scmp.le.s32.totalorder 1, %s12
      %p173 = scmp.lt.s32.totalorder %s12, 3
      %p174 = pnand %p172, %p173
      %p175 = pneg %p174
      // Predicated region
      $region9: #{vit_decoder_stage4_forward.6} parent=5 // pred_check
        _
      $region10: #{vit_decoder_stage4_forward.6} parent=5 // pred_check_branch
        %177 = sbr.rel (%p174) target = $region12
      $region11: #{vit_decoder_stage4_forward.6} parent=5 // pred_region
        %s178 = ssub.s32 %s12, 1
        // Predicated region
        $region13: #{vit_decoder_stage4_forward.6} parent=11 // pred_check
          %p179 = pneg %p73
        $region14: #{vit_decoder_stage4_forward.6} parent=11 // pred_check_branch
          %181 = sbr.rel (%p179) target = $region16
        $region15: #{vit_decoder_stage4_forward.6} parent=11 // pred_region
          %183 = vsyncadd [#allocation3], 0
          %s184 = sshll.u32 %s1, 4
          %s185 = int_to_ptr.hbm [resolvable:$true] %s184
          %s186 = sshll.u32 [#allocation2], 4
          %s187 = int_to_ptr.vmem [resolvable:$true] %s186
          %192 = dma.hbm_to_vmem [thread:$0]  %s185, 512, %s187, [#allocation3], 64, 64, 4
        $region16: #{vit_decoder_stage4_forward.6} parent=11 // pred_fallthru
          _
        // Predicated region
        $region17: #{vit_decoder_stage4_forward.6} parent=11 // pred_check
          %p193 = pneg %p94
        $region18: #{vit_decoder_stage4_forward.6} parent=11 // pred_check_branch
          %195 = sbr.rel (%p193) target = $region20
        $region19: #{vit_decoder_stage4_forward.6} parent=11 // pred_region
          _
        $region20: #{vit_decoder_stage4_forward.6} parent=11 // pred_fallthru
          _
        // Predicated region
        $region21: #{vit_decoder_stage4_forward.6} parent=11 // pred_check
          %p196 = pneg %p115
        $region22: #{vit_decoder_stage4_forward.6} parent=11 // pred_check_branch
          %198 = sbr.rel (%p196) target = $region24
        $region23: #{vit_decoder_stage4_forward.6} parent=11 // pred_region
          _
        $region24: #{vit_decoder_stage4_forward.6} parent=11 // pred_fallthru
          _
        // Predicated region
        $region25: #{vit_decoder_stage4_forward.6} parent=11 // pred_check
          %p199 = pneg %p136
        $region26: #{vit_decoder_stage4_forward.6} parent=11 // pred_check_branch
          %201 = sbr.rel (%p199) target = $region28
        $region27: #{vit_decoder_stage4_forward.6} parent=11 // pred_region
          _
        $region28: #{vit_decoder_stage4_forward.6} parent=11 // pred_fallthru
          _
      $region12: #{vit_decoder_stage4_forward.6} parent=5 // pred_fallthru
        _
      %p202 = scmp.lt.s32.totalorder %s12, 2
      // Predicated region
      $region29: #{vit_decoder_stage4_forward.6} parent=5 // pred_check
        %p203 = pneg %p202
      $region30: #{vit_decoder_stage4_forward.6} parent=5 // pred_check_branch
        %205 = sbr.rel (%p203) target = $region32
      $region31: #{vit_decoder_stage4_forward.6} parent=5 // pred_region
        // Predicated region
        $region33: #{vit_decoder_stage4_forward.6} parent=31 // pred_check
          %p206 = pneg %p46
        $region34: #{vit_decoder_stage4_forward.6} parent=31 // pred_check_branch
          %208 = sbr.rel (%p206) target = $region36
        $region35: #{vit_decoder_stage4_forward.6} parent=31 // pred_region
          %p209 = scmp.lt.s32.totalorder %s19, 1
          %s210 = scalar_select %p209, %s19, 1
          %p211 = scmp.lt.s32.totalorder %s20, 0
          %s212 = scalar_select %p211, %s20, 0
          %s213 = smul.addr %s210, 16
          %s214 = sadd.s32 %s212, %s213
          %s215 = smul.addr %s214, 4
          %s216 = scalar_lea.vmem %s0, %s215
        $region36: #{vit_decoder_stage4_forward.6} parent=31 // pred_fallthru
          _
      $region32: #{vit_decoder_stage4_forward.6} parent=5 // pred_fallthru
        _
      %p217 = scmp.le.s32.totalorder 1, %s12
      %p218 = scmp.lt.s32.totalorder %s12, 3
      %p219 = pnand %p217, %p218
      %p220 = pneg %p219
      // Predicated region
      $region37: #{vit_decoder_stage4_forward.6} parent=5 // pred_check
        _
      $region38: #{vit_decoder_stage4_forward.6} parent=5 // pred_check_branch
        %222 = sbr.rel (%p219) target = $region40
      $region39: #{vit_decoder_stage4_forward.6} parent=5 // pred_region
        %s223 = ssub.s32 %s12, 1
        // Predicated region
        $region41: #{vit_decoder_stage4_forward.6} parent=39 // pred_check
          %p224 = pneg %p73
        $region42: #{vit_decoder_stage4_forward.6} parent=39 // pred_check_branch
          %226 = sbr.rel (%p224) target = $region44
        $region43: #{vit_decoder_stage4_forward.6} parent=39 // pred_region
          %228 = dma.done [#allocation3], 512
        $region44: #{vit_decoder_stage4_forward.6} parent=39 // pred_fallthru
          _
        %p229 = scmp.lt.s32.totalorder %s21, 1
        %s230 = scalar_select %p229, %s21, 1
        %p231 = scmp.lt.s32.totalorder %s22, 0
        %s232 = scalar_select %p231, %s22, 0
        %s233 = smul.addr %s230, 16
        %s234 = sadd.s32 %s232, %s233
        %s235 = smul.addr %s234, 4
        %s236 = scalar_lea.vmem %s0, %s235
        %p237 = pneg %p52
        %p238 = pneg %p49
        %p239 = pneg %p73
        %p240 = pneg %p70
        %p241 = pneg %p94
        %p242 = pneg %p91
        %p243 = pneg %p115
        %p244 = pneg %p112
        %p245 = pneg %p136
        %p246 = pneg %p133
        %p247 = pneg %p164
        %p248 = pneg %p161
        %p249 = scmp.lt.s32.totalorder %s21, 1
        %s250 = scalar_select %p249, %s21, 1
        %p251 = scmp.lt.s32.totalorder %s22, 0
        %s252 = scalar_select %p251, %s22, 0
        %s253 = smul.addr %s250, 8
        %s254 = sadd.s32 %s252, %s253
        %s255 = smul.addr %s254, 4
        %s256 = scalar_lea.vmem %s5, %s255
        %p257 = scmp.lt.s32.totalorder %s21, 1
        %s258 = scalar_select %p257, %s21, 1
        %p259 = scmp.lt.s32.totalorder %s22, 0
        %s260 = scalar_select %p259, %s22, 0
        %s261 = smul.addr %s258, 16
        %s262 = sadd.s32 %s260, %s261
        %s263 = smul.addr %s262, 4
        %s264 = scalar_lea.vmem %s0, %s263
        %p265 = scmp.lt.s32.totalorder %s21, 1
        %s266 = scalar_select %p265, %s21, 1
        %p267 = scmp.lt.s32.totalorder %s22, 0
        %s268 = scalar_select %p267, %s22, 0
        %s269 = smul.addr %s266, 8
        %s270 = sadd.s32 %s268, %s269
        %s271 = smul.addr %s270, 4
        %s272 = scalar_lea.vmem %s5, %s271
        %v273 = vld [vmem:[#allocation2] sm:$0xf]
        %v274 = vld [vmem:[#allocation2 + $0x4] sm:$0xf]
        %v275 = vld [vmem:[#allocation2 + $0x8] sm:$0xf]
        %v276 = vld [vmem:[#allocation2 + $0xc] sm:$0xf]
        %v277 = vld [vmem:[#allocation2 + $0x10] sm:$0xf]
        %v278 = vld [vmem:[#allocation2 + $0x14] sm:$0xf]
        %v279 = vld [vmem:[#allocation2 + $0x18] sm:$0xf]
        %v280 = vld [vmem:[#allocation2 + $0x1c] sm:$0xf]
        %v281 = vld [vmem:[%s264] sm:$0xf]
        %v282 = vld [vmem:[%s264 + $0x4] sm:$0xf]
        %v283 = vld [vmem:[%s264 + $0x8] sm:$0xf]
        %v284 = vld [vmem:[%s264 + $0xc] sm:$0xf]
        %v285 = vld [vmem:[%s264 + $0x10] sm:$0xf]
        %v286 = vld [vmem:[%s264 + $0x14] sm:$0xf]
        %v287 = vld [vmem:[%s264 + $0x18] sm:$0xf]
        %v288 = vld [vmem:[%s264 + $0x1c] sm:$0xf]
        %v289 = vld [vmem:[%s264 + $0x20] sm:$0xf]
        %v290 = vld [vmem:[%s264 + $0x24] sm:$0xf]
        %v291 = vld [vmem:[%s264 + $0x28] sm:$0xf]
        %v292 = vld [vmem:[%s264 + $0x2c] sm:$0xf]
        %v293 = vld [vmem:[%s264 + $0x30] sm:$0xf]
        %v294 = vld [vmem:[%s264 + $0x34] sm:$0xf]
        %v295 = vld [vmem:[%s264 + $0x38] sm:$0xf]
        %v296 = vld [vmem:[%s264 + $0x3c] sm:$0xf]
        %v297 = vld [vmem:[%s2] sm:$0xff]
        %v298 = vld [vmem:[%s2 + $0x8] sm:$0xff]
        %v299 = vld [vmem:[%s2 + $0x10] sm:$0xff]
        %v300 = vld [vmem:[%s2 + $0x18] sm:$0xff]
        %v301 = vld [vmem:[%s2 + $0x20] sm:$0xff]
        %v302 = vld [vmem:[%s2 + $0x28] sm:$0xff]
        %v303 = vld [vmem:[%s2 + $0x30] sm:$0xff]
        %v304 = vld [vmem:[%s2 + $0x38] sm:$0xff]
        %306 = vset.pattern.permute.xlu0 0
        %307 = vperm.xlu0 %306, %v297
        %v308 = vpop.permute.xlu0 %307
        %311 = vset.pattern.permute.xlu0 0
        %312 = vperm.xlu0 %311, %v298
        %v313 = vpop.permute.xlu0 %312
        %316 = vset.pattern.permute.xlu0 0
        %317 = vperm.xlu0 %316, %v299
        %v318 = vpop.permute.xlu0 %317
        %321 = vset.pattern.permute.xlu0 0
        %322 = vperm.xlu0 %321, %v300
        %v323 = vpop.permute.xlu0 %322
        %326 = vset.pattern.permute.xlu0 0
        %327 = vperm.xlu0 %326, %v301
        %v328 = vpop.permute.xlu0 %327
        %331 = vset.pattern.permute.xlu0 0
        %332 = vperm.xlu0 %331, %v302
        %v333 = vpop.permute.xlu0 %332
        %336 = vset.pattern.permute.xlu0 0
        %337 = vperm.xlu0 %336, %v303
        %v338 = vpop.permute.xlu0 %337
        %341 = vset.pattern.permute.xlu0 0
        %342 = vperm.xlu0 %341, %v304
        %v343 = vpop.permute.xlu0 %342
        %v353 = vunpack.c.l.b16 %v273
        %v354 = vunpack.c.l.b16 %v274
        %v355 = vunpack.c.l.b16 %v275
        %v356 = vunpack.c.l.b16 %v276
        %v357 = vunpack.c.l.b16 %v277
        %v358 = vunpack.c.l.b16 %v278
        %v359 = vunpack.c.l.b16 %v279
        %v360 = vunpack.c.l.b16 %v280
        %v361 = vpack.c.b16 %v354, %v353
        %v362 = vpack.c.b16 %v356, %v355
        %v363 = vpack.c.b16 %v358, %v357
        %v364 = vpack.c.b16 %v360, %v359
        %v385 = vunpack.c.l.b16 %v281
        %v386 = vunpack.c.l.b16 %v282
        %v387 = vunpack.c.l.b16 %v283
        %v388 = vunpack.c.l.b16 %v284
        %v389 = vunpack.c.l.b16 %v285
        %v390 = vunpack.c.l.b16 %v286
        %v391 = vunpack.c.l.b16 %v287
        %v392 = vunpack.c.l.b16 %v288
        %v393 = vunpack.c.l.b16 %v289
        %v394 = vunpack.c.l.b16 %v290
        %v395 = vunpack.c.l.b16 %v291
        %v396 = vunpack.c.l.b16 %v292
        %v397 = vunpack.c.l.b16 %v293
        %v398 = vunpack.c.l.b16 %v294
        %v399 = vunpack.c.l.b16 %v295
        %v400 = vunpack.c.l.b16 %v296
        %v401 = vpack.c.b16 %v386, %v385
        %v402 = vpack.c.b16 %v388, %v387
        %v403 = vpack.c.b16 %v390, %v389
        %v404 = vpack.c.b16 %v392, %v391
        %v405 = vpack.c.b16 %v394, %v393
        %v406 = vpack.c.b16 %v396, %v395
        %v407 = vpack.c.b16 %v398, %v397
        %v408 = vpack.c.b16 %v400, %v399
        %417 = vmatpush.bf16.msra.mxu0 %v408
        %418 = vmatpush.bf16.msra.mxu0 %v407
        %419 = vmatpush.bf16.msra.mxu0 %v406
        %420 = vmatpush.bf16.msra.mxu0 %v405
        %421 = vmatpush.bf16.msra.mxu0 %v404
        %422 = vmatpush.bf16.msra.mxu0 %v403
        %423 = vmatpush.bf16.msra.mxu0 %v402
        %424 = vmatpush.bf16.msra.mxu0 %v401
        %425 = vmatmul.bf16.gmra.mxu0 %v361
        %v426 = vpop.f32.mrf.mxu0
        %v427 = vadd.f32 %v308, %v426
        %v428 = vpop.f32.mrf.mxu0
        %v429 = vadd.f32 %v313, %v428
        %430 = vmatmul.bf16.gmra.mxu0 %v362
        %v431 = vpop.f32.mrf.mxu0
        %v432 = vadd.f32 %v318, %v431
        %v433 = vpop.f32.mrf.mxu0
        %v434 = vadd.f32 %v323, %v433
        %435 = vmatmul.bf16.gmra.mxu0 %v363
        %v436 = vpop.f32.mrf.mxu0
        %v437 = vadd.f32 %v328, %v436
        %v438 = vpop.f32.mrf.mxu0
        %v439 = vadd.f32 %v333, %v438
        %440 = vmatmul.bf16.gmra.mxu0 %v364
        %v441 = vpop.f32.mrf.mxu0
        %v442 = vadd.f32 %v338, %v441
        %v443 = vpop.f32.mrf.mxu0
        %v444 = vadd.f32 %v343, %v443
        %445 = vdwg.mxu0
        %v446 = vld [vmem:[%s3] sm:$0xff]
        %v447 = vld [vmem:[%s3 + $0x8] sm:$0xff]
        %v448 = vld [vmem:[%s3 + $0x10] sm:$0xff]
        %v449 = vld [vmem:[%s3 + $0x18] sm:$0xff]
        %v450 = vld [vmem:[%s3 + $0x20] sm:$0xff]
        %v451 = vld [vmem:[%s3 + $0x28] sm:$0xff]
        %v452 = vld [vmem:[%s3 + $0x30] sm:$0xff]
        %v453 = vld [vmem:[%s3 + $0x38] sm:$0xff]
        %455 = vset.pattern.permute.xlu0 0
        %456 = vperm.xlu0 %455, %v446
        %v457 = vpop.permute.xlu0 %456
        %460 = vset.pattern.permute.xlu0 0
        %461 = vperm.xlu0 %460, %v447
        %v462 = vpop.permute.xlu0 %461
        %465 = vset.pattern.permute.xlu0 0
        %466 = vperm.xlu0 %465, %v448
        %v467 = vpop.permute.xlu0 %466
        %470 = vset.pattern.permute.xlu0 0
        %471 = vperm.xlu0 %470, %v449
        %v472 = vpop.permute.xlu0 %471
        %475 = vset.pattern.permute.xlu0 0
        %476 = vperm.xlu0 %475, %v450
        %v477 = vpop.permute.xlu0 %476
        %480 = vset.pattern.permute.xlu0 0
        %481 = vperm.xlu0 %480, %v451
        %v482 = vpop.permute.xlu0 %481
        %485 = vset.pattern.permute.xlu0 0
        %486 = vperm.xlu0 %485, %v452
        %v487 = vpop.permute.xlu0 %486
        %490 = vset.pattern.permute.xlu0 0
        %491 = vperm.xlu0 %490, %v453
        %v492 = vpop.permute.xlu0 %491
        %v494 = vmul.f32 %v427, %v457
        %v495 = vmul.f32 %v429, %v462
        %v496 = vmul.f32 %v432, %v467
        %v497 = vmul.f32 %v434, %v472
        %v498 = vmul.f32 %v437, %v477
        %v499 = vmul.f32 %v439, %v482
        %v500 = vmul.f32 %v442, %v487
        %v501 = vmul.f32 %v444, %v492
        %v502 = vld [vmem:[%s4] sm:$0xff]
        %v503 = vld [vmem:[%s4 + $0x8] sm:$0xff]
        %v504 = vld [vmem:[%s4 + $0x10] sm:$0xff]
        %v505 = vld [vmem:[%s4 + $0x18] sm:$0xff]
        %v506 = vld [vmem:[%s4 + $0x20] sm:$0xff]
        %v507 = vld [vmem:[%s4 + $0x28] sm:$0xff]
        %v508 = vld [vmem:[%s4 + $0x30] sm:$0xff]
        %v509 = vld [vmem:[%s4 + $0x38] sm:$0xff]
        %511 = vset.pattern.permute.xlu0 0
        %512 = vperm.xlu0 %511, %v502
        %v513 = vpop.permute.xlu0 %512
        %516 = vset.pattern.permute.xlu0 0
        %517 = vperm.xlu0 %516, %v503
        %v518 = vpop.permute.xlu0 %517
        %521 = vset.pattern.permute.xlu0 0
        %522 = vperm.xlu0 %521, %v504
        %v523 = vpop.permute.xlu0 %522
        %526 = vset.pattern.permute.xlu0 0
        %527 = vperm.xlu0 %526, %v505
        %v528 = vpop.permute.xlu0 %527
        %531 = vset.pattern.permute.xlu0 0
        %532 = vperm.xlu0 %531, %v506
        %v533 = vpop.permute.xlu0 %532
        %536 = vset.pattern.permute.xlu0 0
        %537 = vperm.xlu0 %536, %v507
        %v538 = vpop.permute.xlu0 %537
        %541 = vset.pattern.permute.xlu0 0
        %542 = vperm.xlu0 %541, %v508
        %v543 = vpop.permute.xlu0 %542
        %546 = vset.pattern.permute.xlu0 0
        %547 = vperm.xlu0 %546, %v509
        %v548 = vpop.permute.xlu0 %547
        %v550 = vadd.f32 %v494, %v513
        %v551 = vadd.f32 %v495, %v518
        %v552 = vadd.f32 %v496, %v523
        %v553 = vadd.f32 %v497, %v528
        %v554 = vadd.f32 %v498, %v533
        %v555 = vadd.f32 %v499, %v538
        %v556 = vadd.f32 %v500, %v543
        %v557 = vadd.f32 %v501, %v548
        %v558 = vmul.f32 %v550, 0.5
        %v559 = vmul.f32 %v551, 0.5
        %v560 = vmul.f32 %v552, 0.5
        %v561 = vmul.f32 %v553, 0.5
        %v562 = vmul.f32 %v554, 0.5
        %v563 = vmul.f32 %v555, 0.5
        %v564 = vmul.f32 %v556, 0.5
        %v565 = vmul.f32 %v557, 0.5
        %v566 = vmul.f32 %v550, 0.044715
        %v567 = vmul.f32 %v551, 0.044715
        %v568 = vmul.f32 %v552, 0.044715
        %v569 = vmul.f32 %v553, 0.044715
        %v570 = vmul.f32 %v554, 0.044715
        %v571 = vmul.f32 %v555, 0.044715
        %v572 = vmul.f32 %v556, 0.044715
        %v573 = vmul.f32 %v557, 0.044715
        %v574 = vmul.f32 %v566, %v550
        %v575 = vmul.f32 %v567, %v551
        %v576 = vmul.f32 %v568, %v552
        %v577 = vmul.f32 %v569, %v553
        %v578 = vmul.f32 %v570, %v554
        %v579 = vmul.f32 %v571, %v555
        %v580 = vmul.f32 %v572, %v556
        %v581 = vmul.f32 %v573, %v557
        %v582 = vmul.f32 %v574, %v550
        %v583 = vmul.f32 %v575, %v551
        %v584 = vmul.f32 %v576, %v552
        %v585 = vmul.f32 %v577, %v553
        %v586 = vmul.f32 %v578, %v554
        %v587 = vmul.f32 %v579, %v555
        %v588 = vmul.f32 %v580, %v556
        %v589 = vmul.f32 %v581, %v557
        %v590 = vadd.f32 %v550, %v582
        %v591 = vadd.f32 %v551, %v583
        %v592 = vadd.f32 %v552, %v584
        %v593 = vadd.f32 %v553, %v585
        %v594 = vadd.f32 %v554, %v586
        %v595 = vadd.f32 %v555, %v587
        %v596 = vadd.f32 %v556, %v588
        %v597 = vadd.f32 %v557, %v589
        %v598 = vmul.f32 %v590, 0.7978846
        %v599 = vmul.f32 %v591, 0.7978846
        %v600 = vmul.f32 %v592, 0.7978846
        %v601 = vmul.f32 %v593, 0.7978846
        %v602 = vmul.f32 %v594, 0.7978846
        %v603 = vmul.f32 %v595, 0.7978846
        %v604 = vmul.f32 %v596, 0.7978846
        %v605 = vmul.f32 %v597, 0.7978846
        %v606 = vtanh.pop %v598
        %v607 = vtanh.pop %v599
        %v608 = vtanh.pop %v600
        %v609 = vtanh.pop %v601
        %v610 = vtanh.pop %v602
        %v611 = vtanh.pop %v603
        %v612 = vtanh.pop %v604
        %v613 = vtanh.pop %v605
        %v614 = vadd.f32 %v606, 1.0
        %v615 = vadd.f32 %v607, 1.0
        %v616 = vadd.f32 %v608, 1.0
        %v617 = vadd.f32 %v609, 1.0
        %v618 = vadd.f32 %v610, 1.0
        %v619 = vadd.f32 %v611, 1.0
        %v620 = vadd.f32 %v612, 1.0
        %v621 = vadd.f32 %v613, 1.0
        %v622 = vmul.f32 %v558, %v614
        %v623 = vmul.f32 %v559, %v615
        %v624 = vmul.f32 %v560, %v616
        %v625 = vmul.f32 %v561, %v617
        %v626 = vmul.f32 %v562, %v618
        %v627 = vmul.f32 %v563, %v619
        %v628 = vmul.f32 %v564, %v620
        %v629 = vmul.f32 %v565, %v621
        %v630 = vpack.c.bf16 %v622, %v622
        %v631 = vpack.c.bf16 %v623, %v623
        %v632 = vpack.c.bf16 %v624, %v624
        %v633 = vpack.c.bf16 %v625, %v625
        %v634 = vpack.c.bf16 %v626, %v626
        %v635 = vpack.c.bf16 %v627, %v627
        %v636 = vpack.c.bf16 %v628, %v628
        %v637 = vpack.c.bf16 %v629, %v629
        %638 = vst [vmem:[%s272] sm:$0xf] %v630
        %639 = vst [vmem:[%s272 + $0x4] sm:$0xf] %v631
        %640 = vst [vmem:[%s272 + $0x8] sm:$0xf] %v632
        %641 = vst [vmem:[%s272 + $0xc] sm:$0xf] %v633
        %642 = vst [vmem:[%s272 + $0x10] sm:$0xf] %v634
        %643 = vst [vmem:[%s272 + $0x14] sm:$0xf] %v635
        %644 = vst [vmem:[%s272 + $0x18] sm:$0xf] %v636
        %645 = vst [vmem:[%s272 + $0x1c] sm:$0xf] %v637
        %p646 = scmp.lt.s32.totalorder %s21, 1
        %s647 = scalar_select %p646, %s21, 1
        %p648 = scmp.lt.s32.totalorder %s22, 0
        %s649 = scalar_select %p648, %s22, 0
        %s650 = smul.addr %s647, 8
        %s651 = sadd.s32 %s649, %s650
        %s652 = smul.addr %s651, 4
        %s653 = scalar_lea.vmem %s5, %s652
        // Predicated region
        $region45: #{vit_decoder_stage4_forward.6} parent=39 // pred_check
          %p654 = pneg %p161
        $region46: #{vit_decoder_stage4_forward.6} parent=39 // pred_check_branch
          %656 = sbr.rel (%p654) target = $region48
        $region47: #{vit_decoder_stage4_forward.6} parent=39 // pred_region
          _
        $region48: #{vit_decoder_stage4_forward.6} parent=39 // pred_fallthru
          _
      $region40: #{vit_decoder_stage4_forward.6} parent=5 // pred_fallthru
        _
      %p657 = scmp.le.s32.totalorder 2, %s12
      // Predicated region
      $region49: #{vit_decoder_stage4_forward.6} parent=5 // pred_check
        %p658 = pneg %p657
      $region50: #{vit_decoder_stage4_forward.6} parent=5 // pred_check_branch
        %660 = sbr.rel (%p658) target = $region52
      $region51: #{vit_decoder_stage4_forward.6} parent=5 // pred_region
        %s661 = ssub.s32 %s12, 2
        // Predicated region
        $region53: #{vit_decoder_stage4_forward.6} parent=51 // pred_check
          %p662 = pneg %p167
        $region54: #{vit_decoder_stage4_forward.6} parent=51 // pred_check_branch
          %664 = sbr.rel (%p662) target = $region56
        $region55: #{vit_decoder_stage4_forward.6} parent=51 // pred_region
          %p665 = scmp.lt.s32.totalorder %s23, 1
          %s666 = scalar_select %p665, %s23, 1
          %p667 = scmp.lt.s32.totalorder %s24, 0
          %s668 = scalar_select %p667, %s24, 0
          %s669 = smul.addr %s666, 8
          %s670 = sadd.s32 %s668, %s669
          %s671 = smul.addr %s670, 4
          %s672 = scalar_lea.vmem %s5, %s671
        $region56: #{vit_decoder_stage4_forward.6} parent=51 // pred_fallthru
          _
      $region52: #{vit_decoder_stage4_forward.6} parent=5 // pred_fallthru
        _
    $region6: #{vit_decoder_stage4_forward.6} parent=1 // loop_footer
      %s16 = sadd.s32 1, %s12
    $region7: #{vit_decoder_stage4_forward.6} parent=1 // loop_footer_branch
      %11 = sbr.rel target = $region3
    $region8: #{vit_decoder_stage4_forward.6} parent=1 // loop_exit
      _
    %673 = vsyncpa [#allocation3], 1
    %s674 = scalar_lea.sflag [#allocation3], 1
    %675 = vsyncpa %s674, 1

// kernel: tile.54
$region0: #{tile.54}
  #allocation0 [shape = 's32[1]{0}', space=sflag, size = 0x4, scoped, tag = 'scoped memory for tile.54']
  %s0 = inlined_call_operand.vmem [shape: f32[8], index: 0, kind: input, shape index: {}]
  %s1 = inlined_call_operand.vmem [shape: f32[4,8], index: 1, kind: output, shape index: {}]
  // Predicated region
  $region2: #{tile.54} parent=0 // pred_check
    _
  $region3: #{tile.54} parent=0 // pred_check_branch
    %3 = sbr.rel (0) target = $region5
  $region4: #{tile.54} parent=0 // pred_region
    _
  $region5: #{tile.54} parent=0 // pred_fallthru
    _
  %v4 = vld [vmem:[%s0] ss:$0 sm:$0xff]
  %5 = vst [vmem:[%s1] sm:$0xf] %v4

// kernel: tile.3
$region0: #{tile.3}
  %s0 = inlined_call_operand.vmem [shape: f32[4,8], index: 0, kind: input, shape index: {}]
  %s1 = inlined_call_operand.vmem [shape: f32[32,1], index: 1, kind: output, shape index: {}]
  $region1: #{tile.3} parent=0
    #allocation0 [shape = 'u8[4096]{0}', space=vmem, size = 0x1000, scoped, tag = 'scoped mem for input reshape']
    %s3 = ssub.s32 16, 1
    %v4 = vld [vmem:[%s0] sm:%s3]
    %5 = vst [vmem:[#allocation0] sm:%s3] %v4
    %v6 = vld [vmem:[#allocation0] sm:$0xf]
    %vm7 = vcmask 7168
    %8 = vst.msk [vmem:[%s1] ss:$8 sm:$0xf] %vm7, %v6
    %v9 = vld [vmem:[#allocation0] sm:$0xf]
    %10 = vrot.lane.b32.xlu0 %v9, 127
    %v11 = vpop.permute.xlu0 %10
    %vm12 = vcmask 7168
    %s13 = scalar_lea.vmem %s1, 1
    %14 = vst.msk [vmem:[%s13] ss:$8 sm:$0xf] %vm12, %v11
    %v15 = vld [vmem:[#allocation0] sm:$0xf]
    %16 = vrot.lane.b32.xlu0 %v15, 126
    %v17 = vpop.permute.xlu0 %16
    %vm18 = vcmask 7168
    %s19 = scalar_lea.vmem %s1, 2
    %20 = vst.msk [vmem:[%s19] ss:$8 sm:$0xf] %vm18, %v17
    %v21 = vld [vmem:[#allocation0] sm:$0xf]
    %22 = vrot.lane.b32.xlu0 %v21, 125
    %v23 = vpop.permute.xlu0 %22
    %vm24 = vcmask 7168
    %s25 = scalar_lea.vmem %s1, 3
    %26 = vst.msk [vmem:[%s25] ss:$8 sm:$0xf] %vm24, %v23
    %v27 = vld [vmem:[#allocation0] sm:$0xf]
    %28 = vrot.lane.b32.xlu0 %v27, 124
    %v29 = vpop.permute.xlu0 %28
    %vm30 = vcmask 7168
    %s31 = scalar_lea.vmem %s1, 4
    %32 = vst.msk [vmem:[%s31] ss:$8 sm:$0xf] %vm30, %v29
    %v33 = vld [vmem:[#allocation0] sm:$0xf]
    %34 = vrot.lane.b32.xlu0 %v33, 123
    %v35 = vpop.permute.xlu0 %34
    %vm36 = vcmask 7168
    %s37 = scalar_lea.vmem %s1, 5
    %38 = vst.msk [vmem:[%s37] ss:$8 sm:$0xf] %vm36, %v35
    %v39 = vld [vmem:[#allocation0] sm:$0xf]
    %40 = vrot.lane.b32.xlu0 %v39, 122
    %v41 = vpop.permute.xlu0 %40
    %vm42 = vcmask 7168
    %s43 = scalar_lea.vmem %s1, 6
    %44 = vst.msk [vmem:[%s43] ss:$8 sm:$0xf] %vm42, %v41
    %v45 = vld [vmem:[#allocation0] sm:$0xf]
    %46 = vrot.lane.b32.xlu0 %v45, 121
    %v47 = vpop.permute.xlu0 %46
    %vm48 = vcmask 7168
    %s49 = scalar_lea.vmem %s1, 7
    %50 = vst.msk [vmem:[%s49] ss:$8 sm:$0xf] %vm48, %v47

// kernel: vit_decoder_stage4_forward.7
$region0: #{vit_decoder_stage4_forward.7}
  #allocation0 [shape = 'u32[]', space=smem, size = 0x4, offset = 0x4, fixed_abs, tag = 'smem constant byte address 0x4 - core index']
  #allocation1 [shape = 'u32[72,128]{1,0:T(1,128)}', space=vmem, size = 0x9000, scoped, tag = 'internal scratch']
  %s0 = inlined_call_operand.vmem [shape: bf16[2,64,384], index: 0, kind: input, shape index: {}]
  %s1 = inlined_call_operand.vmem [shape: bf16[32,64], index: 1, kind: input, shape index: {}]
  %s2 = inlined_call_operand.vmem [shape: f32[32,1], index: 2, kind: input, shape index: {}]
  %s3 = inlined_call_operand.vmem [shape: f32[32,1], index: 3, kind: input, shape index: {}]
  %s4 = inlined_call_operand.vmem [shape: f32[32,1], index: 4, kind: input, shape index: {}]
  %s5 = inlined_call_operand.vmem [shape: f32[2,32,384], index: 5, kind: output, shape index: {0}]
  %s6 = inlined_call_operand.vmem [shape: bf16[2,32,384], index: 6, kind: output, shape index: {1}]
  %7 = xla_tuple %s5, %s6
  %s8 = sld [smem:[#allocation0]]
  $region61: #{vit_decoder_stage4_forward.7} parent=0
    _
  %s10 = ssub.s32 1, %s8
  %s11 = scalar_select 0, %s10, %s8
  loop: start=0, step=1, limit=4
  $region2: #{vit_decoder_stage4_forward.7} parent=0 // loop_pre_header
    _
  $region3: #{vit_decoder_stage4_forward.7} parent=0 // loop_header
    %s13 = sphi 0, %s17
    %p14 = scmp.ge.s32.totalorder %s13, 4
    %s20 = sphi 0, %s32
    %s21 = sphi 0, %s28
    %s22 = sphi 0, %s20
    %s23 = sphi 0, %s21
    %s24 = sphi 0, %s22
    %s25 = sphi 0, %s23
    %s37 = sphi 0, %s39
    %s40 = sphi 0, %s37
    %s41 = sphi 0, %s40
    %s57 = sphi 0, %s41
    %s61 = sphi 0, %s61
    %s63 = sphi 0, %s61
    %s64 = sphi 0, %s63
    %s78 = sphi 0, %s64
    %s82 = sphi 0, %s82
    %s84 = sphi 0, %s82
    %s85 = sphi 0, %s84
    %s99 = sphi 0, %s85
    %s103 = sphi 0, %s103
    %s105 = sphi 0, %s103
    %s106 = sphi 0, %s105
    %s120 = sphi 0, %s106
    %s124 = sphi 0, %s124
    %s126 = sphi 0, %s124
    %s127 = sphi 0, %s126
    %s141 = sphi 0, %s127
    %s149 = sphi 0, %s151
    %s152 = sphi 0, %s149
    %s153 = sphi 0, %s152
    %s169 = sphi 0, %s153
    %s177 = sphi 0, %s179
    %s180 = sphi 0, %s177
    %s181 = sphi 0, %s180
    %s197 = sphi 0, %s181
  $region4: #{vit_decoder_stage4_forward.7} parent=0 // loop_header_branch
    %16 = sbr.rel (%p14) target = $region8
  $region5: #{vit_decoder_stage4_forward.7} parent=0 // loop_body
    %s18 = ssub.s32 %s13, 1
    %s19 = ssub.s32 %s13, 2
    %s26 = sadd.s32 1, %s21
    %p27 = scmp.ge.s32.totalorder %s26, 1
    %s28 = scalar_select %p27, 0, %s26
    %s29 = sadd.s32 1, %s20
    %s30 = scalar_select %p27, %s29, %s20
    %p31 = scmp.ge.s32.totalorder %s30, 2
    %s32 = scalar_select %p31, 0, %s30
    %s33 = ssub.s32 %s20, %s32
    %s34 = ssub.s32 %s21, %s28
    %s35 = sor.u32 %s33, %s34
    %p36 = scmp.eq.s32.totalorder %s35, 0
    %s38 = sadd.s32 %s37, 1
    %s39 = scalar_select %p36, %s37, %s38
    %p42 = pneg %p36
    %p43 = scmp.eq.s32.totalorder %s13, 1
    %p44 = por %p42, %p43
    %p45 = scmp.ne.s32.totalorder %s37, %s40
    %p46 = scmp.eq.s32.totalorder %s13, 0
    %p47 = por %p45, %p46
    %p48 = scmp.ne.s32.totalorder %s37, %s40
    %p49 = scmp.eq.s32.totalorder %s18, 1
    %p50 = por %p48, %p49
    %p51 = scmp.ne.s32.totalorder %s40, %s41
    %p52 = scmp.eq.s32.totalorder %s18, 0
    %p53 = por %p51, %p52
    %p54 = scmp.ne.s32.totalorder %s40, %s41
    %p55 = scmp.eq.s32.totalorder %s19, 1
    %p56 = por %p54, %p55
    %p58 = scmp.ne.s32.totalorder %s41, %s57
    %p59 = scmp.eq.s32.totalorder %s19, 0
    %p60 = por %p58, %p59
    %s62 = sadd.s32 %s61, 1
    %p65 = scmp.eq.s32.totalorder %s13, 1
    %p66 = scmp.ne.s32.totalorder %s61, %s63
    %p67 = scmp.eq.s32.totalorder %s13, 0
    %p68 = por %p66, %p67
    %p69 = scmp.ne.s32.totalorder %s61, %s63
    %p70 = scmp.eq.s32.totalorder %s18, 1
    %p71 = por %p69, %p70
    %p72 = scmp.ne.s32.totalorder %s63, %s64
    %p73 = scmp.eq.s32.totalorder %s18, 0
    %p74 = por %p72, %p73
    %p75 = scmp.ne.s32.totalorder %s63, %s64
    %p76 = scmp.eq.s32.totalorder %s19, 1
    %p77 = por %p75, %p76
    %p79 = scmp.ne.s32.totalorder %s64, %s78
    %p80 = scmp.eq.s32.totalorder %s19, 0
    %p81 = por %p79, %p80
    %s83 = sadd.s32 %s82, 1
    %p86 = scmp.eq.s32.totalorder %s13, 1
    %p87 = scmp.ne.s32.totalorder %s82, %s84
    %p88 = scmp.eq.s32.totalorder %s13, 0
    %p89 = por %p87, %p88
    %p90 = scmp.ne.s32.totalorder %s82, %s84
    %p91 = scmp.eq.s32.totalorder %s18, 1
    %p92 = por %p90, %p91
    %p93 = scmp.ne.s32.totalorder %s84, %s85
    %p94 = scmp.eq.s32.totalorder %s18, 0
    %p95 = por %p93, %p94
    %p96 = scmp.ne.s32.totalorder %s84, %s85
    %p97 = scmp.eq.s32.totalorder %s19, 1
    %p98 = por %p96, %p97
    %p100 = scmp.ne.s32.totalorder %s85, %s99
    %p101 = scmp.eq.s32.totalorder %s19, 0
    %p102 = por %p100, %p101
    %s104 = sadd.s32 %s103, 1
    %p107 = scmp.eq.s32.totalorder %s13, 1
    %p108 = scmp.ne.s32.totalorder %s103, %s105
    %p109 = scmp.eq.s32.totalorder %s13, 0
    %p110 = por %p108, %p109
    %p111 = scmp.ne.s32.totalorder %s103, %s105
    %p112 = scmp.eq.s32.totalorder %s18, 1
    %p113 = por %p111, %p112
    %p114 = scmp.ne.s32.totalorder %s105, %s106
    %p115 = scmp.eq.s32.totalorder %s18, 0
    %p116 = por %p114, %p115
    %p117 = scmp.ne.s32.totalorder %s105, %s106
    %p118 = scmp.eq.s32.totalorder %s19, 1
    %p119 = por %p117, %p118
    %p121 = scmp.ne.s32.totalorder %s106, %s120
    %p122 = scmp.eq.s32.totalorder %s19, 0
    %p123 = por %p121, %p122
    %s125 = sadd.s32 %s124, 1
    %p128 = scmp.eq.s32.totalorder %s13, 1
    %p129 = scmp.ne.s32.totalorder %s124, %s126
    %p130 = scmp.eq.s32.totalorder %s13, 0
    %p131 = por %p129, %p130
    %p132 = scmp.ne.s32.totalorder %s124, %s126
    %p133 = scmp.eq.s32.totalorder %s18, 1
    %p134 = por %p132, %p133
    %p135 = scmp.ne.s32.totalorder %s126, %s127
    %p136 = scmp.eq.s32.totalorder %s18, 0
    %p137 = por %p135, %p136
    %p138 = scmp.ne.s32.totalorder %s126, %s127
    %p139 = scmp.eq.s32.totalorder %s19, 1
    %p140 = por %p138, %p139
    %p142 = scmp.ne.s32.totalorder %s127, %s141
    %p143 = scmp.eq.s32.totalorder %s19, 0
    %p144 = por %p142, %p143
    %s145 = ssub.s32 %s20, %s32
    %s146 = ssub.s32 %s21, %s28
    %s147 = sor.u32 %s145, %s146
    %p148 = scmp.eq.s32.totalorder %s147, 0
    %s150 = sadd.s32 %s149, 1
    %s151 = scalar_select %p148, %s149, %s150
    %p154 = pneg %p148
    %p155 = scmp.eq.s32.totalorder %s13, 1
    %p156 = por %p154, %p155
    %p157 = scmp.ne.s32.totalorder %s149, %s152
    %p158 = scmp.eq.s32.totalorder %s13, 0
    %p159 = por %p157, %p158
    %p160 = scmp.ne.s32.totalorder %s149, %s152
    %p161 = scmp.eq.s32.totalorder %s18, 1
    %p162 = por %p160, %p161
    %p163 = scmp.ne.s32.totalorder %s152, %s153
    %p164 = scmp.eq.s32.totalorder %s18, 0
    %p165 = por %p163, %p164
    %p166 = scmp.ne.s32.totalorder %s152, %s153
    %p167 = scmp.eq.s32.totalorder %s19, 1
    %p168 = por %p166, %p167
    %p170 = scmp.ne.s32.totalorder %s153, %s169
    %p171 = scmp.eq.s32.totalorder %s19, 0
    %p172 = por %p170, %p171
    %s173 = ssub.s32 %s20, %s32
    %s174 = ssub.s32 %s21, %s28
    %s175 = sor.u32 %s173, %s174
    %p176 = scmp.eq.s32.totalorder %s175, 0
    %s178 = sadd.s32 %s177, 1
    %s179 = scalar_select %p176, %s177, %s178
    %p182 = pneg %p176
    %p183 = scmp.eq.s32.totalorder %s13, 1
    %p184 = por %p182, %p183
    %p185 = scmp.ne.s32.totalorder %s177, %s180
    %p186 = scmp.eq.s32.totalorder %s13, 0
    %p187 = por %p185, %p186
    %p188 = scmp.ne.s32.totalorder %s177, %s180
    %p189 = scmp.eq.s32.totalorder %s18, 1
    %p190 = por %p188, %p189
    %p191 = scmp.ne.s32.totalorder %s180, %s181
    %p192 = scmp.eq.s32.totalorder %s18, 0
    %p193 = por %p191, %p192
    %p194 = scmp.ne.s32.totalorder %s180, %s181
    %p195 = scmp.eq.s32.totalorder %s19, 1
    %p196 = por %p194, %p195
    %p198 = scmp.ne.s32.totalorder %s181, %s197
    %p199 = scmp.eq.s32.totalorder %s19, 0
    %p200 = por %p198, %p199
    %p201 = scmp.le.s32.totalorder 1, %s13
    %p202 = scmp.lt.s32.totalorder %s13, 3
    %p203 = pnand %p201, %p202
    %p204 = pneg %p203
    // Predicated region
    $region9: #{vit_decoder_stage4_forward.7} parent=5 // pred_check
      _
    $region10: #{vit_decoder_stage4_forward.7} parent=5 // pred_check_branch
      %206 = sbr.rel (%p203) target = $region12
    $region11: #{vit_decoder_stage4_forward.7} parent=5 // pred_region
      %s207 = ssub.s32 %s13, 1
      // Predicated region
      $region13: #{vit_decoder_stage4_forward.7} parent=11 // pred_check
        %p208 = pneg %p74
      $region14: #{vit_decoder_stage4_forward.7} parent=11 // pred_check_branch
        %210 = sbr.rel (%p208) target = $region16
      $region15: #{vit_decoder_stage4_forward.7} parent=11 // pred_region
        _
      $region16: #{vit_decoder_stage4_forward.7} parent=11 // pred_fallthru
        _
      // Predicated region
      $region17: #{vit_decoder_stage4_forward.7} parent=11 // pred_check
        %p211 = pneg %p95
      $region18: #{vit_decoder_stage4_forward.7} parent=11 // pred_check_branch
        %213 = sbr.rel (%p211) target = $region20
      $region19: #{vit_decoder_stage4_forward.7} parent=11 // pred_region
        _
      $region20: #{vit_decoder_stage4_forward.7} parent=11 // pred_fallthru
        _
      // Predicated region
      $region21: #{vit_decoder_stage4_forward.7} parent=11 // pred_check
        %p214 = pneg %p116
      $region22: #{vit_decoder_stage4_forward.7} parent=11 // pred_check_branch
        %216 = sbr.rel (%p214) target = $region24
      $region23: #{vit_decoder_stage4_forward.7} parent=11 // pred_region
        _
      $region24: #{vit_decoder_stage4_forward.7} parent=11 // pred_fallthru
        _
      // Predicated region
      $region25: #{vit_decoder_stage4_forward.7} parent=11 // pred_check
        %p217 = pneg %p137
      $region26: #{vit_decoder_stage4_forward.7} parent=11 // pred_check_branch
        %219 = sbr.rel (%p217) target = $region28
      $region27: #{vit_decoder_stage4_forward.7} parent=11 // pred_region
        _
      $region28: #{vit_decoder_stage4_forward.7} parent=11 // pred_fallthru
        _
    $region12: #{vit_decoder_stage4_forward.7} parent=5 // pred_fallthru
      _
    %p220 = scmp.lt.s32.totalorder %s13, 2
    // Predicated region
    $region29: #{vit_decoder_stage4_forward.7} parent=5 // pred_check
      %p221 = pneg %p220
    $region30: #{vit_decoder_stage4_forward.7} parent=5 // pred_check_branch
      %223 = sbr.rel (%p221) target = $region32
    $region31: #{vit_decoder_stage4_forward.7} parent=5 // pred_region
      // Predicated region
      $region33: #{vit_decoder_stage4_forward.7} parent=31 // pred_check
        %p224 = pneg %p47
      $region34: #{vit_decoder_stage4_forward.7} parent=31 // pred_check_branch
        %226 = sbr.rel (%p224) target = $region36
      $region35: #{vit_decoder_stage4_forward.7} parent=31 // pred_region
        %s227 = smul.u32 3, %s21
        %p228 = scmp.lt.s32.totalorder %s20, 1
        %s229 = scalar_select %p228, %s20, 1
        %p230 = scmp.lt.s32.totalorder %s227, 2
        %s231 = scalar_select %p230, %s227, 2
        %s232 = smul.addr %s229, 24
        %s233 = sadd.s32 %s231, %s232
        %s234 = smul.addr %s233, 4
        %s235 = scalar_lea.vmem %s0, %s234
        %s236 = smul.u32 3, %s21
      $region36: #{vit_decoder_stage4_forward.7} parent=31 // pred_fallthru
        _
    $region32: #{vit_decoder_stage4_forward.7} parent=5 // pred_fallthru
      _
    %p237 = scmp.le.s32.totalorder 1, %s13
    %p238 = scmp.lt.s32.totalorder %s13, 3
    %p239 = pnand %p237, %p238
    %p240 = pneg %p239
    // Predicated region
    $region37: #{vit_decoder_stage4_forward.7} parent=5 // pred_check
      _
    $region38: #{vit_decoder_stage4_forward.7} parent=5 // pred_check_branch
      %242 = sbr.rel (%p239) target = $region40
    $region39: #{vit_decoder_stage4_forward.7} parent=5 // pred_region
      %s243 = ssub.s32 %s13, 1
      %s244 = smul.u32 3, %s23
      %p245 = scmp.lt.s32.totalorder %s22, 1
      %s246 = scalar_select %p245, %s22, 1
      %p247 = scmp.lt.s32.totalorder %s244, 2
      %s248 = scalar_select %p247, %s244, 2
      %s249 = smul.addr %s246, 24
      %s250 = sadd.s32 %s248, %s249
      %s251 = smul.addr %s250, 4
      %s252 = scalar_lea.vmem %s0, %s251
      %p253 = pneg %p53
      %p254 = pneg %p50
      %p255 = pneg %p74
      %p256 = pneg %p71
      %p257 = pneg %p95
      %p258 = pneg %p92
      %p259 = pneg %p116
      %p260 = pneg %p113
      %p261 = pneg %p137
      %p262 = pneg %p134
      %p263 = pneg %p165
      %p264 = pneg %p162
      %s265 = smul.u32 3, %s23
      %p266 = scmp.lt.s32.totalorder %s22, 1
      %s267 = scalar_select %p266, %s22, 1
      %p268 = scmp.lt.s32.totalorder %s265, 2
      %s269 = scalar_select %p268, %s265, 2
      %s270 = smul.addr %s267, 12
      %s271 = sadd.s32 %s269, %s270
      %s272 = smul.addr %s271, 8
      %s273 = scalar_lea.vmem %s5, %s272
      %p274 = pneg %p193
      %p275 = pneg %p190
      %s276 = smul.u32 3, %s23
      %p277 = scmp.lt.s32.totalorder %s22, 1
      %s278 = scalar_select %p277, %s22, 1
      %p279 = scmp.lt.s32.totalorder %s276, 2
      %s280 = scalar_select %p279, %s276, 2
      %s281 = smul.addr %s278, 12
      %s282 = sadd.s32 %s280, %s281
      %s283 = smul.addr %s282, 4
      %s284 = scalar_lea.vmem %s6, %s283
      %s285 = smul.u32 3, %s23
      %p286 = scmp.lt.s32.totalorder %s22, 1
      %s287 = scalar_select %p286, %s22, 1
      %p288 = scmp.lt.s32.totalorder %s285, 2
      %s289 = scalar_select %p288, %s285, 2
      %s290 = smul.addr %s287, 24
      %s291 = sadd.s32 %s289, %s290
      %s292 = smul.addr %s291, 4
      %s293 = scalar_lea.vmem %s0, %s292
      %s294 = smul.u32 3, %s23
      %s295 = smul.u32 3, %s23
      %p296 = scmp.lt.s32.totalorder %s22, 1
      %s297 = scalar_select %p296, %s22, 1
      %p298 = scmp.lt.s32.totalorder %s295, 2
      %s299 = scalar_select %p298, %s295, 2
      %s300 = smul.addr %s297, 12
      %s301 = sadd.s32 %s299, %s300
      %s302 = smul.addr %s301, 8
      %s303 = scalar_lea.vmem %s5, %s302
      %s304 = smul.u32 3, %s23
      %s305 = smul.u32 3, %s23
      %p306 = scmp.lt.s32.totalorder %s22, 1
      %s307 = scalar_select %p306, %s22, 1
      %p308 = scmp.lt.s32.totalorder %s305, 2
      %s309 = scalar_select %p308, %s305, 2
      %s310 = smul.addr %s307, 12
      %s311 = sadd.s32 %s309, %s310
      %s312 = smul.addr %s311, 4
      %s313 = scalar_lea.vmem %s6, %s312
      %s314 = smul.u32 3, %s23
      %v316 = vld [vmem:[%s1] sm:$0xf]
      %v317 = vld [vmem:[%s1 + $0x4] sm:$0xf]
      %v318 = vld [vmem:[%s1 + $0x8] sm:$0xf]
      %v319 = vld [vmem:[%s1 + $0xc] sm:$0xf]
      %v320 = vld [vmem:[%s293] sm:$0xff]
      %v321 = vld [vmem:[%s293 + $0x8] sm:$0xf]
      %v322 = vld [vmem:[%s293 + $0xc] sm:$0xff]
      %v323 = vld [vmem:[%s293 + $0x14] sm:$0xf]
      %v324 = vld [vmem:[%s293 + $0x18] sm:$0xff]
      %v325 = vld [vmem:[%s293 + $0x20] sm:$0xf]
      %v326 = vld [vmem:[%s293 + $0x24] sm:$0xff]
      %v327 = vld [vmem:[%s293 + $0x2c] sm:$0xf]
      %v328 = vld [vmem:[%s293 + $0x30] sm:$0xff]
      %v329 = vld [vmem:[%s293 + $0x38] sm:$0xf]
      %v330 = vld [vmem:[%s293 + $0x3c] sm:$0xff]
      %v331 = vld [vmem:[%s293 + $0x44] sm:$0xf]
      %v332 = vld [vmem:[%s293 + $0x48] sm:$0xff]
      %v333 = vld [vmem:[%s293 + $0x50] sm:$0xf]
      %v334 = vld [vmem:[%s293 + $0x54] sm:$0xff]
      %v335 = vld [vmem:[%s293 + $0x5c] sm:$0xf]
      %v336 = vld [vmem:[%s2] sm:$0xff]
      %v337 = vld [vmem:[%s2 + $0x8] sm:$0xff]
      %v338 = vld [vmem:[%s2 + $0x10] sm:$0xff]
      %v339 = vld [vmem:[%s2 + $0x18] sm:$0xff]
      %341 = vset.pattern.permute.xlu0 0
      %342 = vperm.xlu0 %341, %v336
      %v343 = vpop.permute.xlu0 %342
      %346 = vset.pattern.permute.xlu0 0
      %347 = vperm.xlu0 %346, %v337
      %v348 = vpop.permute.xlu0 %347
      %351 = vset.pattern.permute.xlu0 0
      %352 = vperm.xlu0 %351, %v338
      %v353 = vpop.permute.xlu0 %352
      %356 = vset.pattern.permute.xlu0 0
      %357 = vperm.xlu0 %356, %v339
      %v358 = vpop.permute.xlu0 %357
      %v364 = vunpack.c.l.b16 %v316
      %v365 = vunpack.c.l.b16 %v317
      %v366 = vunpack.c.l.b16 %v318
      %v367 = vunpack.c.l.b16 %v319
      %v368 = vpack.c.b16 %v365, %v364
      %v369 = vpack.c.b16 %v367, %v366
      %v386 = vunpack.c.l.b16 %v320
      %v387 = vunpack.c.h.b16 %v320
      %v388 = vunpack.c.l.b16 %v321
      %v389 = vunpack.c.l.b16 %v322
      %v390 = vunpack.c.h.b16 %v322
      %v391 = vunpack.c.l.b16 %v323
      %v392 = vunpack.c.l.b16 %v324
      %v393 = vunpack.c.h.b16 %v324
      %v394 = vunpack.c.l.b16 %v325
      %v395 = vunpack.c.l.b16 %v326
      %v396 = vunpack.c.h.b16 %v326
      %v397 = vunpack.c.l.b16 %v327
      %v398 = vunpack.c.l.b16 %v328
      %v399 = vunpack.c.h.b16 %v328
      %v400 = vunpack.c.l.b16 %v329
      %v401 = vunpack.c.l.b16 %v330
      %v402 = vunpack.c.h.b16 %v330
      %v403 = vunpack.c.l.b16 %v331
      %v404 = vunpack.c.l.b16 %v332
      %v405 = vunpack.c.h.b16 %v332
      %v406 = vunpack.c.l.b16 %v333
      %v407 = vunpack.c.l.b16 %v334
      %v408 = vunpack.c.h.b16 %v334
      %v409 = vunpack.c.l.b16 %v335
      %v410 = vpack.c.b16 %v389, %v386
      %v411 = vpack.c.b16 %v390, %v387
      %v412 = vpack.c.b16 %v391, %v388
      %v413 = vpack.c.b16 %v395, %v392
      %v414 = vpack.c.b16 %v396, %v393
      %v415 = vpack.c.b16 %v397, %v394
      %v416 = vpack.c.b16 %v401, %v398
      %v417 = vpack.c.b16 %v402, %v399
      %v418 = vpack.c.b16 %v403, %v400
      %v419 = vpack.c.b16 %v407, %v404
      %v420 = vpack.c.b16 %v408, %v405
      %v421 = vpack.c.b16 %v409, %v406
      %vm434 = vcmask 523264
      %v436 = vsel %vm434, %v368, 0
      %v439 = vsel %vm434, %v369, 0
      %441 = vmatpush.bf16.msra.mxu0 0
      %442 = vmatpush.bf16.msra.mxu0 0
      %443 = vmatpush.bf16.msra.mxu0 0
      %444 = vmatpush.bf16.msra.mxu0 0
      %445 = vmatpush.bf16.msra.mxu0 %v419
      %446 = vmatpush.bf16.msra.mxu0 %v416
      %447 = vmatpush.bf16.msra.mxu0 %v413
      %448 = vmatpush.bf16.msra.mxu0 %v410
      %449 = vmatmul.bf16.gmra.mxu0 %v436
      %v450 = vpop.f32.mrf.mxu0
      %v451 = vadd.f32 %v343, %v450
      %v452 = vpop.f32.mrf.mxu0
      %v453 = vadd.f32 %v348, %v452
      %454 = vmatmul.bf16.gmra.mxu0 %v439
      %v455 = vpop.f32.mrf.mxu0
      %v456 = vadd.f32 %v353, %v455
      %v457 = vpop.f32.mrf.mxu0
      %v458 = vadd.f32 %v358, %v457
      %459 = vdwg.mxu0
      %460 = vmatpush.bf16.msra.mxu0 0
      %461 = vmatpush.bf16.msra.mxu0 0
      %462 = vmatpush.bf16.msra.mxu0 0
      %463 = vmatpush.bf16.msra.mxu0 0
      %464 = vmatpush.bf16.msra.mxu0 %v420
      %465 = vmatpush.bf16.msra.mxu0 %v417
      %466 = vmatpush.bf16.msra.mxu0 %v414
      %467 = vmatpush.bf16.msra.mxu0 %v411
      %468 = vmatmul.bf16.gmra.mxu0 %v436
      %v469 = vpop.f32.mrf.mxu0
      %v470 = vadd.f32 %v343, %v469
      %v471 = vpop.f32.mrf.mxu0
      %v472 = vadd.f32 %v348, %v471
      %473 = vmatmul.bf16.gmra.mxu0 %v439
      %v474 = vpop.f32.mrf.mxu0
      %v475 = vadd.f32 %v353, %v474
      %v476 = vpop.f32.mrf.mxu0
      %v477 = vadd.f32 %v358, %v476
      %478 = vdwg.mxu0
      %479 = vmatpush.bf16.msra.mxu0 0
      %480 = vmatpush.bf16.msra.mxu0 0
      %481 = vmatpush.bf16.msra.mxu0 0
      %482 = vmatpush.bf16.msra.mxu0 0
      %483 = vmatpush.bf16.msra.mxu0 %v421
      %484 = vmatpush.bf16.msra.mxu0 %v418
      %485 = vmatpush.bf16.msra.mxu0 %v415
      %486 = vmatpush.bf16.msra.mxu0 %v412
      %487 = vmatmul.bf16.gmra.mxu0 %v436
      %v488 = vpop.f32.mrf.mxu0
      %v489 = vadd.f32 %v343, %v488
      %v490 = vpop.f32.mrf.mxu0
      %v491 = vadd.f32 %v348, %v490
      %492 = vmatmul.bf16.gmra.mxu0 %v439
      %v493 = vpop.f32.mrf.mxu0
      %v494 = vadd.f32 %v353, %v493
      %v495 = vpop.f32.mrf.mxu0
      %v496 = vadd.f32 %v358, %v495
      %497 = vdwg.mxu0
      %498 = vst [vmem:[%s303] sm:$0xff] %v451
      %499 = vst [vmem:[%s303 + $0x8] sm:$0xff] %v470
      %500 = vst [vmem:[%s303 + $0x10] sm:$0xff] %v489
      %501 = vst [vmem:[%s303 + $0x18] sm:$0xff] %v453
      %502 = vst [vmem:[%s303 + $0x20] sm:$0xff] %v472
      %503 = vst [vmem:[%s303 + $0x28] sm:$0xff] %v491
      %504 = vst [vmem:[%s303 + $0x30] sm:$0xff] %v456
      %505 = vst [vmem:[%s303 + $0x38] sm:$0xff] %v475
      %506 = vst [vmem:[%s303 + $0x40] sm:$0xff] %v494
      %507 = vst [vmem:[%s303 + $0x48] sm:$0xff] %v458
      %508 = vst [vmem:[%s303 + $0x50] sm:$0xff] %v477
      %509 = vst [vmem:[%s303 + $0x58] sm:$0xff] %v496
      %v510 = vld [vmem:[%s3] sm:$0xff]
      %v511 = vld [vmem:[%s3 + $0x8] sm:$0xff]
      %v512 = vld [vmem:[%s3 + $0x10] sm:$0xff]
      %v513 = vld [vmem:[%s3 + $0x18] sm:$0xff]
      %515 = vset.pattern.permute.xlu0 0
      %516 = vperm.xlu0 %515, %v510
      %v517 = vpop.permute.xlu0 %516
      %520 = vset.pattern.permute.xlu0 0
      %521 = vperm.xlu0 %520, %v511
      %v522 = vpop.permute.xlu0 %521
      %525 = vset.pattern.permute.xlu0 0
      %526 = vperm.xlu0 %525, %v512
      %v527 = vpop.permute.xlu0 %526
      %530 = vset.pattern.permute.xlu0 0
      %531 = vperm.xlu0 %530, %v513
      %v532 = vpop.permute.xlu0 %531
      %v534 = vmul.f32 %v451, %v517
      %v535 = vmul.f32 %v470, %v517
      %v536 = vmul.f32 %v489, %v517
      %v537 = vmul.f32 %v453, %v522
      %v538 = vmul.f32 %v472, %v522
      %v539 = vmul.f32 %v491, %v522
      %v540 = vmul.f32 %v456, %v527
      %v541 = vmul.f32 %v475, %v527
      %v542 = vmul.f32 %v494, %v527
      %v543 = vmul.f32 %v458, %v532
      %v544 = vmul.f32 %v477, %v532
      %v545 = vmul.f32 %v496, %v532
      %v546 = vld [vmem:[%s4] sm:$0xff]
      %v547 = vld [vmem:[%s4 + $0x8] sm:$0xff]
      %v548 = vld [vmem:[%s4 + $0x10] sm:$0xff]
      %v549 = vld [vmem:[%s4 + $0x18] sm:$0xff]
      %551 = vset.pattern.permute.xlu0 0
      %552 = vperm.xlu0 %551, %v546
      %v553 = vpop.permute.xlu0 %552
      %556 = vset.pattern.permute.xlu0 0
      %557 = vperm.xlu0 %556, %v547
      %v558 = vpop.permute.xlu0 %557
      %561 = vset.pattern.permute.xlu0 0
      %562 = vperm.xlu0 %561, %v548
      %v563 = vpop.permute.xlu0 %562
      %566 = vset.pattern.permute.xlu0 0
      %567 = vperm.xlu0 %566, %v549
      %v568 = vpop.permute.xlu0 %567
      %v570 = vadd.f32 %v534, %v553
      %v571 = vadd.f32 %v535, %v553
      %v572 = vadd.f32 %v536, %v553
      %v573 = vadd.f32 %v537, %v558
      %v574 = vadd.f32 %v538, %v558
      %v575 = vadd.f32 %v539, %v558
      %v576 = vadd.f32 %v540, %v563
      %v577 = vadd.f32 %v541, %v563
      %v578 = vadd.f32 %v542, %v563
      %v579 = vadd.f32 %v543, %v568
      %v580 = vadd.f32 %v544, %v568
      %v581 = vadd.f32 %v545, %v568
      %v582 = vmul.f32 %v570, 0.5
      %v583 = vmul.f32 %v571, 0.5
      %v584 = vmul.f32 %v572, 0.5
      %v585 = vmul.f32 %v573, 0.5
      %v586 = vmul.f32 %v574, 0.5
      %v587 = vmul.f32 %v575, 0.5
      %v588 = vmul.f32 %v576, 0.5
      %v589 = vmul.f32 %v577, 0.5
      %v590 = vmul.f32 %v578, 0.5
      %v591 = vmul.f32 %v579, 0.5
      %v592 = vmul.f32 %v580, 0.5
      %v593 = vmul.f32 %v581, 0.5
      %v594 = vmul.f32 %v570, 0.044715
      %v595 = vmul.f32 %v571, 0.044715
      %v596 = vmul.f32 %v572, 0.044715
      %v597 = vmul.f32 %v573, 0.044715
      %v598 = vmul.f32 %v574, 0.044715
      %v599 = vmul.f32 %v575, 0.044715
      %v600 = vmul.f32 %v576, 0.044715
      %v601 = vmul.f32 %v577, 0.044715
      %v602 = vmul.f32 %v578, 0.044715
      %v603 = vmul.f32 %v579, 0.044715
      %v604 = vmul.f32 %v580, 0.044715
      %v605 = vmul.f32 %v581, 0.044715
      %v606 = vmul.f32 %v594, %v570
      %v607 = vmul.f32 %v595, %v571
      %v608 = vmul.f32 %v596, %v572
      %v609 = vmul.f32 %v597, %v573
      %v610 = vmul.f32 %v598, %v574
      %v611 = vmul.f32 %v599, %v575
      %v612 = vmul.f32 %v600, %v576
      %v613 = vmul.f32 %v601, %v577
      %v614 = vmul.f32 %v602, %v578
      %v615 = vmul.f32 %v603, %v579
      %v616 = vmul.f32 %v604, %v580
      %v617 = vmul.f32 %v605, %v581
      %v618 = vmul.f32 %v606, %v570
      %v619 = vmul.f32 %v607, %v571
      %v620 = vmul.f32 %v608, %v572
      %v621 = vmul.f32 %v609, %v573
      %v622 = vmul.f32 %v610, %v574
      %v623 = vmul.f32 %v611, %v575
      %v624 = vmul.f32 %v612, %v576
      %v625 = vmul.f32 %v613, %v577
      %v626 = vmul.f32 %v614, %v578
      %v627 = vmul.f32 %v615, %v579
      %v628 = vmul.f32 %v616, %v580
      %v629 = vmul.f32 %v617, %v581
      %v630 = vadd.f32 %v570, %v618
      %v631 = vadd.f32 %v571, %v619
      %v632 = vadd.f32 %v572, %v620
      %v633 = vadd.f32 %v573, %v621
      %v634 = vadd.f32 %v574, %v622
      %v635 = vadd.f32 %v575, %v623
      %v636 = vadd.f32 %v576, %v624
      %v637 = vadd.f32 %v577, %v625
      %v638 = vadd.f32 %v578, %v626
      %v639 = vadd.f32 %v579, %v627
      %v640 = vadd.f32 %v580, %v628
      %v641 = vadd.f32 %v581, %v629
      %v642 = vmul.f32 %v630, 0.7978846
      %v643 = vmul.f32 %v631, 0.7978846
      %v644 = vmul.f32 %v632, 0.7978846
      %v645 = vmul.f32 %v633, 0.7978846
      %v646 = vmul.f32 %v634, 0.7978846
      %v647 = vmul.f32 %v635, 0.7978846
      %v648 = vmul.f32 %v636, 0.7978846
      %v649 = vmul.f32 %v637, 0.7978846
      %v650 = vmul.f32 %v638, 0.7978846
      %v651 = vmul.f32 %v639, 0.7978846
      %v652 = vmul.f32 %v640, 0.7978846
      %v653 = vmul.f32 %v641, 0.7978846
      %v654 = vtanh.pop %v642
      %v655 = vtanh.pop %v643
      %v656 = vtanh.pop %v644
      %v657 = vtanh.pop %v645
      %v658 = vtanh.pop %v646
      %v659 = vtanh.pop %v647
      %v660 = vtanh.pop %v648
      %v661 = vtanh.pop %v649
      %v662 = vtanh.pop %v650
      %v663 = vtanh.pop %v651
      %v664 = vtanh.pop %v652
      %v665 = vtanh.pop %v653
      %v666 = vadd.f32 %v654, 1.0
      %v667 = vadd.f32 %v655, 1.0
      %v668 = vadd.f32 %v656, 1.0
      %v669 = vadd.f32 %v657, 1.0
      %v670 = vadd.f32 %v658, 1.0
      %v671 = vadd.f32 %v659, 1.0
      %v672 = vadd.f32 %v660, 1.0
      %v673 = vadd.f32 %v661, 1.0
      %v674 = vadd.f32 %v662, 1.0
      %v675 = vadd.f32 %v663, 1.0
      %v676 = vadd.f32 %v664, 1.0
      %v677 = vadd.f32 %v665, 1.0
      %v678 = vmul.f32 %v582, %v666
      %v679 = vmul.f32 %v583, %v667
      %v680 = vmul.f32 %v584, %v668
      %v681 = vmul.f32 %v585, %v669
      %v682 = vmul.f32 %v586, %v670
      %v683 = vmul.f32 %v587, %v671
      %v684 = vmul.f32 %v588, %v672
      %v685 = vmul.f32 %v589, %v673
      %v686 = vmul.f32 %v590, %v674
      %v687 = vmul.f32 %v591, %v675
      %v688 = vmul.f32 %v592, %v676
      %v689 = vmul.f32 %v593, %v677
      %v690 = vpack.c.bf16 %v679, %v678
      %v691 = vpack.c.bf16 %v680, %v680
      %v692 = vpack.c.bf16 %v682, %v681
      %v693 = vpack.c.bf16 %v683, %v683
      %v694 = vpack.c.bf16 %v685, %v684
      %v695 = vpack.c.bf16 %v686, %v686
      %v696 = vpack.c.bf16 %v688, %v687
      %v697 = vpack.c.bf16 %v689, %v689
      %698 = vst [vmem:[%s313] sm:$0xff] %v690
      %699 = vst [vmem:[%s313 + $0x8] sm:$0xf] %v691
      %700 = vst [vmem:[%s313 + $0xc] sm:$0xff] %v692
      %701 = vst [vmem:[%s313 + $0x14] sm:$0xf] %v693
      %702 = vst [vmem:[%s313 + $0x18] sm:$0xff] %v694
      %703 = vst [vmem:[%s313 + $0x20] sm:$0xf] %v695
      %704 = vst [vmem:[%s313 + $0x24] sm:$0xff] %v696
      %705 = vst [vmem:[%s313 + $0x2c] sm:$0xf] %v697
      %s706 = smul.u32 3, %s23
      %p707 = scmp.lt.s32.totalorder %s22, 1
      %s708 = scalar_select %p707, %s22, 1
      %p709 = scmp.lt.s32.totalorder %s706, 2
      %s710 = scalar_select %p709, %s706, 2
      %s711 = smul.addr %s708, 12
      %s712 = sadd.s32 %s710, %s711
      %s713 = smul.addr %s712, 8
      %s714 = scalar_lea.vmem %s5, %s713
      %s715 = smul.u32 3, %s23
      %p716 = scmp.lt.s32.totalorder %s22, 1
      %s717 = scalar_select %p716, %s22, 1
      %p718 = scmp.lt.s32.totalorder %s715, 2
      %s719 = scalar_select %p718, %s715, 2
      %s720 = smul.addr %s717, 12
      %s721 = sadd.s32 %s719, %s720
      %s722 = smul.addr %s721, 4
      %s723 = scalar_lea.vmem %s6, %s722
      // Predicated region
      $region41: #{vit_decoder_stage4_forward.7} parent=39 // pred_check
        %p724 = pneg %p162
      $region42: #{vit_decoder_stage4_forward.7} parent=39 // pred_check_branch
        %726 = sbr.rel (%p724) target = $region44
      $region43: #{vit_decoder_stage4_forward.7} parent=39 // pred_region
        %s727 = smul.u32 3, %s23
      $region44: #{vit_decoder_stage4_forward.7} parent=39 // pred_fallthru
        _
      // Predicated region
      $region45: #{vit_decoder_stage4_forward.7} parent=39 // pred_check
        %p728 = pneg %p190
      $region46: #{vit_decoder_stage4_forward.7} parent=39 // pred_check_branch
        %730 = sbr.rel (%p728) target = $region48
      $region47: #{vit_decoder_stage4_forward.7} parent=39 // pred_region
        %s731 = smul.u32 3, %s23
      $region48: #{vit_decoder_stage4_forward.7} parent=39 // pred_fallthru
        _
    $region40: #{vit_decoder_stage4_forward.7} parent=5 // pred_fallthru
      _
    %p732 = scmp.le.s32.totalorder 2, %s13
    // Predicated region
    $region49: #{vit_decoder_stage4_forward.7} parent=5 // pred_check
      %p733 = pneg %p732
    $region50: #{vit_decoder_stage4_forward.7} parent=5 // pred_check_branch
      %735 = sbr.rel (%p733) target = $region52
    $region51: #{vit_decoder_stage4_forward.7} parent=5 // pred_region
      %s736 = ssub.s32 %s13, 2
      // Predicated region
      $region53: #{vit_decoder_stage4_forward.7} parent=51 // pred_check
        %p737 = pneg %p168
      $region54: #{vit_decoder_stage4_forward.7} parent=51 // pred_check_branch
        %739 = sbr.rel (%p737) target = $region56
      $region55: #{vit_decoder_stage4_forward.7} parent=51 // pred_region
        %s740 = smul.u32 3, %s25
        %p741 = scmp.lt.s32.totalorder %s24, 1
        %s742 = scalar_select %p741, %s24, 1
        %p743 = scmp.lt.s32.totalorder %s740, 2
        %s744 = scalar_select %p743, %s740, 2
        %s745 = smul.addr %s742, 12
        %s746 = sadd.s32 %s744, %s745
        %s747 = smul.addr %s746, 8
        %s748 = scalar_lea.vmem %s5, %s747
      $region56: #{vit_decoder_stage4_forward.7} parent=51 // pred_fallthru
        _
      // Predicated region
      $region57: #{vit_decoder_stage4_forward.7} parent=51 // pred_check
        %p749 = pneg %p196
      $region58: #{vit_decoder_stage4_forward.7} parent=51 // pred_check_branch
        %751 = sbr.rel (%p749) target = $region60
      $region59: #{vit_decoder_stage4_forward.7} parent=51 // pred_region
        %s752 = smul.u32 3, %s25
        %p753 = scmp.lt.s32.totalorder %s24, 1
        %s754 = scalar_select %p753, %s24, 1
        %p755 = scmp.lt.s32.totalorder %s752, 2
        %s756 = scalar_select %p755, %s752, 2
        %s757 = smul.addr %s754, 12
        %s758 = sadd.s32 %s756, %s757
        %s759 = smul.addr %s758, 4
        %s760 = scalar_lea.vmem %s6, %s759
      $region60: #{vit_decoder_stage4_forward.7} parent=51 // pred_fallthru
        _
    $region52: #{vit_decoder_stage4_forward.7} parent=5 // pred_fallthru
      _
  $region6: #{vit_decoder_stage4_forward.7} parent=0 // loop_footer
    %s17 = sadd.s32 1, %s13
  $region7: #{vit_decoder_stage4_forward.7} parent=0 // loop_footer_branch
    %12 = sbr.rel target = $region3
  $region8: #{vit_decoder_stage4_forward.7} parent=0 // loop_exit
    _

// kernel: tile.66
$region0: #{tile.66}
  #allocation0 [shape = 's32[1]{0}', space=sflag, size = 0x4, scoped, tag = 'scoped memory for tile.66']
  %s0 = inlined_call_operand.vmem [shape: f32[4], index: 0, kind: input, shape index: {}]
  %s1 = inlined_call_operand.vmem [shape: f32[4,4], index: 1, kind: output, shape index: {}]
  // Predicated region
  $region2: #{tile.66} parent=0 // pred_check
    _
  $region3: #{tile.66} parent=0 // pred_check_branch
    %3 = sbr.rel (0) target = $region5
  $region4: #{tile.66} parent=0 // pred_region
    _
  $region5: #{tile.66} parent=0 // pred_fallthru
    _
  %v4 = vld [vmem:[%s0] ss:$0 sm:$0xff]
  %5 = vst [vmem:[%s1] sm:$0xf] %v4

// kernel: tile.6
$region0: #{tile.6}
  %s0 = inlined_call_operand.vmem [shape: f32[4,4], index: 0, kind: input, shape index: {}]
  %s1 = inlined_call_operand.vmem [shape: f32[16,1], index: 1, kind: output, shape index: {}]
  $region1: #{tile.6} parent=0
    #allocation0 [shape = 'u8[4096]{0}', space=vmem, size = 0x1000, scoped, tag = 'scoped mem for input reshape']
    %s3 = ssub.s32 16, 1
    %v4 = vld [vmem:[%s0] sm:%s3]
    %5 = vst [vmem:[#allocation0] sm:%s3] %v4
    %v6 = vld [vmem:[#allocation0] sm:$0xf]
    %vm7 = vcmask 7168
    %8 = vst.msk [vmem:[%s1] ss:$4 sm:$0xf] %vm7, %v6
    %v9 = vld [vmem:[#allocation0] sm:$0xf]
    %10 = vrot.lane.b32.xlu0 %v9, 127
    %v11 = vpop.permute.xlu0 %10
    %vm12 = vcmask 7168
    %s13 = scalar_lea.vmem %s1, 1
    %14 = vst.msk [vmem:[%s13] ss:$4 sm:$0xf] %vm12, %v11
    %v15 = vld [vmem:[#allocation0] sm:$0xf]
    %16 = vrot.lane.b32.xlu0 %v15, 126
    %v17 = vpop.permute.xlu0 %16
    %vm18 = vcmask 7168
    %s19 = scalar_lea.vmem %s1, 2
    %20 = vst.msk [vmem:[%s19] ss:$4 sm:$0xf] %vm18, %v17
    %v21 = vld [vmem:[#allocation0] sm:$0xf]
    %22 = vrot.lane.b32.xlu0 %v21, 125
    %v23 = vpop.permute.xlu0 %22
    %vm24 = vcmask 7168
    %s25 = scalar_lea.vmem %s1, 3
    %26 = vst.msk [vmem:[%s25] ss:$4 sm:$0xf] %vm24, %v23

// kernel: vit_decoder_stage4_forward.8
$region0: #{vit_decoder_stage4_forward.8}
  #allocation0 [shape = 'u32[]', space=smem, size = 0x4, offset = 0x4, fixed_abs, tag = 'smem constant byte address 0x4 - core index']
  #allocation1 [shape = 'u32[72,128]{1,0:T(1,128)}', space=vmem, size = 0x9000, scoped, tag = 'internal scratch']
  %s0 = inlined_call_operand.vmem [shape: bf16[2,32,1152], index: 0, kind: input, shape index: {}]
  %s1 = inlined_call_operand.vmem [shape: bf16[16,32], index: 1, kind: input, shape index: {}]
  %s2 = inlined_call_operand.vmem [shape: f32[16,1], index: 2, kind: input, shape index: {}]
  %s3 = inlined_call_operand.vmem [shape: f32[16,1], index: 3, kind: input, shape index: {}]
  %s4 = inlined_call_operand.vmem [shape: f32[16,1], index: 4, kind: input, shape index: {}]
  %s5 = inlined_call_operand.vmem [shape: f32[2,16,1152], index: 5, kind: output, shape index: {0}]
  %s6 = inlined_call_operand.vmem [shape: bf16[2,16,1152], index: 6, kind: output, shape index: {1}]
  %7 = xla_tuple %s5, %s6
  %s8 = sld [smem:[#allocation0]]
  $region128: #{vit_decoder_stage4_forward.8} parent=0
    _
  %s10 = ssub.s32 1, %s8
  %s11 = scalar_select 0, %s10, %s8
  $region1: #{vit_decoder_stage4_forward.8} parent=0
    #allocation2 [shape = 'u8[49152]{0}', space=vmem, size = 0xc000, scoped, tag = 'input window, operand 0']
    #allocation3 [shape = 'u8[49152]{0}', space=vmem, size = 0xc000, scoped, tag = 'output window, operand 0']
    #allocation4 [shape = 'u8[24576]{0}', space=vmem, size = 0x6000, scoped, tag = 'output window, operand 1']
    loop: start=0, step=1, limit=8
    $region2: #{vit_decoder_stage4_forward.8} parent=1 // loop_pre_header
      _
    $region3: #{vit_decoder_stage4_forward.8} parent=1 // loop_header
      %s13 = sphi 0, %s17
      %p14 = scmp.ge.s32.totalorder %s13, 8
      %s20 = sphi 0, %s32
      %s21 = sphi 0, %s28
      %s22 = sphi 0, %s20
      %s23 = sphi 0, %s21
      %s24 = sphi 0, %s22
      %s25 = sphi 0, %s23
      %s37 = sphi 0, %s39
      %s40 = sphi 0, %s37
      %s41 = sphi 0, %s40
      %s57 = sphi 0, %s41
      %s61 = sphi 0, %s61
      %s63 = sphi 0, %s61
      %s64 = sphi 0, %s63
      %s78 = sphi 0, %s64
      %s82 = sphi 0, %s82
      %s84 = sphi 0, %s82
      %s85 = sphi 0, %s84
      %s99 = sphi 0, %s85
      %s103 = sphi 0, %s103
      %s105 = sphi 0, %s103
      %s106 = sphi 0, %s105
      %s120 = sphi 0, %s106
      %s124 = sphi 0, %s124
      %s126 = sphi 0, %s124
      %s127 = sphi 0, %s126
      %s141 = sphi 0, %s127
      %s149 = sphi 0, %s151
      %s152 = sphi 0, %s149
      %s153 = sphi 0, %s152
      %s169 = sphi 0, %s153
      %s177 = sphi 0, %s179
      %s180 = sphi 0, %s177
      %s181 = sphi 0, %s180
      %s197 = sphi 0, %s181
    $region4: #{vit_decoder_stage4_forward.8} parent=1 // loop_header_branch
      %16 = sbr.rel (%p14) target = $region8
    $region5: #{vit_decoder_stage4_forward.8} parent=1 // loop_body
      %s18 = ssub.s32 %s13, 1
      %s19 = ssub.s32 %s13, 2
      %s26 = sadd.s32 1, %s21
      %p27 = scmp.ge.s32.totalorder %s26, 3
      %s28 = scalar_select %p27, 0, %s26
      %s29 = sadd.s32 1, %s20
      %s30 = scalar_select %p27, %s29, %s20
      %p31 = scmp.ge.s32.totalorder %s30, 2
      %s32 = scalar_select %p31, 0, %s30
      %s33 = ssub.s32 %s20, %s32
      %s34 = ssub.s32 %s21, %s28
      %s35 = sor.u32 %s33, %s34
      %p36 = scmp.eq.s32.totalorder %s35, 0
      %s38 = sadd.s32 %s37, 1
      %s39 = scalar_select %p36, %s37, %s38
      %p42 = pneg %p36
      %p43 = scmp.eq.s32.totalorder %s13, 5
      %p44 = por %p42, %p43
      %p45 = scmp.ne.s32.totalorder %s37, %s40
      %p46 = scmp.eq.s32.totalorder %s13, 0
      %p47 = por %p45, %p46
      %p48 = scmp.ne.s32.totalorder %s37, %s40
      %p49 = scmp.eq.s32.totalorder %s18, 5
      %p50 = por %p48, %p49
      %p51 = scmp.ne.s32.totalorder %s40, %s41
      %p52 = scmp.eq.s32.totalorder %s18, 0
      %p53 = por %p51, %p52
      %p54 = scmp.ne.s32.totalorder %s40, %s41
      %p55 = scmp.eq.s32.totalorder %s19, 5
      %p56 = por %p54, %p55
      %p58 = scmp.ne.s32.totalorder %s41, %s57
      %p59 = scmp.eq.s32.totalorder %s19, 0
      %p60 = por %p58, %p59
      %s62 = sadd.s32 %s61, 1
      %p65 = scmp.eq.s32.totalorder %s13, 5
      %p66 = scmp.ne.s32.totalorder %s61, %s63
      %p67 = scmp.eq.s32.totalorder %s13, 0
      %p68 = por %p66, %p67
      %p69 = scmp.ne.s32.totalorder %s61, %s63
      %p70 = scmp.eq.s32.totalorder %s18, 5
      %p71 = por %p69, %p70
      %p72 = scmp.ne.s32.totalorder %s63, %s64
      %p73 = scmp.eq.s32.totalorder %s18, 0
      %p74 = por %p72, %p73
      %p75 = scmp.ne.s32.totalorder %s63, %s64
      %p76 = scmp.eq.s32.totalorder %s19, 5
      %p77 = por %p75, %p76
      %p79 = scmp.ne.s32.totalorder %s64, %s78
      %p80 = scmp.eq.s32.totalorder %s19, 0
      %p81 = por %p79, %p80
      %s83 = sadd.s32 %s82, 1
      %p86 = scmp.eq.s32.totalorder %s13, 5
      %p87 = scmp.ne.s32.totalorder %s82, %s84
      %p88 = scmp.eq.s32.totalorder %s13, 0
      %p89 = por %p87, %p88
      %p90 = scmp.ne.s32.totalorder %s82, %s84
      %p91 = scmp.eq.s32.totalorder %s18, 5
      %p92 = por %p90, %p91
      %p93 = scmp.ne.s32.totalorder %s84, %s85
      %p94 = scmp.eq.s32.totalorder %s18, 0
      %p95 = por %p93, %p94
      %p96 = scmp.ne.s32.totalorder %s84, %s85
      %p97 = scmp.eq.s32.totalorder %s19, 5
      %p98 = por %p96, %p97
      %p100 = scmp.ne.s32.totalorder %s85, %s99
      %p101 = scmp.eq.s32.totalorder %s19, 0
      %p102 = por %p100, %p101
      %s104 = sadd.s32 %s103, 1
      %p107 = scmp.eq.s32.totalorder %s13, 5
      %p108 = scmp.ne.s32.totalorder %s103, %s105
      %p109 = scmp.eq.s32.totalorder %s13, 0
      %p110 = por %p108, %p109
      %p111 = scmp.ne.s32.totalorder %s103, %s105
      %p112 = scmp.eq.s32.totalorder %s18, 5
      %p113 = por %p111, %p112
      %p114 = scmp.ne.s32.totalorder %s105, %s106
      %p115 = scmp.eq.s32.totalorder %s18, 0
      %p116 = por %p114, %p115
      %p117 = scmp.ne.s32.totalorder %s105, %s106
      %p118 = scmp.eq.s32.totalorder %s19, 5
      %p119 = por %p117, %p118
      %p121 = scmp.ne.s32.totalorder %s106, %s120
      %p122 = scmp.eq.s32.totalorder %s19, 0
      %p123 = por %p121, %p122
      %s125 = sadd.s32 %s124, 1
      %p128 = scmp.eq.s32.totalorder %s13, 5
      %p129 = scmp.ne.s32.totalorder %s124, %s126
      %p130 = scmp.eq.s32.totalorder %s13, 0
      %p131 = por %p129, %p130
      %p132 = scmp.ne.s32.totalorder %s124, %s126
      %p133 = scmp.eq.s32.totalorder %s18, 5
      %p134 = por %p132, %p133
      %p135 = scmp.ne.s32.totalorder %s126, %s127
      %p136 = scmp.eq.s32.totalorder %s18, 0
      %p137 = por %p135, %p136
      %p138 = scmp.ne.s32.totalorder %s126, %s127
      %p139 = scmp.eq.s32.totalorder %s19, 5
      %p140 = por %p138, %p139
      %p142 = scmp.ne.s32.totalorder %s127, %s141
      %p143 = scmp.eq.s32.totalorder %s19, 0
      %p144 = por %p142, %p143
      %s145 = ssub.s32 %s20, %s32
      %s146 = ssub.s32 %s21, %s28
      %s147 = sor.u32 %s145, %s146
      %p148 = scmp.eq.s32.totalorder %s147, 0
      %s150 = sadd.s32 %s149, 1
      %s151 = scalar_select %p148, %s149, %s150
      %p154 = pneg %p148
      %p155 = scmp.eq.s32.totalorder %s13, 5
      %p156 = por %p154, %p155
      %p157 = scmp.ne.s32.totalorder %s149, %s152
      %p158 = scmp.eq.s32.totalorder %s13, 0
      %p159 = por %p157, %p158
      %p160 = scmp.ne.s32.totalorder %s149, %s152
      %p161 = scmp.eq.s32.totalorder %s18, 5
      %p162 = por %p160, %p161
      %p163 = scmp.ne.s32.totalorder %s152, %s153
      %p164 = scmp.eq.s32.totalorder %s18, 0
      %p165 = por %p163, %p164
      %p166 = scmp.ne.s32.totalorder %s152, %s153
      %p167 = scmp.eq.s32.totalorder %s19, 5
      %p168 = por %p166, %p167
      %p170 = scmp.ne.s32.totalorder %s153, %s169
      %p171 = scmp.eq.s32.totalorder %s19, 0
      %p172 = por %p170, %p171
      %s173 = ssub.s32 %s20, %s32
      %s174 = ssub.s32 %s21, %s28
      %s175 = sor.u32 %s173, %s174
      %p176 = scmp.eq.s32.totalorder %s175, 0
      %s178 = sadd.s32 %s177, 1
      %s179 = scalar_select %p176, %s177, %s178
      %p182 = pneg %p176
      %p183 = scmp.eq.s32.totalorder %s13, 5
      %p184 = por %p182, %p183
      %p185 = scmp.ne.s32.totalorder %s177, %s180
      %p186 = scmp.eq.s32.totalorder %s13, 0
      %p187 = por %p185, %p186
      %p188 = scmp.ne.s32.totalorder %s177, %s180
      %p189 = scmp.eq.s32.totalorder %s18, 5
      %p190 = por %p188, %p189
      %p191 = scmp.ne.s32.totalorder %s180, %s181
      %p192 = scmp.eq.s32.totalorder %s18, 0
      %p193 = por %p191, %p192
      %p194 = scmp.ne.s32.totalorder %s180, %s181
      %p195 = scmp.eq.s32.totalorder %s19, 5
      %p196 = por %p194, %p195
      %p198 = scmp.ne.s32.totalorder %s181, %s197
      %p199 = scmp.eq.s32.totalorder %s19, 0
      %p200 = por %p198, %p199
      %p201 = scmp.le.s32.totalorder 1, %s13
      %p202 = scmp.lt.s32.totalorder %s13, 7
      %p203 = pnand %p201, %p202
      %p204 = pneg %p203
      // Predicated region
      $region9: #{vit_decoder_stage4_forward.8} parent=5 // pred_check
        _
      $region10: #{vit_decoder_stage4_forward.8} parent=5 // pred_check_branch
        %206 = sbr.rel (%p203) target = $region12
      $region11: #{vit_decoder_stage4_forward.8} parent=5 // pred_region
        %s207 = ssub.s32 %s13, 1
        // Predicated region
        $region13: #{vit_decoder_stage4_forward.8} parent=11 // pred_check
          %p208 = pneg %p74
        $region14: #{vit_decoder_stage4_forward.8} parent=11 // pred_check_branch
          %210 = sbr.rel (%p208) target = $region16
        $region15: #{vit_decoder_stage4_forward.8} parent=11 // pred_region
          _
        $region16: #{vit_decoder_stage4_forward.8} parent=11 // pred_fallthru
          _
        // Predicated region
        $region17: #{vit_decoder_stage4_forward.8} parent=11 // pred_check
          %p211 = pneg %p95
        $region18: #{vit_decoder_stage4_forward.8} parent=11 // pred_check_branch
          %213 = sbr.rel (%p211) target = $region20
        $region19: #{vit_decoder_stage4_forward.8} parent=11 // pred_region
          _
        $region20: #{vit_decoder_stage4_forward.8} parent=11 // pred_fallthru
          _
        // Predicated region
        $region21: #{vit_decoder_stage4_forward.8} parent=11 // pred_check
          %p214 = pneg %p116
        $region22: #{vit_decoder_stage4_forward.8} parent=11 // pred_check_branch
          %216 = sbr.rel (%p214) target = $region24
        $region23: #{vit_decoder_stage4_forward.8} parent=11 // pred_region
          _
        $region24: #{vit_decoder_stage4_forward.8} parent=11 // pred_fallthru
          _
        // Predicated region
        $region25: #{vit_decoder_stage4_forward.8} parent=11 // pred_check
          %p217 = pneg %p137
        $region26: #{vit_decoder_stage4_forward.8} parent=11 // pred_check_branch
          %219 = sbr.rel (%p217) target = $region28
        $region27: #{vit_decoder_stage4_forward.8} parent=11 // pred_region
          _
        $region28: #{vit_decoder_stage4_forward.8} parent=11 // pred_fallthru
          _
      $region12: #{vit_decoder_stage4_forward.8} parent=5 // pred_fallthru
        _
      %p220 = scmp.lt.s32.totalorder %s13, 6
      // Predicated region
      $region29: #{vit_decoder_stage4_forward.8} parent=5 // pred_check
        %p221 = pneg %p220
      $region30: #{vit_decoder_stage4_forward.8} parent=5 // pred_check_branch
        %223 = sbr.rel (%p221) target = $region32
      $region31: #{vit_decoder_stage4_forward.8} parent=5 // pred_region
        // Predicated region
        $region33: #{vit_decoder_stage4_forward.8} parent=31 // pred_check
          %p224 = pneg %p47
        $region34: #{vit_decoder_stage4_forward.8} parent=31 // pred_check_branch
          %226 = sbr.rel (%p224) target = $region36
        $region35: #{vit_decoder_stage4_forward.8} parent=31 // pred_region
          %s227 = sand.u32 %s37, 1
          %s228 = sand.u32 %s37, 1
          %s229 = smul.addr %s228, 48
          %s230 = scalar_lea.vmem [#allocation2], %s229
          %s231 = smul.u32 3, %s21
          %s232 = smul.addr %s20, 36
          %s233 = sadd.s32 %s231, %s232
          %s234 = smul.addr %s233, 4
          %s235 = scalar_lea.vmem %s0, %s234
          // Predicated region
          $region37: #{vit_decoder_stage4_forward.8} parent=35 // pred_check
            _
          $region38: #{vit_decoder_stage4_forward.8} parent=35 // pred_check_branch
            %237 = sbr.rel (0) target = $region40
          $region39: #{vit_decoder_stage4_forward.8} parent=35 // pred_region
            // Predicated region
            $region41: #{vit_decoder_stage4_forward.8} parent=39 // pred_check
              _
            $region42: #{vit_decoder_stage4_forward.8} parent=39 // pred_check_branch
              %239 = sbr.rel (0) target = $region44
            $region43: #{vit_decoder_stage4_forward.8} parent=39 // pred_region
              %s240 = scalar_lea.vmem %s235, 8
              %s241 = scalar_lea.vmem %s230, 8 [#allocation2]
              loop: start=0, step=1, limit=1
              $region45: #{vit_decoder_stage4_forward.8} parent=43 // loop_pre_header
                _
              $region46: #{vit_decoder_stage4_forward.8} parent=43 // loop_header
                %s243 = sphi 0, %s247
                %p244 = scmp.ge.s32.totalorder %s243, 1
                %s248 = sphi %s235, %s235
                %s249 = sphi %s230, %s230
              $region47: #{vit_decoder_stage4_forward.8} parent=43 // loop_header_branch
                %246 = sbr.rel (%p244) target = $region51
              $region48: #{vit_decoder_stage4_forward.8} parent=43 // loop_body
                %v250 = vld [vmem:[%s248] sm:$0xff]
                %251 = vst [vmem:[%s249] sm:$0xff] %v250
                %v252 = vld [vmem:[%s248 + $0x24] sm:$0xff]
                %253 = vst [vmem:[%s249 + $0xc] sm:$0xff] %v252
                %v254 = vld [vmem:[%s248 + $0x48] sm:$0xff]
                %255 = vst [vmem:[%s249 + $0x18] sm:$0xff] %v254
                %v256 = vld [vmem:[%s248 + $0x6c] sm:$0xff]
                %257 = vst [vmem:[%s249 + $0x24] sm:$0xff] %v256
              $region49: #{vit_decoder_stage4_forward.8} parent=43 // loop_footer
                %s247 = sadd.s32 1, %s243
              $region50: #{vit_decoder_stage4_forward.8} parent=43 // loop_footer_branch
                %242 = sbr.rel target = $region46
              $region51: #{vit_decoder_stage4_forward.8} parent=43 // loop_exit
                _
              %s259 = ssub.s32 16, 1
              loop: start=0, step=1, limit=1
              $region52: #{vit_decoder_stage4_forward.8} parent=43 // loop_pre_header
                _
              $region53: #{vit_decoder_stage4_forward.8} parent=43 // loop_header
                %s261 = sphi 0, %s265
                %p262 = scmp.ge.s32.totalorder %s261, 1
                %s266 = sphi %s240, %s240
                %s267 = sphi %s241, %s241
              $region54: #{vit_decoder_stage4_forward.8} parent=43 // loop_header_branch
                %264 = sbr.rel (%p262) target = $region58
              $region55: #{vit_decoder_stage4_forward.8} parent=43 // loop_body
                %v268 = vld [vmem:[%s266] sm:%s259]
                %269 = vst [vmem:[%s267] sm:%s259] %v268
                %v270 = vld [vmem:[%s266 + $0x24] sm:%s259]
                %271 = vst [vmem:[%s267 + $0xc] sm:%s259] %v270
                %v272 = vld [vmem:[%s266 + $0x48] sm:%s259]
                %273 = vst [vmem:[%s267 + $0x18] sm:%s259] %v272
                %v274 = vld [vmem:[%s266 + $0x6c] sm:%s259]
                %275 = vst [vmem:[%s267 + $0x24] sm:%s259] %v274
              $region56: #{vit_decoder_stage4_forward.8} parent=43 // loop_footer
                %s265 = sadd.s32 1, %s261
              $region57: #{vit_decoder_stage4_forward.8} parent=43 // loop_footer_branch
                %260 = sbr.rel target = $region53
              $region58: #{vit_decoder_stage4_forward.8} parent=43 // loop_exit
                _
            $region44: #{vit_decoder_stage4_forward.8} parent=39 // pred_fallthru
              _
          $region40: #{vit_decoder_stage4_forward.8} parent=35 // pred_fallthru
            _
          %276 = vnop
        $region36: #{vit_decoder_stage4_forward.8} parent=31 // pred_fallthru
          _
      $region32: #{vit_decoder_stage4_forward.8} parent=5 // pred_fallthru
        _
      %p277 = scmp.le.s32.totalorder 1, %s13
      %p278 = scmp.lt.s32.totalorder %s13, 7
      %p279 = pnand %p277, %p278
      %p280 = pneg %p279
      // Predicated region
      $region59: #{vit_decoder_stage4_forward.8} parent=5 // pred_check
        _
      $region60: #{vit_decoder_stage4_forward.8} parent=5 // pred_check_branch
        %282 = sbr.rel (%p279) target = $region62
      $region61: #{vit_decoder_stage4_forward.8} parent=5 // pred_region
        %s283 = ssub.s32 %s13, 1
        %s284 = sand.u32 %s40, 1
        %s285 = sand.u32 %s40, 1
        %s286 = smul.addr %s285, 48
        %s287 = scalar_lea.vmem [#allocation2], %s286
        // Predicated region
        $region63: #{vit_decoder_stage4_forward.8} parent=61 // pred_check
          %p288 = pneg %p53
        $region64: #{vit_decoder_stage4_forward.8} parent=61 // pred_check_branch
          %290 = sbr.rel (%p288) target = $region66
        $region65: #{vit_decoder_stage4_forward.8} parent=61 // pred_region
          _
        $region66: #{vit_decoder_stage4_forward.8} parent=61 // pred_fallthru
          _
        %s291 = sand.u32 %s40, 1
        %s292 = sand.u32 %s40, 1
        %s293 = smul.addr %s292, 48
        %s294 = scalar_lea.vmem [#allocation2], %s293
        %p295 = pneg %p53
        %p296 = pneg %p50
        %p297 = pneg %p74
        %p298 = pneg %p71
        %p299 = pneg %p95
        %p300 = pneg %p92
        %p301 = pneg %p116
        %p302 = pneg %p113
        %p303 = pneg %p137
        %p304 = pneg %p134
        %p305 = pneg %p165
        %p306 = pneg %p162
        %s307 = sand.u32 %s152, 1
        %s308 = sand.u32 %s152, 1
        %s309 = smul.addr %s308, 48
        %s310 = scalar_lea.vmem [#allocation3], %s309
        %p311 = pneg %p193
        %p312 = pneg %p190
        %s313 = sand.u32 %s180, 1
        %s314 = sand.u32 %s180, 1
        %s315 = smul.addr %s314, 24
        %s316 = scalar_lea.vmem [#allocation4], %s315
        %s317 = smul.u32 3, %s23
        %s318 = smul.u32 3, %s23
        %s319 = smul.u32 3, %s23
        %v321 = vld [vmem:[%s1] sm:$0xf]
        %v322 = vld [vmem:[%s1 + $0x4] sm:$0xf]
        %v323 = vld [vmem:[%s287] sm:$0xff]
        %v324 = vld [vmem:[%s287 + $0x8] sm:$0xf]
        %v325 = vld [vmem:[%s287 + $0xc] sm:$0xff]
        %v326 = vld [vmem:[%s287 + $0x14] sm:$0xf]
        %v327 = vld [vmem:[%s287 + $0x18] sm:$0xff]
        %v328 = vld [vmem:[%s287 + $0x20] sm:$0xf]
        %v329 = vld [vmem:[%s287 + $0x24] sm:$0xff]
        %v330 = vld [vmem:[%s287 + $0x2c] sm:$0xf]
        %v331 = vld [vmem:[%s2] sm:$0xff]
        %v332 = vld [vmem:[%s2 + $0x8] sm:$0xff]
        %334 = vset.pattern.permute.xlu0 0
        %335 = vperm.xlu0 %334, %v331
        %v336 = vpop.permute.xlu0 %335
        %339 = vset.pattern.permute.xlu0 0
        %340 = vperm.xlu0 %339, %v332
        %v341 = vpop.permute.xlu0 %340
        %v345 = vunpack.c.l.b16 %v321
        %v346 = vunpack.c.l.b16 %v322
        %v347 = vpack.c.b16 %v346, %v345
        %v356 = vunpack.c.l.b16 %v323
        %v357 = vunpack.c.h.b16 %v323
        %v358 = vunpack.c.l.b16 %v324
        %v359 = vunpack.c.l.b16 %v325
        %v360 = vunpack.c.h.b16 %v325
        %v361 = vunpack.c.l.b16 %v326
        %v362 = vunpack.c.l.b16 %v327
        %v363 = vunpack.c.h.b16 %v327
        %v364 = vunpack.c.l.b16 %v328
        %v365 = vunpack.c.l.b16 %v329
        %v366 = vunpack.c.h.b16 %v329
        %v367 = vunpack.c.l.b16 %v330
        %v368 = vpack.c.b16 %v359, %v356
        %v369 = vpack.c.b16 %v360, %v357
        %v370 = vpack.c.b16 %v361, %v358
        %v371 = vpack.c.b16 %v365, %v362
        %v372 = vpack.c.b16 %v366, %v363
        %v373 = vpack.c.b16 %v367, %v364
        %vm380 = vcmask 261120
        %v382 = vsel %vm380, %v347, 0
        %384 = vmatpush.bf16.msra.mxu0 0
        %385 = vmatpush.bf16.msra.mxu0 0
        %386 = vmatpush.bf16.msra.mxu0 0
        %387 = vmatpush.bf16.msra.mxu0 0
        %388 = vmatpush.bf16.msra.mxu0 0
        %389 = vmatpush.bf16.msra.mxu0 0
        %390 = vmatpush.bf16.msra.mxu0 %v371
        %391 = vmatpush.bf16.msra.mxu0 %v368
        %392 = vmatmul.bf16.gmra.mxu0 %v382
        %v393 = vpop.f32.mrf.mxu0
        %v394 = vadd.f32 %v336, %v393
        %v395 = vpop.f32.mrf.mxu0
        %v396 = vadd.f32 %v341, %v395
        %397 = vdwg.mxu0
        %398 = vmatpush.bf16.msra.mxu0 0
        %399 = vmatpush.bf16.msra.mxu0 0
        %400 = vmatpush.bf16.msra.mxu0 0
        %401 = vmatpush.bf16.msra.mxu0 0
        %402 = vmatpush.bf16.msra.mxu0 0
        %403 = vmatpush.bf16.msra.mxu0 0
        %404 = vmatpush.bf16.msra.mxu0 %v372
        %405 = vmatpush.bf16.msra.mxu0 %v369
        %406 = vmatmul.bf16.gmra.mxu0 %v382
        %v407 = vpop.f32.mrf.mxu0
        %v408 = vadd.f32 %v336, %v407
        %v409 = vpop.f32.mrf.mxu0
        %v410 = vadd.f32 %v341, %v409
        %411 = vdwg.mxu0
        %412 = vmatpush.bf16.msra.mxu0 0
        %413 = vmatpush.bf16.msra.mxu0 0
        %414 = vmatpush.bf16.msra.mxu0 0
        %415 = vmatpush.bf16.msra.mxu0 0
        %416 = vmatpush.bf16.msra.mxu0 0
        %417 = vmatpush.bf16.msra.mxu0 0
        %418 = vmatpush.bf16.msra.mxu0 %v373
        %419 = vmatpush.bf16.msra.mxu0 %v370
        %420 = vmatmul.bf16.gmra.mxu0 %v382
        %v421 = vpop.f32.mrf.mxu0
        %v422 = vadd.f32 %v336, %v421
        %v423 = vpop.f32.mrf.mxu0
        %v424 = vadd.f32 %v341, %v423
        %425 = vdwg.mxu0
        %426 = vst [vmem:[%s310] sm:$0xff] %v394
        %427 = vst [vmem:[%s310 + $0x8] sm:$0xff] %v408
        %428 = vst [vmem:[%s310 + $0x10] sm:$0xff] %v422
        %429 = vst [vmem:[%s310 + $0x18] sm:$0xff] %v396
        %430 = vst [vmem:[%s310 + $0x20] sm:$0xff] %v410
        %431 = vst [vmem:[%s310 + $0x28] sm:$0xff] %v424
        %v432 = vld [vmem:[%s3] sm:$0xff]
        %v433 = vld [vmem:[%s3 + $0x8] sm:$0xff]
        %435 = vset.pattern.permute.xlu0 0
        %436 = vperm.xlu0 %435, %v432
        %v437 = vpop.permute.xlu0 %436
        %440 = vset.pattern.permute.xlu0 0
        %441 = vperm.xlu0 %440, %v433
        %v442 = vpop.permute.xlu0 %441
        %v444 = vmul.f32 %v394, %v437
        %v445 = vmul.f32 %v408, %v437
        %v446 = vmul.f32 %v422, %v437
        %v447 = vmul.f32 %v396, %v442
        %v448 = vmul.f32 %v410, %v442
        %v449 = vmul.f32 %v424, %v442
        %v450 = vld [vmem:[%s4] sm:$0xff]
        %v451 = vld [vmem:[%s4 + $0x8] sm:$0xff]
        %453 = vset.pattern.permute.xlu0 0
        %454 = vperm.xlu0 %453, %v450
        %v455 = vpop.permute.xlu0 %454
        %458 = vset.pattern.permute.xlu0 0
        %459 = vperm.xlu0 %458, %v451
        %v460 = vpop.permute.xlu0 %459
        %v462 = vadd.f32 %v444, %v455
        %v463 = vadd.f32 %v445, %v455
        %v464 = vadd.f32 %v446, %v455
        %v465 = vadd.f32 %v447, %v460
        %v466 = vadd.f32 %v448, %v460
        %v467 = vadd.f32 %v449, %v460
        %v468 = vmul.f32 %v462, 0.5
        %v469 = vmul.f32 %v463, 0.5
        %v470 = vmul.f32 %v464, 0.5
        %v471 = vmul.f32 %v465, 0.5
        %v472 = vmul.f32 %v466, 0.5
        %v473 = vmul.f32 %v467, 0.5
        %v474 = vmul.f32 %v462, 0.044715
        %v475 = vmul.f32 %v463, 0.044715
        %v476 = vmul.f32 %v464, 0.044715
        %v477 = vmul.f32 %v465, 0.044715
        %v478 = vmul.f32 %v466, 0.044715
        %v479 = vmul.f32 %v467, 0.044715
        %v480 = vmul.f32 %v474, %v462
        %v481 = vmul.f32 %v475, %v463
        %v482 = vmul.f32 %v476, %v464
        %v483 = vmul.f32 %v477, %v465
        %v484 = vmul.f32 %v478, %v466
        %v485 = vmul.f32 %v479, %v467
        %v486 = vmul.f32 %v480, %v462
        %v487 = vmul.f32 %v481, %v463
        %v488 = vmul.f32 %v482, %v464
        %v489 = vmul.f32 %v483, %v465
        %v490 = vmul.f32 %v484, %v466
        %v491 = vmul.f32 %v485, %v467
        %v492 = vadd.f32 %v462, %v486
        %v493 = vadd.f32 %v463, %v487
        %v494 = vadd.f32 %v464, %v488
        %v495 = vadd.f32 %v465, %v489
        %v496 = vadd.f32 %v466, %v490
        %v497 = vadd.f32 %v467, %v491
        %v498 = vmul.f32 %v492, 0.7978846
        %v499 = vmul.f32 %v493, 0.7978846
        %v500 = vmul.f32 %v494, 0.7978846
        %v501 = vmul.f32 %v495, 0.7978846
        %v502 = vmul.f32 %v496, 0.7978846
        %v503 = vmul.f32 %v497, 0.7978846
        %v504 = vtanh.pop %v498
        %v505 = vtanh.pop %v499
        %v506 = vtanh.pop %v500
        %v507 = vtanh.pop %v501
        %v508 = vtanh.pop %v502
        %v509 = vtanh.pop %v503
        %v510 = vadd.f32 %v504, 1.0
        %v511 = vadd.f32 %v505, 1.0
        %v512 = vadd.f32 %v506, 1.0
        %v513 = vadd.f32 %v507, 1.0
        %v514 = vadd.f32 %v508, 1.0
        %v515 = vadd.f32 %v509, 1.0
        %v516 = vmul.f32 %v468, %v510
        %v517 = vmul.f32 %v469, %v511
        %v518 = vmul.f32 %v470, %v512
        %v519 = vmul.f32 %v471, %v513
        %v520 = vmul.f32 %v472, %v514
        %v521 = vmul.f32 %v473, %v515
        %v522 = vpack.c.bf16 %v517, %v516
        %v523 = vpack.c.bf16 %v518, %v518
        %v524 = vpack.c.bf16 %v520, %v519
        %v525 = vpack.c.bf16 %v521, %v521
        %526 = vst [vmem:[%s316] sm:$0xff] %v522
        %527 = vst [vmem:[%s316 + $0x8] sm:$0xf] %v523
        %528 = vst [vmem:[%s316 + $0xc] sm:$0xff] %v524
        %529 = vst [vmem:[%s316 + $0x14] sm:$0xf] %v525
        %s530 = sand.u32 %s152, 1
        %s531 = sand.u32 %s152, 1
        %s532 = smul.addr %s531, 48
        %s533 = scalar_lea.vmem [#allocation3], %s532
        %s534 = sand.u32 %s180, 1
        %s535 = sand.u32 %s180, 1
        %s536 = smul.addr %s535, 24
        %s537 = scalar_lea.vmem [#allocation4], %s536
        // Predicated region
        $region67: #{vit_decoder_stage4_forward.8} parent=61 // pred_check
          %p538 = pneg %p162
        $region68: #{vit_decoder_stage4_forward.8} parent=61 // pred_check_branch
          %540 = sbr.rel (%p538) target = $region70
        $region69: #{vit_decoder_stage4_forward.8} parent=61 // pred_region
          %s541 = smul.u32 3, %s23
          %s542 = smul.addr %s22, 18
          %s543 = sadd.s32 %s541, %s542
          %s544 = smul.addr %s543, 8
          %s545 = scalar_lea.vmem %s5, %s544
          // Predicated region
          $region71: #{vit_decoder_stage4_forward.8} parent=69 // pred_check
            _
          $region72: #{vit_decoder_stage4_forward.8} parent=69 // pred_check_branch
            %547 = sbr.rel (0) target = $region74
          $region73: #{vit_decoder_stage4_forward.8} parent=69 // pred_region
            // Predicated region
            $region75: #{vit_decoder_stage4_forward.8} parent=73 // pred_check
              _
            $region76: #{vit_decoder_stage4_forward.8} parent=73 // pred_check_branch
              %549 = sbr.rel (0) target = $region78
            $region77: #{vit_decoder_stage4_forward.8} parent=73 // pred_region
              loop: start=0, step=1, limit=1
              $region79: #{vit_decoder_stage4_forward.8} parent=77 // loop_pre_header
                _
              $region80: #{vit_decoder_stage4_forward.8} parent=77 // loop_header
                %s551 = sphi 0, %s555
                %p552 = scmp.ge.s32.totalorder %s551, 1
                %s556 = sphi %s533, %s533
                %s557 = sphi %s545, %s545
              $region81: #{vit_decoder_stage4_forward.8} parent=77 // loop_header_branch
                %554 = sbr.rel (%p552) target = $region85
              $region82: #{vit_decoder_stage4_forward.8} parent=77 // loop_body
                %v558 = vld [vmem:[%s556] sm:$0xff]
                %559 = vst [vmem:[%s557] sm:$0xff] %v558
                %v560 = vld [vmem:[%s556 + $0x8] sm:$0xff]
                %561 = vst [vmem:[%s557 + $0x8] sm:$0xff] %v560
                %v562 = vld [vmem:[%s556 + $0x10] sm:$0xff]
                %563 = vst [vmem:[%s557 + $0x10] sm:$0xff] %v562
                %v564 = vld [vmem:[%s556 + $0x18] sm:$0xff]
                %565 = vst [vmem:[%s557 + $0x48] sm:$0xff] %v564
                %v566 = vld [vmem:[%s556 + $0x20] sm:$0xff]
                %567 = vst [vmem:[%s557 + $0x50] sm:$0xff] %v566
                %v568 = vld [vmem:[%s556 + $0x28] sm:$0xff]
                %569 = vst [vmem:[%s557 + $0x58] sm:$0xff] %v568
              $region83: #{vit_decoder_stage4_forward.8} parent=77 // loop_footer
                %s555 = sadd.s32 1, %s551
              $region84: #{vit_decoder_stage4_forward.8} parent=77 // loop_footer_branch
                %550 = sbr.rel target = $region80
              $region85: #{vit_decoder_stage4_forward.8} parent=77 // loop_exit
                _
            $region78: #{vit_decoder_stage4_forward.8} parent=73 // pred_fallthru
              _
            // Predicated region
            $region86: #{vit_decoder_stage4_forward.8} parent=73 // pred_check
              _
            $region87: #{vit_decoder_stage4_forward.8} parent=73 // pred_check_branch
              %571 = sbr.rel target = $region89
            $region88: #{vit_decoder_stage4_forward.8} parent=73 // pred_region
              _
            $region89: #{vit_decoder_stage4_forward.8} parent=73 // pred_fallthru
              _
          $region74: #{vit_decoder_stage4_forward.8} parent=69 // pred_fallthru
            _
          %572 = vnop
        $region70: #{vit_decoder_stage4_forward.8} parent=61 // pred_fallthru
          _
        // Predicated region
        $region90: #{vit_decoder_stage4_forward.8} parent=61 // pred_check
          %p573 = pneg %p190
        $region91: #{vit_decoder_stage4_forward.8} parent=61 // pred_check_branch
          %575 = sbr.rel (%p573) target = $region93
        $region92: #{vit_decoder_stage4_forward.8} parent=61 // pred_region
          %s576 = smul.u32 3, %s23
          %s577 = smul.addr %s22, 18
          %s578 = sadd.s32 %s576, %s577
          %s579 = smul.addr %s578, 4
          %s580 = scalar_lea.vmem %s6, %s579
          // Predicated region
          $region94: #{vit_decoder_stage4_forward.8} parent=92 // pred_check
            _
          $region95: #{vit_decoder_stage4_forward.8} parent=92 // pred_check_branch
            %582 = sbr.rel (0) target = $region97
          $region96: #{vit_decoder_stage4_forward.8} parent=92 // pred_region
            // Predicated region
            $region98: #{vit_decoder_stage4_forward.8} parent=96 // pred_check
              _
            $region99: #{vit_decoder_stage4_forward.8} parent=96 // pred_check_branch
              %584 = sbr.rel (0) target = $region101
            $region100: #{vit_decoder_stage4_forward.8} parent=96 // pred_region
              %s585 = scalar_lea.vmem %s537, 8 [#allocation4]
              %s586 = scalar_lea.vmem %s580, 8
              loop: start=0, step=1, limit=1
              $region102: #{vit_decoder_stage4_forward.8} parent=100 // loop_pre_header
                _
              $region103: #{vit_decoder_stage4_forward.8} parent=100 // loop_header
                %s588 = sphi 0, %s592
                %p589 = scmp.ge.s32.totalorder %s588, 1
                %s593 = sphi %s537, %s537
                %s594 = sphi %s580, %s580
              $region104: #{vit_decoder_stage4_forward.8} parent=100 // loop_header_branch
                %591 = sbr.rel (%p589) target = $region108
              $region105: #{vit_decoder_stage4_forward.8} parent=100 // loop_body
                %v595 = vld [vmem:[%s593] sm:$0xff]
                %596 = vst [vmem:[%s594] sm:$0xff] %v595
                %v597 = vld [vmem:[%s593 + $0xc] sm:$0xff]
                %598 = vst [vmem:[%s594 + $0x24] sm:$0xff] %v597
              $region106: #{vit_decoder_stage4_forward.8} parent=100 // loop_footer
                %s592 = sadd.s32 1, %s588
              $region107: #{vit_decoder_stage4_forward.8} parent=100 // loop_footer_branch
                %587 = sbr.rel target = $region103
              $region108: #{vit_decoder_stage4_forward.8} parent=100 // loop_exit
                _
              %s600 = ssub.s32 16, 1
              loop: start=0, step=1, limit=1
              $region109: #{vit_decoder_stage4_forward.8} parent=100 // loop_pre_header
                _
              $region110: #{vit_decoder_stage4_forward.8} parent=100 // loop_header
                %s602 = sphi 0, %s606
                %p603 = scmp.ge.s32.totalorder %s602, 1
                %s607 = sphi %s585, %s585
                %s608 = sphi %s586, %s586
              $region111: #{vit_decoder_stage4_forward.8} parent=100 // loop_header_branch
                %605 = sbr.rel (%p603) target = $region115
              $region112: #{vit_decoder_stage4_forward.8} parent=100 // loop_body
                %v609 = vld [vmem:[%s607] sm:%s600]
                %610 = vst [vmem:[%s608] sm:%s600] %v609
                %v611 = vld [vmem:[%s607 + $0xc] sm:%s600]
                %612 = vst [vmem:[%s608 + $0x24] sm:%s600] %v611
              $region113: #{vit_decoder_stage4_forward.8} parent=100 // loop_footer
                %s606 = sadd.s32 1, %s602
              $region114: #{vit_decoder_stage4_forward.8} parent=100 // loop_footer_branch
                %601 = sbr.rel target = $region110
              $region115: #{vit_decoder_stage4_forward.8} parent=100 // loop_exit
                _
            $region101: #{vit_decoder_stage4_forward.8} parent=96 // pred_fallthru
              _
          $region97: #{vit_decoder_stage4_forward.8} parent=92 // pred_fallthru
            _
          %613 = vnop
        $region93: #{vit_decoder_stage4_forward.8} parent=61 // pred_fallthru
          _
      $region62: #{vit_decoder_stage4_forward.8} parent=5 // pred_fallthru
        _
      %p614 = scmp.le.s32.totalorder 2, %s13
      // Predicated region
      $region116: #{vit_decoder_stage4_forward.8} parent=5 // pred_check
        %p615 = pneg %p614
      $region117: #{vit_decoder_stage4_forward.8} parent=5 // pred_check_branch
        %617 = sbr.rel (%p615) target = $region119
      $region118: #{vit_decoder_stage4_forward.8} parent=5 // pred_region
        %s618 = ssub.s32 %s13, 2
        // Predicated region
        $region120: #{vit_decoder_stage4_forward.8} parent=118 // pred_check
          %p619 = pneg %p168
        $region121: #{vit_decoder_stage4_forward.8} parent=118 // pred_check_branch
          %621 = sbr.rel (%p619) target = $region123
        $region122: #{vit_decoder_stage4_forward.8} parent=118 // pred_region
          %s622 = sand.u32 %s153, 1
          %s623 = sand.u32 %s153, 1
          %s624 = smul.addr %s623, 48
          %s625 = scalar_lea.vmem [#allocation3], %s624
        $region123: #{vit_decoder_stage4_forward.8} parent=118 // pred_fallthru
          _
        // Predicated region
        $region124: #{vit_decoder_stage4_forward.8} parent=118 // pred_check
          %p626 = pneg %p196
        $region125: #{vit_decoder_stage4_forward.8} parent=118 // pred_check_branch
          %628 = sbr.rel (%p626) target = $region127
        $region126: #{vit_decoder_stage4_forward.8} parent=118 // pred_region
          %s629 = sand.u32 %s181, 1
          %s630 = sand.u32 %s181, 1
          %s631 = smul.addr %s630, 24
          %s632 = scalar_lea.vmem [#allocation4], %s631
        $region127: #{vit_decoder_stage4_forward.8} parent=118 // pred_fallthru
          _
      $region119: #{vit_decoder_stage4_forward.8} parent=5 // pred_fallthru
        _
    $region6: #{vit_decoder_stage4_forward.8} parent=1 // loop_footer
      %s17 = sadd.s32 1, %s13
    $region7: #{vit_decoder_stage4_forward.8} parent=1 // loop_footer_branch
      %12 = sbr.rel target = $region3
    $region8: #{vit_decoder_stage4_forward.8} parent=1 // loop_exit
      _

// kernel: tile.78
$region0: #{tile.78}
  #allocation0 [shape = 's32[1]{0}', space=sflag, size = 0x4, scoped, tag = 'scoped memory for tile.78']
  %s0 = inlined_call_operand.vmem [shape: f32[2], index: 0, kind: input, shape index: {}]
  %s1 = inlined_call_operand.vmem [shape: f32[4,2], index: 1, kind: output, shape index: {}]
  // Predicated region
  $region2: #{tile.78} parent=0 // pred_check
    _
  $region3: #{tile.78} parent=0 // pred_check_branch
    %3 = sbr.rel (0) target = $region5
  $region4: #{tile.78} parent=0 // pred_region
    _
  $region5: #{tile.78} parent=0 // pred_fallthru
    _
  %v4 = vld [vmem:[%s0] ss:$0 sm:$0xff]
  %5 = vst [vmem:[%s1] sm:$0xf] %v4

// kernel: tile.9
$region0: #{tile.9}
  %s0 = inlined_call_operand.vmem [shape: f32[4,2], index: 0, kind: input, shape index: {}]
  %s1 = inlined_call_operand.vmem [shape: f32[8,1], index: 1, kind: output, shape index: {}]
  $region1: #{tile.9} parent=0
    #allocation0 [shape = 'u8[4096]{0}', space=vmem, size = 0x1000, scoped, tag = 'scoped mem for input reshape']
    %s3 = ssub.s32 16, 1
    %v4 = vld [vmem:[%s0] sm:%s3]
    %5 = vst [vmem:[#allocation0] sm:%s3] %v4
    %v6 = vld [vmem:[#allocation0] sm:$0xf]
    %vm7 = vcmask 7168
    %8 = vst.msk [vmem:[%s1] ss:$2 sm:$0xf] %vm7, %v6
    %v9 = vld [vmem:[#allocation0] sm:$0xf]
    %10 = vrot.lane.b32.xlu0 %v9, 127
    %v11 = vpop.permute.xlu0 %10
    %vm12 = vcmask 7168
    %s13 = scalar_lea.vmem %s1, 1
    %14 = vst.msk [vmem:[%s13] ss:$2 sm:$0xf] %vm12, %v11

// kernel: vit_decoder_stage4_forward.9
$region0: #{vit_decoder_stage4_forward.9}
  #allocation0 [shape = 'u32[]', space=smem, size = 0x4, offset = 0x4, fixed_abs, tag = 'smem constant byte address 0x4 - core index']
  #allocation1 [shape = 'u32[72,128]{1,0:T(1,128)}', space=vmem, size = 0x9000, scoped, tag = 'internal scratch']
  %s0 = inlined_call_operand.vmem [shape: bf16[2,16,4608], index: 0, kind: input, shape index: {}]
  %s1 = inlined_call_operand.vmem [shape: bf16[8,16], index: 1, kind: input, shape index: {}]
  %s2 = inlined_call_operand.vmem [shape: f32[8,1], index: 2, kind: input, shape index: {}]
  %s3 = inlined_call_operand.vmem [shape: f32[2,8,4608], index: 3, kind: output, shape index: {}]
  %s4 = sld [smem:[#allocation0]]
  $region68: #{vit_decoder_stage4_forward.9} parent=0
    _
  %s6 = ssub.s32 1, %s4
  %s7 = scalar_select 0, %s6, %s4
  $region1: #{vit_decoder_stage4_forward.9} parent=0
    #allocation2 [shape = 'u8[32768]{0}', space=vmem, size = 0x8000, scoped, tag = 'input window, operand 0']
    loop: start=0, step=1, limit=20
    $region2: #{vit_decoder_stage4_forward.9} parent=1 // loop_pre_header
      _
    $region3: #{vit_decoder_stage4_forward.9} parent=1 // loop_header
      %s9 = sphi 0, %s13
      %p10 = scmp.ge.s32.totalorder %s9, 20
      %s16 = sphi 0, %s28
      %s17 = sphi 0, %s24
      %s18 = sphi 0, %s16
      %s19 = sphi 0, %s17
      %s20 = sphi 0, %s18
      %s21 = sphi 0, %s19
      %s33 = sphi 0, %s35
      %s36 = sphi 0, %s33
      %s37 = sphi 0, %s36
      %s53 = sphi 0, %s37
      %s57 = sphi 0, %s57
      %s59 = sphi 0, %s57
      %s60 = sphi 0, %s59
      %s74 = sphi 0, %s60
      %s78 = sphi 0, %s78
      %s80 = sphi 0, %s78
      %s81 = sphi 0, %s80
      %s95 = sphi 0, %s81
      %s103 = sphi 0, %s105
      %s106 = sphi 0, %s103
      %s107 = sphi 0, %s106
      %s123 = sphi 0, %s107
    $region4: #{vit_decoder_stage4_forward.9} parent=1 // loop_header_branch
      %12 = sbr.rel (%p10) target = $region8
    $region5: #{vit_decoder_stage4_forward.9} parent=1 // loop_body
      %s14 = ssub.s32 %s9, 1
      %s15 = ssub.s32 %s9, 2
      %s22 = sadd.s32 1, %s17
      %p23 = scmp.ge.s32.totalorder %s22, 9
      %s24 = scalar_select %p23, 0, %s22
      %s25 = sadd.s32 1, %s16
      %s26 = scalar_select %p23, %s25, %s16
      %p27 = scmp.ge.s32.totalorder %s26, 2
      %s28 = scalar_select %p27, 0, %s26
      %s29 = ssub.s32 %s16, %s28
      %s30 = ssub.s32 %s17, %s24
      %s31 = sor.u32 %s29, %s30
      %p32 = scmp.eq.s32.totalorder %s31, 0
      %s34 = sadd.s32 %s33, 1
      %s35 = scalar_select %p32, %s33, %s34
      %p38 = pneg %p32
      %p39 = scmp.eq.s32.totalorder %s9, 17
      %p40 = por %p38, %p39
      %p41 = scmp.ne.s32.totalorder %s33, %s36
      %p42 = scmp.eq.s32.totalorder %s9, 0
      %p43 = por %p41, %p42
      %p44 = scmp.ne.s32.totalorder %s33, %s36
      %p45 = scmp.eq.s32.totalorder %s14, 17
      %p46 = por %p44, %p45
      %p47 = scmp.ne.s32.totalorder %s36, %s37
      %p48 = scmp.eq.s32.totalorder %s14, 0
      %p49 = por %p47, %p48
      %p50 = scmp.ne.s32.totalorder %s36, %s37
      %p51 = scmp.eq.s32.totalorder %s15, 17
      %p52 = por %p50, %p51
      %p54 = scmp.ne.s32.totalorder %s37, %s53
      %p55 = scmp.eq.s32.totalorder %s15, 0
      %p56 = por %p54, %p55
      %s58 = sadd.s32 %s57, 1
      %p61 = scmp.eq.s32.totalorder %s9, 17
      %p62 = scmp.ne.s32.totalorder %s57, %s59
      %p63 = scmp.eq.s32.totalorder %s9, 0
      %p64 = por %p62, %p63
      %p65 = scmp.ne.s32.totalorder %s57, %s59
      %p66 = scmp.eq.s32.totalorder %s14, 17
      %p67 = por %p65, %p66
      %p68 = scmp.ne.s32.totalorder %s59, %s60
      %p69 = scmp.eq.s32.totalorder %s14, 0
      %p70 = por %p68, %p69
      %p71 = scmp.ne.s32.totalorder %s59, %s60
      %p72 = scmp.eq.s32.totalorder %s15, 17
      %p73 = por %p71, %p72
      %p75 = scmp.ne.s32.totalorder %s60, %s74
      %p76 = scmp.eq.s32.totalorder %s15, 0
      %p77 = por %p75, %p76
      %s79 = sadd.s32 %s78, 1
      %p82 = scmp.eq.s32.totalorder %s9, 17
      %p83 = scmp.ne.s32.totalorder %s78, %s80
      %p84 = scmp.eq.s32.totalorder %s9, 0
      %p85 = por %p83, %p84
      %p86 = scmp.ne.s32.totalorder %s78, %s80
      %p87 = scmp.eq.s32.totalorder %s14, 17
      %p88 = por %p86, %p87
      %p89 = scmp.ne.s32.totalorder %s80, %s81
      %p90 = scmp.eq.s32.totalorder %s14, 0
      %p91 = por %p89, %p90
      %p92 = scmp.ne.s32.totalorder %s80, %s81
      %p93 = scmp.eq.s32.totalorder %s15, 17
      %p94 = por %p92, %p93
      %p96 = scmp.ne.s32.totalorder %s81, %s95
      %p97 = scmp.eq.s32.totalorder %s15, 0
      %p98 = por %p96, %p97
      %s99 = ssub.s32 %s16, %s28
      %s100 = ssub.s32 %s17, %s24
      %s101 = sor.u32 %s99, %s100
      %p102 = scmp.eq.s32.totalorder %s101, 0
      %s104 = sadd.s32 %s103, 1
      %s105 = scalar_select %p102, %s103, %s104
      %p108 = pneg %p102
      %p109 = scmp.eq.s32.totalorder %s9, 17
      %p110 = por %p108, %p109
      %p111 = scmp.ne.s32.totalorder %s103, %s106
      %p112 = scmp.eq.s32.totalorder %s9, 0
      %p113 = por %p111, %p112
      %p114 = scmp.ne.s32.totalorder %s103, %s106
      %p115 = scmp.eq.s32.totalorder %s14, 17
      %p116 = por %p114, %p115
      %p117 = scmp.ne.s32.totalorder %s106, %s107
      %p118 = scmp.eq.s32.totalorder %s14, 0
      %p119 = por %p117, %p118
      %p120 = scmp.ne.s32.totalorder %s106, %s107
      %p121 = scmp.eq.s32.totalorder %s15, 17
      %p122 = por %p120, %p121
      %p124 = scmp.ne.s32.totalorder %s107, %s123
      %p125 = scmp.eq.s32.totalorder %s15, 0
      %p126 = por %p124, %p125
      %p127 = scmp.le.s32.totalorder 1, %s9
      %p128 = scmp.lt.s32.totalorder %s9, 19
      %p129 = pnand %p127, %p128
      %p130 = pneg %p129
      // Predicated region
      $region9: #{vit_decoder_stage4_forward.9} parent=5 // pred_check
        _
      $region10: #{vit_decoder_stage4_forward.9} parent=5 // pred_check_branch
        %132 = sbr.rel (%p129) target = $region12
      $region11: #{vit_decoder_stage4_forward.9} parent=5 // pred_region
        %s133 = ssub.s32 %s9, 1
        // Predicated region
        $region13: #{vit_decoder_stage4_forward.9} parent=11 // pred_check
          %p134 = pneg %p70
        $region14: #{vit_decoder_stage4_forward.9} parent=11 // pred_check_branch
          %136 = sbr.rel (%p134) target = $region16
        $region15: #{vit_decoder_stage4_forward.9} parent=11 // pred_region
          _
        $region16: #{vit_decoder_stage4_forward.9} parent=11 // pred_fallthru
          _
        // Predicated region
        $region17: #{vit_decoder_stage4_forward.9} parent=11 // pred_check
          %p137 = pneg %p91
        $region18: #{vit_decoder_stage4_forward.9} parent=11 // pred_check_branch
          %139 = sbr.rel (%p137) target = $region20
        $region19: #{vit_decoder_stage4_forward.9} parent=11 // pred_region
          _
        $region20: #{vit_decoder_stage4_forward.9} parent=11 // pred_fallthru
          _
      $region12: #{vit_decoder_stage4_forward.9} parent=5 // pred_fallthru
        _
      %p140 = scmp.lt.s32.totalorder %s9, 18
      // Predicated region
      $region21: #{vit_decoder_stage4_forward.9} parent=5 // pred_check
        %p141 = pneg %p140
      $region22: #{vit_decoder_stage4_forward.9} parent=5 // pred_check_branch
        %143 = sbr.rel (%p141) target = $region24
      $region23: #{vit_decoder_stage4_forward.9} parent=5 // pred_region
        // Predicated region
        $region25: #{vit_decoder_stage4_forward.9} parent=23 // pred_check
          %p144 = pneg %p43
        $region26: #{vit_decoder_stage4_forward.9} parent=23 // pred_check_branch
          %146 = sbr.rel (%p144) target = $region28
        $region27: #{vit_decoder_stage4_forward.9} parent=23 // pred_region
          %s147 = sand.u32 %s33, 1
          %s148 = sand.u32 %s33, 1
          %s149 = smul.addr %s148, 32
          %s150 = scalar_lea.vmem [#allocation2], %s149
          %s151 = smul.u32 4, %s17
          %s152 = smul.addr %s16, 72
          %s153 = sadd.s32 %s151, %s152
          %s154 = smul.addr %s153, 4
          %s155 = scalar_lea.vmem %s0, %s154
          // Predicated region
          $region29: #{vit_decoder_stage4_forward.9} parent=27 // pred_check
            _
          $region30: #{vit_decoder_stage4_forward.9} parent=27 // pred_check_branch
            %157 = sbr.rel (0) target = $region32
          $region31: #{vit_decoder_stage4_forward.9} parent=27 // pred_region
            // Predicated region
            $region33: #{vit_decoder_stage4_forward.9} parent=31 // pred_check
              _
            $region34: #{vit_decoder_stage4_forward.9} parent=31 // pred_check_branch
              %159 = sbr.rel (0) target = $region36
            $region35: #{vit_decoder_stage4_forward.9} parent=31 // pred_region
              loop: start=0, step=1, limit=1
              $region37: #{vit_decoder_stage4_forward.9} parent=35 // loop_pre_header
                _
              $region38: #{vit_decoder_stage4_forward.9} parent=35 // loop_header
                %s161 = sphi 0, %s165
                %p162 = scmp.ge.s32.totalorder %s161, 1
                %s166 = sphi %s155, %s155
                %s167 = sphi %s150, %s150
              $region39: #{vit_decoder_stage4_forward.9} parent=35 // loop_header_branch
                %164 = sbr.rel (%p162) target = $region43
              $region40: #{vit_decoder_stage4_forward.9} parent=35 // loop_body
                %v168 = vld [vmem:[%s166] sm:$0xff]
                %169 = vst [vmem:[%s167] sm:$0xff] %v168
                %v170 = vld [vmem:[%s166 + $0x8] sm:$0xff]
                %171 = vst [vmem:[%s167 + $0x8] sm:$0xff] %v170
                %v172 = vld [vmem:[%s166 + $0x90] sm:$0xff]
                %173 = vst [vmem:[%s167 + $0x10] sm:$0xff] %v172
                %v174 = vld [vmem:[%s166 + $0x98] sm:$0xff]
                %175 = vst [vmem:[%s167 + $0x18] sm:$0xff] %v174
              $region41: #{vit_decoder_stage4_forward.9} parent=35 // loop_footer
                %s165 = sadd.s32 1, %s161
              $region42: #{vit_decoder_stage4_forward.9} parent=35 // loop_footer_branch
                %160 = sbr.rel target = $region38
              $region43: #{vit_decoder_stage4_forward.9} parent=35 // loop_exit
                _
            $region36: #{vit_decoder_stage4_forward.9} parent=31 // pred_fallthru
              _
            // Predicated region
            $region44: #{vit_decoder_stage4_forward.9} parent=31 // pred_check
              _
            $region45: #{vit_decoder_stage4_forward.9} parent=31 // pred_check_branch
              %177 = sbr.rel target = $region47
            $region46: #{vit_decoder_stage4_forward.9} parent=31 // pred_region
              _
            $region47: #{vit_decoder_stage4_forward.9} parent=31 // pred_fallthru
              _
          $region32: #{vit_decoder_stage4_forward.9} parent=27 // pred_fallthru
            _
          %178 = vnop
        $region28: #{vit_decoder_stage4_forward.9} parent=23 // pred_fallthru
          _
      $region24: #{vit_decoder_stage4_forward.9} parent=5 // pred_fallthru
        _
      %p179 = scmp.le.s32.totalorder 1, %s9
      %p180 = scmp.lt.s32.totalorder %s9, 19
      %p181 = pnand %p179, %p180
      %p182 = pneg %p181
      // Predicated region
      $region48: #{vit_decoder_stage4_forward.9} parent=5 // pred_check
        _
      $region49: #{vit_decoder_stage4_forward.9} parent=5 // pred_check_branch
        %184 = sbr.rel (%p181) target = $region51
      $region50: #{vit_decoder_stage4_forward.9} parent=5 // pred_region
        %s185 = ssub.s32 %s9, 1
        %s186 = sand.u32 %s36, 1
        %s187 = sand.u32 %s36, 1
        %s188 = smul.addr %s187, 32
        %s189 = scalar_lea.vmem [#allocation2], %s188
        // Predicated region
        $region52: #{vit_decoder_stage4_forward.9} parent=50 // pred_check
          %p190 = pneg %p49
        $region53: #{vit_decoder_stage4_forward.9} parent=50 // pred_check_branch
          %192 = sbr.rel (%p190) target = $region55
        $region54: #{vit_decoder_stage4_forward.9} parent=50 // pred_region
          _
        $region55: #{vit_decoder_stage4_forward.9} parent=50 // pred_fallthru
          _
        %s193 = sand.u32 %s36, 1
        %s194 = sand.u32 %s36, 1
        %s195 = smul.addr %s194, 32
        %s196 = scalar_lea.vmem [#allocation2], %s195
        %p197 = pneg %p49
        %p198 = pneg %p46
        %p199 = pneg %p70
        %p200 = pneg %p67
        %p201 = pneg %p91
        %p202 = pneg %p88
        %p203 = pneg %p119
        %p204 = pneg %p116
        %s205 = smul.u32 4, %s19
        %p206 = scmp.lt.s32.totalorder %s18, 1
        %s207 = scalar_select %p206, %s18, 1
        %p208 = scmp.lt.s32.totalorder %s205, 35
        %s209 = scalar_select %p208, %s205, 35
        %s210 = smul.addr %s207, 36
        %s211 = sadd.s32 %s209, %s210
        %s212 = smul.addr %s211, 8
        %s213 = scalar_lea.vmem %s3, %s212
        %s214 = smul.u32 4, %s19
        %s215 = smul.u32 4, %s19
        %p216 = scmp.lt.s32.totalorder %s18, 1
        %s217 = scalar_select %p216, %s18, 1
        %p218 = scmp.lt.s32.totalorder %s215, 35
        %s219 = scalar_select %p218, %s215, 35
        %s220 = smul.addr %s217, 36
        %s221 = sadd.s32 %s219, %s220
        %s222 = smul.addr %s221, 8
        %s223 = scalar_lea.vmem %s3, %s222
        %s224 = smul.u32 4, %s19
        %v226 = vld [vmem:[%s1] sm:$0xf]
        %v227 = vld [vmem:[%s189] sm:$0xff]
        %v228 = vld [vmem:[%s189 + $0x8] sm:$0xff]
        %v229 = vld [vmem:[%s189 + $0x10] sm:$0xff]
        %v230 = vld [vmem:[%s189 + $0x18] sm:$0xff]
        %v231 = vld [vmem:[%s2] sm:$0xff]
        %233 = vset.pattern.permute.xlu0 0
        %234 = vperm.xlu0 %233, %v231
        %v235 = vpop.permute.xlu0 %234
        %v241 = vunpack.c.l.b16 %v227
        %v242 = vunpack.c.h.b16 %v227
        %v243 = vunpack.c.l.b16 %v228
        %v244 = vunpack.c.h.b16 %v228
        %v245 = vunpack.c.l.b16 %v229
        %v246 = vunpack.c.h.b16 %v229
        %v247 = vunpack.c.l.b16 %v230
        %v248 = vunpack.c.h.b16 %v230
        %v249 = vpack.c.b16 %v245, %v241
        %v250 = vpack.c.b16 %v246, %v242
        %v251 = vpack.c.b16 %v247, %v243
        %v252 = vpack.c.b16 %v248, %v244
        %vm257 = vcmask 130048
        %v259 = vsel %vm257, %v226, 0
        %261 = vmatpush.bf16.msra.mxu0 0
        %262 = vmatpush.bf16.msra.mxu0 0
        %263 = vmatpush.bf16.msra.mxu0 0
        %264 = vmatpush.bf16.msra.mxu0 0
        %265 = vmatpush.bf16.msra.mxu0 0
        %266 = vmatpush.bf16.msra.mxu0 0
        %267 = vmatpush.bf16.msra.mxu0 0
        %268 = vmatpush.bf16.msra.mxu0 %v249
        %269 = vmatmul.bf16.gmra.mxu0 %v259
        %v270 = vpop.f32.mrf.mxu0
        %v271 = vadd.f32 %v235, %v270
        %v272 = vpop.f32.mrf.mxu0
        %273 = vdwg.mxu0
        %274 = vmatpush.bf16.msra.mxu0 0
        %275 = vmatpush.bf16.msra.mxu0 0
        %276 = vmatpush.bf16.msra.mxu0 0
        %277 = vmatpush.bf16.msra.mxu0 0
        %278 = vmatpush.bf16.msra.mxu0 0
        %279 = vmatpush.bf16.msra.mxu0 0
        %280 = vmatpush.bf16.msra.mxu0 0
        %281 = vmatpush.bf16.msra.mxu0 %v250
        %282 = vmatmul.bf16.gmra.mxu0 %v259
        %v283 = vpop.f32.mrf.mxu0
        %v284 = vadd.f32 %v235, %v283
        %v285 = vpop.f32.mrf.mxu0
        %286 = vdwg.mxu0
        %287 = vmatpush.bf16.msra.mxu0 0
        %288 = vmatpush.bf16.msra.mxu0 0
        %289 = vmatpush.bf16.msra.mxu0 0
        %290 = vmatpush.bf16.msra.mxu0 0
        %291 = vmatpush.bf16.msra.mxu0 0
        %292 = vmatpush.bf16.msra.mxu0 0
        %293 = vmatpush.bf16.msra.mxu0 0
        %294 = vmatpush.bf16.msra.mxu0 %v251
        %295 = vmatmul.bf16.gmra.mxu0 %v259
        %v296 = vpop.f32.mrf.mxu0
        %v297 = vadd.f32 %v235, %v296
        %v298 = vpop.f32.mrf.mxu0
        %299 = vdwg.mxu0
        %300 = vmatpush.bf16.msra.mxu0 0
        %301 = vmatpush.bf16.msra.mxu0 0
        %302 = vmatpush.bf16.msra.mxu0 0
        %303 = vmatpush.bf16.msra.mxu0 0
        %304 = vmatpush.bf16.msra.mxu0 0
        %305 = vmatpush.bf16.msra.mxu0 0
        %306 = vmatpush.bf16.msra.mxu0 0
        %307 = vmatpush.bf16.msra.mxu0 %v252
        %308 = vmatmul.bf16.gmra.mxu0 %v259
        %v309 = vpop.f32.mrf.mxu0
        %v310 = vadd.f32 %v235, %v309
        %v311 = vpop.f32.mrf.mxu0
        %312 = vdwg.mxu0
        %313 = vst [vmem:[%s223] sm:$0xff] %v271
        %314 = vst [vmem:[%s223 + $0x8] sm:$0xff] %v284
        %315 = vst [vmem:[%s223 + $0x10] sm:$0xff] %v297
        %316 = vst [vmem:[%s223 + $0x18] sm:$0xff] %v310
        %s317 = smul.u32 4, %s19
        %p318 = scmp.lt.s32.totalorder %s18, 1
        %s319 = scalar_select %p318, %s18, 1
        %p320 = scmp.lt.s32.totalorder %s317, 35
        %s321 = scalar_select %p320, %s317, 35
        %s322 = smul.addr %s319, 36
        %s323 = sadd.s32 %s321, %s322
        %s324 = smul.addr %s323, 8
        %s325 = scalar_lea.vmem %s3, %s324
        // Predicated region
        $region56: #{vit_decoder_stage4_forward.9} parent=50 // pred_check
          %p326 = pneg %p116
        $region57: #{vit_decoder_stage4_forward.9} parent=50 // pred_check_branch
          %328 = sbr.rel (%p326) target = $region59
        $region58: #{vit_decoder_stage4_forward.9} parent=50 // pred_region
          %s329 = smul.u32 4, %s19
        $region59: #{vit_decoder_stage4_forward.9} parent=50 // pred_fallthru
          _
      $region51: #{vit_decoder_stage4_forward.9} parent=5 // pred_fallthru
        _
      %p330 = scmp.le.s32.totalorder 2, %s9
      // Predicated region
      $region60: #{vit_decoder_stage4_forward.9} parent=5 // pred_check
        %p331 = pneg %p330
      $region61: #{vit_decoder_stage4_forward.9} parent=5 // pred_check_branch
        %333 = sbr.rel (%p331) target = $region63
      $region62: #{vit_decoder_stage4_forward.9} parent=5 // pred_region
        %s334 = ssub.s32 %s9, 2
        // Predicated region
        $region64: #{vit_decoder_stage4_forward.9} parent=62 // pred_check
          %p335 = pneg %p122
        $region65: #{vit_decoder_stage4_forward.9} parent=62 // pred_check_branch
          %337 = sbr.rel (%p335) target = $region67
        $region66: #{vit_decoder_stage4_forward.9} parent=62 // pred_region
          %s338 = smul.u32 4, %s21
          %p339 = scmp.lt.s32.totalorder %s20, 1
          %s340 = scalar_select %p339, %s20, 1
          %p341 = scmp.lt.s32.totalorder %s338, 35
          %s342 = scalar_select %p341, %s338, 35
          %s343 = smul.addr %s340, 36
          %s344 = sadd.s32 %s342, %s343
          %s345 = smul.addr %s344, 8
          %s346 = scalar_lea.vmem %s3, %s345
        $region67: #{vit_decoder_stage4_forward.9} parent=62 // pred_fallthru
          _
      $region63: #{vit_decoder_stage4_forward.9} parent=5 // pred_fallthru
        _
    $region6: #{vit_decoder_stage4_forward.9} parent=1 // loop_footer
      %s13 = sadd.s32 1, %s9
    $region7: #{vit_decoder_stage4_forward.9} parent=1 // loop_footer_branch
      %8 = sbr.rel target = $region3
    $region8: #{vit_decoder_stage4_forward.9} parent=1 // loop_exit
      _

</llo_original>
